<compile_context>
chip_gen: v5e
topology: v5e:2x2
jax: 0.10.0
libtpu: 0.0.40
codegen_flags: <defaults>
</compile_context>

<pallas_src>
import numpy as np
import jax
import jax.numpy as jnp
from jax import lax
from jax.experimental import pallas as pl
from jax.experimental.pallas import tpu as pltpu

H = 64                        # hidden_dim (module default); packed width = 2*H = 128
IN_DIM = (21 // 2 + 1) * 3    # 33
N_BLOCKS = 2
LN_EPS = 1e-5


# --------------------------------------------------------------------------
# Pallas kernel: fused fourier time-embedding -> shared_time_embed ->
# pre_dense -> modulated blocks -> post_dense -> complex_weight -> / sigma.
# --------------------------------------------------------------------------
def score_model_fc_kernel(t_ref, x_ref, wfreq_ref, wsin_ref, wcos_ref,
                          preW_ref, preb_ref, postW_ref, postb_ref,
                          hhW_ref, hhb_ref, escW_ref, escb_ref,
                          eshW_ref, eshb_ref, lng_ref, lnb_ref,
                          modA_ref, modB_ref, out_ref):
    lane = lax.broadcasted_iota(jnp.int32, (1, 2 * H), 1)
    lo_f = (lane < H).astype(jnp.float32)    # 1.0 on real-half lanes  [1, 128]
    hi_f = 1.0 - lo_f                        # 1.0 on imag-half lanes

    def half_swap(x):
        # [xr | xi] -> [xi | xr]: static lane slices + concat (robust lowering)
        return jnp.concatenate([x[:, H:], x[:, :H]], axis=-1)

    def clin(x, W, b):
        # packed complex linear: one 128-wide bf16 MXU matmul, f32 accumulate
        return jnp.dot(x.astype(jnp.bfloat16), W,
                       preferred_element_type=jnp.float32) + b

    def silu(x):
        return x * (1.0 / (1.0 + jnp.exp(-x)))

    def layernorm(x, g, b):
        # LayerNorm applied independently to the real half and the imag half
        # (same gamma/beta), computed fully in the packed layout via masks.
        s_lo = jnp.sum(x * lo_f, axis=-1, keepdims=True)
        s_hi = jnp.sum(x * hi_f, axis=-1, keepdims=True)
        mu = (s_lo * lo_f + s_hi * hi_f) * (1.0 / H)
        xc = x - mu
        x2 = xc * xc
        v_lo = jnp.sum(x2 * lo_f, axis=-1, keepdims=True)
        v_hi = jnp.sum(x2 * hi_f, axis=-1, keepdims=True)
        var = (v_lo * lo_f + v_hi * hi_f) * (1.0 / H)
        return xc * lax.rsqrt(var + LN_EPS) * g + b

    def cmul(n, m):
        # packed complex multiply n * m using half-swaps + lane masks
        m_sw = half_swap(m)                 # [mi | mr]
        n_sw = half_swap(n)                 # [ni | nr]
        a = m * lo_f + m_sw * hi_f          # [mr | mr]
        c = m * hi_f - m_sw * lo_f          # [-mi | mi]
        return n * a + n_sw * c

    def modulate(h, idx, sc, sh):
        # ComplexGnorm(LayerNorm)(h) * (1 + scale) + shift
        n = layernorm(h, lng_ref[idx], lnb_ref[idx])
        return cmul(n, sc + lo_f) + sh      # +1 on the real half only

    # ---- fused Gaussian Fourier time embedding (used_sigmas == t) ----------
    t = t_ref[...]                                # [TB, 1]
    xp = jnp.log(t) * wfreq_ref[...]              # [TB, 128]
    temb = wsin_ref[...] * jnp.sin(xp) + wcos_ref[...] * jnp.cos(xp)

    # shared_time_embed = Linear + ComplexAct(SiLU)
    temb = silu(clin(temb, hhW_ref[0], hhb_ref[0]))
    # h = pre_dense(batch)
    h = clin(x_ref[...], preW_ref[...], preb_ref[...])
    # temb = act(temb)
    temb = silu(temb)

    # emblayers(temb) -> scale, shift (split weights: no lane-64 slicing)
    sc = clin(temb, escW_ref[0], escb_ref[0])
    sh = clin(temb, eshW_ref[0], eshb_ref[0])
    h = silu(modulate(h, 0, sc, sh))
    # dropout(p=0.0) == identity
    h = clin(h, hhW_ref[1], hhb_ref[1])           # outlayers

    temb_s = silu(temb)                           # Sequential(SiLU, Linear) input
    for blk in range(N_BLOCKS):
        e1, e2 = 1 + 2 * blk, 2 + 2 * blk
        o1, o2 = 2 + 2 * blk, 3 + 2 * blk
        n1, n2 = 1 + 2 * blk, 2 + 2 * blk

        sc = clin(temb_s, escW_ref[e1], escb_ref[e1])   # b{blk+1}_emblayers1
        sh = clin(temb_s, eshW_ref[e1], eshb_ref[e1])
        h1 = silu(modulate(h, n1, sc, sh))
        h1 = clin(h1, hhW_ref[o1], hhb_ref[o1])         # b{blk+1}_out_layers1

        sc = clin(temb_s, escW_ref[e2], escb_ref[e2])   # b{blk+1}_emblayers2
        sh = clin(temb_s, eshW_ref[e2], eshb_ref[e2])
        h2 = silu(modulate(h1, n2, sc, sh))
        h2 = clin(h2, hhW_ref[o2], hhb_ref[o2])         # b{blk+1}_out_layers2

        h = h + h2

    # post_dense
    res = clin(h, postW_ref[...], postb_ref[...])

    # res = res * complex_weight + res  ==  res * (1 + cw[k // 3])
    res = res * modA_ref[...] + half_swap(res) * modB_ref[...]

    # scale_by_sigma (fourier embedding: used_sigmas == t)
    out_ref[...] = res / t


# --------------------------------------------------------------------------
# Wrapper: batch padding/tiling, lane packing, pallas_call with batch grid.
# --------------------------------------------------------------------------
def score_model_fc_forward(packed, batch_r, batch_i, t, *, batch_tile=256):
    B = batch_r.shape[0]
    H2 = 2 * H
    PB8 = ((B + 7) // 8) * 8
    TB = max(8, (min(int(batch_tile), PB8) // 8) * 8)
    PB = ((PB8 + TB - 1) // TB) * TB
    grid = (PB // TB,)

    # lane-dense packed input [PB, 128]: real -> lanes 0:33, imag -> 64:97
    x = jnp.zeros((PB, H2), jnp.float32)
    x = x.at[:B, :IN_DIM].set(batch_r)
    x = x.at[:B, H:H + IN_DIM].set(batch_i)
    t_pad = jnp.ones((PB, 1), jnp.float32).at[:B, 0].set(t)

    weights = (packed['wfreq'], packed['wsin'], packed['wcos'],
               packed['pre_W'], packed['pre_b'],
               packed['post_W'], packed['post_b'],
               packed['hh_W'], packed['hh_b'],
               packed['emb_sc_W'], packed['emb_sc_b'],
               packed['emb_sh_W'], packed['emb_sh_b'],
               packed['ln_g'], packed['ln_b'],
               packed['mod_A'], packed['mod_B'])

    def const_spec(a):
        zeros = (0,) * a.ndim
        return pl.BlockSpec(a.shape, lambda i, _z=zeros: _z)

    in_specs = ([pl.BlockSpec((TB, 1), lambda i: (i, 0)),
                 pl.BlockSpec((TB, H2), lambda i: (i, 0))]
                + [const_spec(w) for w in weights])

    out = pl.pallas_call(
        score_model_fc_kernel,
        out_shape=jax.ShapeDtypeStruct((PB, H2), jnp.float32),
        grid=grid,
        in_specs=in_specs,
        out_specs=pl.BlockSpec((TB, H2), lambda i: (i, 0)),
        compiler_params=pltpu.CompilerParams(
            dimension_semantics=("parallel",)),
    )(t_pad, x, *weights)

    return out[:B, :IN_DIM], out[:B, H:H + IN_DIM]


# --------------------------------------------------------------------------
# Deterministic parameter init (synthetic; shapes from __init__) + packing.
# --------------------------------------------------------------------------
def init_params(key, hidden=H, fourier_scale=16.0):
    keys = iter(jax.random.split(key, 128))

    def r16(w):  # weights are stored in bf16 for the MXU; mirror that in `raw`
        return w.astype(jnp.bfloat16).astype(jnp.float32)

    def lin(in_dim, out_dim):
        s = 1.0 / np.sqrt(in_dim)
        Wr = r16(jax.random.normal(next(keys), (in_dim, out_dim), jnp.float32) * s)
        Wi = r16(jax.random.normal(next(keys), (in_dim, out_dim), jnp.float32) * s)
        br = jax.random.normal(next(keys), (out_dim,), jnp.float32) * 0.02
        bi = jax.random.normal(next(keys), (out_dim,), jnp.float32) * 0.02
        return (Wr, Wi, br, bi)

    def lnp():
        g = 1.0 + 0.05 * jax.random.normal(next(keys), (hidden,), jnp.float32)
        b = 0.05 * jax.random.normal(next(keys), (hidden,), jnp.float32)
        return (g, b)

    pre = lin(IN_DIM, hidden)
    shared = lin(hidden, hidden)
    emb0 = lin(hidden, 2 * hidden)
    out0 = lin(hidden, hidden)
    norm0 = lnp()
    blocks = []
    for _ in range(N_BLOCKS):
        blocks.append(dict(emb1=lin(hidden, 2 * hidden), n1=lnp(),
                           o1=lin(hidden, hidden),
                           emb2=lin(hidden, 2 * hidden), n2=lnp(),
                           o2=lin(hidden, hidden)))
    post = lin(hidden, IN_DIM)
    cw = 0.02 * jax.random.normal(next(keys), (21 // 2 + 1, 2), jnp.float32)
    W_gauss = fourier_scale * jax.random.normal(next(keys), (hidden // 2,),
                                                jnp.float32)

    raw = dict(pre=pre, shared=shared, emb0=emb0, out0=out0, norm0=norm0,
               blocks=blocks, post=post, cw=cw, W_gauss=W_gauss)

    # ---------------- pack for the kernel ----------------
    def block_w(layer, in_pad=0, out_pad=0):
        Wr, Wi, br, bi = layer
        if in_pad:
            Wr = jnp.pad(Wr, ((0, in_pad), (0, 0)))
            Wi = jnp.pad(Wi, ((0, in_pad), (0, 0)))
        if out_pad:
            Wr = jnp.pad(Wr, ((0, 0), (0, out_pad)))
            Wi = jnp.pad(Wi, ((0, 0), (0, out_pad)))
            br = jnp.pad(br, (0, out_pad))
            bi = jnp.pad(bi, (0, out_pad))
        Wb = jnp.concatenate(
            [jnp.concatenate([Wr, Wi], axis=1),
             jnp.concatenate([-Wi, Wr], axis=1)], axis=0).astype(jnp.bfloat16)
        bp = jnp.concatenate([br, bi])[None, :].astype(jnp.float32)
        return Wb, bp

    def split_emb(layer):
        Wr, Wi, br, bi = layer
        sc = (Wr[:, :hidden], Wi[:, :hidden], br[:hidden], bi[:hidden])
        sh = (Wr[:, hidden:], Wi[:, hidden:], br[hidden:], bi[hidden:])
        return sc, sh

    hh_list = [shared, out0]
    emb_list = [emb0]
    ln_list = [norm0]
    for blk in blocks:
        hh_list += [blk['o1'], blk['o2']]
        emb_list += [blk['emb1'], blk['emb2']]
        ln_list += [blk['n1'], blk['n2']]

    hh = [block_w(l) for l in hh_list]
    esc, esh = [], []
    for l in emb_list:
        s_c, s_h = split_emb(l)
        esc.append(block_w(s_c))
        esh.append(block_w(s_h))

    pre_W, pre_b = block_w(pre, in_pad=hidden - IN_DIM)
    post_W, post_b = block_w(post, out_pad=hidden - IN_DIM)

    # complex_weight modulation res*(1+cw): precomputed packed A/B vectors
    m_r = np.repeat(1.0 + np.asarray(cw[:, 0]), 3)
    m_i = np.repeat(np.asarray(cw[:, 1]), 3)
    mod_A = np.zeros((1, 2 * hidden), np.float32)
    mod_B = np.zeros((1, 2 * hidden), np.float32)
    mod_A[0, :IN_DIM] = m_r
    mod_A[0, hidden:hidden + IN_DIM] = m_r
    mod_B[0, :IN_DIM] = -m_i
    mod_B[0, hidden:hidden + IN_DIM] = m_i

    # fused fourier embedding: per-lane frequency + sin/cos selectors,
    # replicating cat([sin,cos]) -> cat-with-zeros -> view_as_complex packing
    Wg = np.asarray(W_gauss)
    half = hidden // 2                                  # 32 frequencies
    k = np.arange(hidden)
    temb_freq = np.where(k < half, k, k - half)         # W index per temb pos
    temb_iscos = (k >= half).astype(np.float32)
    d = np.arange(half)
    real_src = 2 * d                                    # temb pos -> complex dim d (real)
    imag_src = 2 * d + 1                                # temb pos -> complex dim d (imag)
    wfreq = np.zeros((1, 2 * hidden), np.float32)
    wsin = np.zeros((1, 2 * hidden), np.float32)
    wcos = np.zeros((1, 2 * hidden), np.float32)
    wfreq[0, :half] = Wg[temb_freq[real_src]] * 2.0 * np.pi
    wfreq[0, hidden:hidden + half] = Wg[temb_freq[imag_src]] * 2.0 * np.pi
    wsin[0, :half] = 1.0 - temb_iscos[real_src]
    wsin[0, hidden:hidden + half] = 1.0 - temb_iscos[imag_src]
    wcos[0, :half] = temb_iscos[real_src]
    wcos[0, hidden:hidden + half] = temb_iscos[imag_src]

    packed = dict(
        wfreq=jnp.asarray(wfreq), wsin=jnp.asarray(wsin), wcos=jnp.asarray(wcos),
        pre_W=pre_W, pre_b=pre_b, post_W=post_W, post_b=post_b,
        hh_W=jnp.stack([w for w, _ in hh]),             # [6,128,128] bf16
        hh_b=jnp.stack([b for _, b in hh]),             # [6,1,128]   f32
        emb_sc_W=jnp.stack([w for w, _ in esc]),        # [5,128,128] bf16
        emb_sc_b=jnp.stack([b for _, b in esc]),
        emb_sh_W=jnp.stack([w for w, _ in esh]),
        emb_sh_b=jnp.stack([b for _, b in esh]),
        ln_g=jnp.stack([jnp.concatenate([g, g])[None, :] for g, _ in ln_list]),
        ln_b=jnp.stack([jnp.concatenate([b, b])[None, :] for _, b in ln_list]),
        mod_A=jnp.asarray(mod_A), mod_B=jnp.asarray(mod_B),
    )
    return raw, packed


# --------------------------------------------------------------------------
# Pure-JAX complex64 reference (mirrors the PyTorch forward).
# --------------------------------------------------------------------------
def _silu(x):
    return x * (1.0 / (1.0 + jnp.exp(-x)))


def fourier_time_embedding(t, W_gauss, hidden):
    x_proj = jnp.log(t)[:, None] * W_gauss[None, :] * (2.0 * np.pi)
    temb = jnp.concatenate([jnp.sin(x_proj), jnp.cos(x_proj)], axis=-1)
    padded = jnp.concatenate([temb, jnp.zeros_like(temb)],
                             axis=-1).reshape(t.shape[0], hidden, 2)
    return padded[..., 0], padded[..., 1]


def reference_forward(raw, batch_c, t):
    hidden = H

    def silu_c(z):
        return _silu(z.real) + 1j * _silu(z.imag)

    def clin(z, layer):
        Wr, Wi, br, bi = layer
        return z @ (Wr + 1j * Wi).astype(jnp.complex64) \
                 + (br + 1j * bi).astype(jnp.complex64)

    def ln_c(z, gb):
        g, b = gb

        def ln(x):
            mu = jnp.mean(x, -1, keepdims=True)
            xc = x - mu
            var = jnp.mean(xc * xc, -1, keepdims=True)
            return xc / jnp.sqrt(var + LN_EPS) * g + b
        return ln(z.real) + 1j * ln(z.imag)

    B = batch_c.shape[0]
    tr, ti = fourier_time_embedding(t, raw['W_gauss'], hidden)
    temb_c = (tr + 1j * ti).astype(jnp.complex64)

    temb_c = silu_c(clin(temb_c, raw['shared']))
    h = clin(batch_c, raw['pre'])
    temb_c = silu_c(temb_c)
    emb = clin(temb_c, raw['emb0'])
    scale, shift = emb[:, :hidden], emb[:, hidden:]
    h = ln_c(h, raw['norm0']) * (1 + scale) + shift
    h = silu_c(h)
    h = clin(h, raw['out0'])
    for blk in raw['blocks']:
        emb = clin(silu_c(temb_c), blk['emb1'])
        scale, shift = emb[:, :hidden], emb[:, hidden:]
        h1 = ln_c(h, blk['n1']) * (1 + scale) + shift
        h1 = silu_c(h1)
        h1 = clin(h1, blk['o1'])
        emb = clin(silu_c(temb_c), blk['emb2'])
        scale, shift = emb[:, :hidden], emb[:, hidden:]
        h2 = ln_c(h1, blk['n2']) * (1 + scale) + shift
        h2 = silu_c(h2)
        h2 = clin(h2, blk['o2'])
        h = h + h2
    res = clin(h, raw['post'])
    res = res.reshape(B, 21 // 2 + 1, 3).transpose(0, 2, 1)
    cwc = (raw['cw'][:, 0] + 1j * raw['cw'][:, 1]).astype(jnp.complex64)
    res = res * cwc + res
    res = res.transpose(0, 2, 1).reshape(B, IN_DIM)
    res = res / t[:, None]
    return res


if __name__ == "__main__":
    key = jax.random.PRNGKey(0)
    k_params, k_br, k_bi, k_t = jax.random.split(key, 4)

    B = 20                               # padded to 24 rows -> 3 grid steps of 8
    raw, packed = init_params(k_params)

    batch_r = jax.random.normal(k_br, (B, IN_DIM), jnp.float32)
    batch_i = jax.random.normal(k_bi, (B, IN_DIM), jnp.float32)
    t = jax.random.uniform(k_t, (B,), jnp.float32, 0.5, 2.0)

    out_r, out_i = score_model_fc_forward(packed, batch_r, batch_i, t,
                                          batch_tile=8)
    out_r, out_i = jax.block_until_ready((out_r, out_i))

    # sanity check vs pure-JAX complex reference (bf16 MXU path -> loose tol)
    ref = reference_forward(raw, (batch_r + 1j * batch_i).astype(jnp.complex64), t)
    out_c = np.asarray(out_r) + 1j * np.asarray(out_i)
    ref_np = np.asarray(ref)
    assert np.all(np.isfinite(out_c.real)) and np.all(np.isfinite(out_c.imag))
    rel = np.linalg.norm(out_c - ref_np) / np.linalg.norm(ref_np)
    assert rel < 4e-2, f"relative L2 error too high: {rel}"

    print("KERNEL_OK")
</pallas_src>

<mosaic_0001>
module attributes {stable_mosaic.version = 11 : i64} {
  func.func @score_model_fc_kernel(%arg0: i32, %arg1: memref<8x1xf32, #tpu.memory_space<vmem>>, %arg2: memref<8x128xf32, #tpu.memory_space<vmem>>, %arg3: memref<1x128xf32, #tpu.memory_space<vmem>>, %arg4: memref<1x128xf32, #tpu.memory_space<vmem>>, %arg5: memref<1x128xf32, #tpu.memory_space<vmem>>, %arg6: memref<128x128xbf16, #tpu.memory_space<vmem>>, %arg7: memref<1x128xf32, #tpu.memory_space<vmem>>, %arg8: memref<128x128xbf16, #tpu.memory_space<vmem>>, %arg9: memref<1x128xf32, #tpu.memory_space<vmem>>, %arg10: memref<6x128x128xbf16, #tpu.memory_space<vmem>>, %arg11: memref<6x1x128xf32, #tpu.memory_space<vmem>>, %arg12: memref<5x128x128xbf16, #tpu.memory_space<vmem>>, %arg13: memref<5x1x128xf32, #tpu.memory_space<vmem>>, %arg14: memref<5x128x128xbf16, #tpu.memory_space<vmem>>, %arg15: memref<5x1x128xf32, #tpu.memory_space<vmem>>, %arg16: memref<5x1x128xf32, #tpu.memory_space<vmem>>, %arg17: memref<5x1x128xf32, #tpu.memory_space<vmem>>, %arg18: memref<1x128xf32, #tpu.memory_space<vmem>>, %arg19: memref<1x128xf32, #tpu.memory_space<vmem>>, %arg20: memref<8x128xf32, #tpu.memory_space<vmem>>) attributes {dimension_semantics = [#tpu.dimension_semantics<parallel>], iteration_bounds = array<i64: 3>, scalar_prefetch = 0 : i64, scratch_operands = 0 : i64, tpu.core_type = #tpu.core_type<tc>, window_params = [{transform_indices = @transform_0, window_bounds = array<i64: 8, 1>}, {transform_indices = @transform_1, window_bounds = array<i64: 8, 128>}, {pipeline_mode = #tpu.pipeline_mode<synchronous>, transform_indices = @transform_2, window_bounds = array<i64: 1, 128>}, {pipeline_mode = #tpu.pipeline_mode<synchronous>, transform_indices = @transform_3, window_bounds = array<i64: 1, 128>}, {pipeline_mode = #tpu.pipeline_mode<synchronous>, transform_indices = @transform_4, window_bounds = array<i64: 1, 128>}, {pipeline_mode = #tpu.pipeline_mode<synchronous>, transform_indices = @transform_5, window_bounds = array<i64: 128, 128>}, {pipeline_mode = #tpu.pipeline_mode<synchronous>, transform_indices = @transform_6, window_bounds = array<i64: 1, 128>}, {pipeline_mode = #tpu.pipeline_mode<synchronous>, transform_indices = @transform_7, window_bounds = array<i64: 128, 128>}, {pipeline_mode = #tpu.pipeline_mode<synchronous>, transform_indices = @transform_8, window_bounds = array<i64: 1, 128>}, {pipeline_mode = #tpu.pipeline_mode<synchronous>, transform_indices = @transform_9, window_bounds = array<i64: 6, 128, 128>}, {pipeline_mode = #tpu.pipeline_mode<synchronous>, transform_indices = @transform_10, window_bounds = array<i64: 6, 1, 128>}, {pipeline_mode = #tpu.pipeline_mode<synchronous>, transform_indices = @transform_11, window_bounds = array<i64: 5, 128, 128>}, {pipeline_mode = #tpu.pipeline_mode<synchronous>, transform_indices = @transform_12, window_bounds = array<i64: 5, 1, 128>}, {pipeline_mode = #tpu.pipeline_mode<synchronous>, transform_indices = @transform_13, window_bounds = array<i64: 5, 128, 128>}, {pipeline_mode = #tpu.pipeline_mode<synchronous>, transform_indices = @transform_14, window_bounds = array<i64: 5, 1, 128>}, {pipeline_mode = #tpu.pipeline_mode<synchronous>, transform_indices = @transform_15, window_bounds = array<i64: 5, 1, 128>}, {pipeline_mode = #tpu.pipeline_mode<synchronous>, transform_indices = @transform_16, window_bounds = array<i64: 5, 1, 128>}, {pipeline_mode = #tpu.pipeline_mode<synchronous>, transform_indices = @transform_17, window_bounds = array<i64: 1, 128>}, {pipeline_mode = #tpu.pipeline_mode<synchronous>, transform_indices = @transform_18, window_bounds = array<i64: 1, 128>}, {transform_indices = @transform_19, window_bounds = array<i64: 8, 128>}]} {
    %0 = tpu.iota {dimensions = array<i32: 1>} : vector<1x128xi32>
    %c64_i32 = arith.constant 64 : i32
    %1 = vector.broadcast %c64_i32 : i32 to vector<1x128xi32>
    %2 = arith.cmpi slt, %0, %1 : vector<1x128xi32>
    %3 = arith.extui %2 : vector<1x128xi1> to vector<1x128xi32>
    %4 = arith.sitofp %3 : vector<1x128xi32> to vector<1x128xf32>
    %cst = arith.constant 1.000000e+00 : f32
    %5 = vector.broadcast %cst : f32 to vector<1x128xf32>
    %6 = arith.subf %5, %4 : vector<1x128xf32>
    %c0 = arith.constant 0 : index
    %c0_0 = arith.constant 0 : index
    %7 = vector.load %arg1[%c0, %c0_0] : memref<8x1xf32, #tpu.memory_space<vmem>>, vector<8x1xf32>
    %8 = math.log %7 : vector<8x1xf32>
    %c0_1 = arith.constant 0 : index
    %c0_2 = arith.constant 0 : index
    %9 = vector.load %arg3[%c0_1, %c0_2] : memref<1x128xf32, #tpu.memory_space<vmem>>, vector<1x128xf32>
    %10 = vector.broadcast %8 : vector<8x1xf32> to vector<8x128xf32>
    %11 = vector.broadcast %9 : vector<1x128xf32> to vector<8x128xf32>
    %12 = arith.mulf %10, %11 : vector<8x128xf32>
    %c0_3 = arith.constant 0 : index
    %c0_4 = arith.constant 0 : index
    %13 = vector.load %arg4[%c0_3, %c0_4] : memref<1x128xf32, #tpu.memory_space<vmem>>, vector<1x128xf32>
    %14 = math.sin %12 : vector<8x128xf32>
    %15 = vector.broadcast %13 : vector<1x128xf32> to vector<8x128xf32>
    %16 = arith.mulf %15, %14 : vector<8x128xf32>
    %c0_5 = arith.constant 0 : index
    %c0_6 = arith.constant 0 : index
    %17 = vector.load %arg5[%c0_5, %c0_6] : memref<1x128xf32, #tpu.memory_space<vmem>>, vector<1x128xf32>
    %18 = math.cos %12 : vector<8x128xf32>
    %19 = vector.broadcast %17 : vector<1x128xf32> to vector<8x128xf32>
    %20 = arith.mulf %19, %18 : vector<8x128xf32>
    %21 = arith.addf %16, %20 : vector<8x128xf32>
    %c0_7 = arith.constant 0 : index
    %c0_8 = arith.constant 0 : index
    %c0_9 = arith.constant 0 : index
    %22 = vector.load %arg10[%c0_7, %c0_8, %c0_9] : memref<6x128x128xbf16, #tpu.memory_space<vmem>>, vector<1x128x128xbf16>
    %23 = vector.shape_cast %22 : vector<1x128x128xbf16> to vector<128x128xbf16>
    %c0_10 = arith.constant 0 : index
    %c0_11 = arith.constant 0 : index
    %c0_12 = arith.constant 0 : index
    %24 = vector.load %arg11[%c0_10, %c0_11, %c0_12] : memref<6x1x128xf32, #tpu.memory_space<vmem>>, vector<1x1x128xf32>
    %25 = vector.shape_cast %24 : vector<1x1x128xf32> to vector<1x128xf32>
    %26 = arith.truncf %21 : vector<8x128xf32> to vector<8x128xbf16>
    %cst_13 = arith.constant dense<0.000000e+00> : vector<8x128xf32>
    %27 = tpu.matmul %26, %23, %cst_13 {dimension_numbers = #tpu.dot_dimension_numbers<[1], [0], [0], [1], [0, 0, 1, 1], [], []>} : vector<8x128xbf16>, vector<128x128xbf16>, vector<8x128xf32> -> vector<8x128xf32>
    %28 = vector.broadcast %25 : vector<1x128xf32> to vector<8x128xf32>
    %29 = arith.addf %27, %28 : vector<8x128xf32>
    %cst_14 = arith.constant 0.000000e+00 : f32
    %30 = vector.broadcast %cst_14 : f32 to vector<8x128xf32>
    %31 = arith.subf %30, %29 : vector<8x128xf32>
    %32 = math.exp %31 : vector<8x128xf32>
    %cst_15 = arith.constant 1.000000e+00 : f32
    %33 = vector.broadcast %cst_15 : f32 to vector<8x128xf32>
    %34 = arith.addf %33, %32 : vector<8x128xf32>
    %cst_16 = arith.constant 1.000000e+00 : f32
    %35 = vector.broadcast %cst_16 : f32 to vector<8x128xf32>
    %36 = arith.divf %35, %34 : vector<8x128xf32>
    %37 = arith.mulf %29, %36 : vector<8x128xf32>
    %c0_17 = arith.constant 0 : index
    %c0_18 = arith.constant 0 : index
    %38 = vector.load %arg2[%c0_17, %c0_18] : memref<8x128xf32, #tpu.memory_space<vmem>>, vector<8x128xf32>
    %c0_19 = arith.constant 0 : index
    %c0_20 = arith.constant 0 : index
    %39 = vector.load %arg6[%c0_19, %c0_20] : memref<128x128xbf16, #tpu.memory_space<vmem>>, vector<128x128xbf16>
    %c0_21 = arith.constant 0 : index
    %c0_22 = arith.constant 0 : index
    %40 = vector.load %arg7[%c0_21, %c0_22] : memref<1x128xf32, #tpu.memory_space<vmem>>, vector<1x128xf32>
    %41 = arith.truncf %38 : vector<8x128xf32> to vector<8x128xbf16>
    %cst_23 = arith.constant dense<0.000000e+00> : vector<8x128xf32>
    %42 = tpu.matmul %41, %39, %cst_23 {dimension_numbers = #tpu.dot_dimension_numbers<[1], [0], [0], [1], [0, 0, 1, 1], [], []>} : vector<8x128xbf16>, vector<128x128xbf16>, vector<8x128xf32> -> vector<8x128xf32>
    %43 = vector.broadcast %40 : vector<1x128xf32> to vector<8x128xf32>
    %44 = arith.addf %42, %43 : vector<8x128xf32>
    %cst_24 = arith.constant 0.000000e+00 : f32
    %45 = vector.broadcast %cst_24 : f32 to vector<8x128xf32>
    %46 = arith.subf %45, %37 : vector<8x128xf32>
    %47 = math.exp %46 : vector<8x128xf32>
    %cst_25 = arith.constant 1.000000e+00 : f32
    %48 = vector.broadcast %cst_25 : f32 to vector<8x128xf32>
    %49 = arith.addf %48, %47 : vector<8x128xf32>
    %cst_26 = arith.constant 1.000000e+00 : f32
    %50 = vector.broadcast %cst_26 : f32 to vector<8x128xf32>
    %51 = arith.divf %50, %49 : vector<8x128xf32>
    %52 = arith.mulf %37, %51 : vector<8x128xf32>
    %c0_27 = arith.constant 0 : index
    %c0_28 = arith.constant 0 : index
    %c0_29 = arith.constant 0 : index
    %53 = vector.load %arg12[%c0_27, %c0_28, %c0_29] : memref<5x128x128xbf16, #tpu.memory_space<vmem>>, vector<1x128x128xbf16>
    %54 = vector.shape_cast %53 : vector<1x128x128xbf16> to vector<128x128xbf16>
    %c0_30 = arith.constant 0 : index
    %c0_31 = arith.constant 0 : index
    %c0_32 = arith.constant 0 : index
    %55 = vector.load %arg13[%c0_30, %c0_31, %c0_32] : memref<5x1x128xf32, #tpu.memory_space<vmem>>, vector<1x1x128xf32>
    %56 = vector.shape_cast %55 : vector<1x1x128xf32> to vector<1x128xf32>
    %57 = arith.truncf %52 : vector<8x128xf32> to vector<8x128xbf16>
    %cst_33 = arith.constant dense<0.000000e+00> : vector<8x128xf32>
    %58 = tpu.matmul %57, %54, %cst_33 {dimension_numbers = #tpu.dot_dimension_numbers<[1], [0], [0], [1], [0, 0, 1, 1], [], []>} : vector<8x128xbf16>, vector<128x128xbf16>, vector<8x128xf32> -> vector<8x128xf32>
    %59 = vector.broadcast %56 : vector<1x128xf32> to vector<8x128xf32>
    %60 = arith.addf %58, %59 : vector<8x128xf32>
    %c0_34 = arith.constant 0 : index
    %c0_35 = arith.constant 0 : index
    %c0_36 = arith.constant 0 : index
    %61 = vector.load %arg14[%c0_34, %c0_35, %c0_36] : memref<5x128x128xbf16, #tpu.memory_space<vmem>>, vector<1x128x128xbf16>
    %62 = vector.shape_cast %61 : vector<1x128x128xbf16> to vector<128x128xbf16>
    %c0_37 = arith.constant 0 : index
    %c0_38 = arith.constant 0 : index
    %c0_39 = arith.constant 0 : index
    %63 = vector.load %arg15[%c0_37, %c0_38, %c0_39] : memref<5x1x128xf32, #tpu.memory_space<vmem>>, vector<1x1x128xf32>
    %64 = vector.shape_cast %63 : vector<1x1x128xf32> to vector<1x128xf32>
    %65 = arith.truncf %52 : vector<8x128xf32> to vector<8x128xbf16>
    %cst_40 = arith.constant dense<0.000000e+00> : vector<8x128xf32>
    %66 = tpu.matmul %65, %62, %cst_40 {dimension_numbers = #tpu.dot_dimension_numbers<[1], [0], [0], [1], [0, 0, 1, 1], [], []>} : vector<8x128xbf16>, vector<128x128xbf16>, vector<8x128xf32> -> vector<8x128xf32>
    %67 = vector.broadcast %64 : vector<1x128xf32> to vector<8x128xf32>
    %68 = arith.addf %66, %67 : vector<8x128xf32>
    %c0_41 = arith.constant 0 : index
    %c0_42 = arith.constant 0 : index
    %c0_43 = arith.constant 0 : index
    %69 = vector.load %arg16[%c0_41, %c0_42, %c0_43] : memref<5x1x128xf32, #tpu.memory_space<vmem>>, vector<1x1x128xf32>
    %70 = vector.shape_cast %69 : vector<1x1x128xf32> to vector<1x128xf32>
    %c0_44 = arith.constant 0 : index
    %c0_45 = arith.constant 0 : index
    %c0_46 = arith.constant 0 : index
    %71 = vector.load %arg17[%c0_44, %c0_45, %c0_46] : memref<5x1x128xf32, #tpu.memory_space<vmem>>, vector<1x1x128xf32>
    %72 = vector.shape_cast %71 : vector<1x1x128xf32> to vector<1x128xf32>
    %73 = vector.broadcast %4 : vector<1x128xf32> to vector<8x128xf32>
    %74 = arith.mulf %44, %73 : vector<8x128xf32>
    %cst_47 = arith.constant dense<0.000000e+00> : vector<8xf32>
    %75 = vector.multi_reduction <add>, %74, %cst_47 [1] : vector<8x128xf32> to vector<8xf32>
    %76 = vector.shape_cast %75 : vector<8xf32> to vector<8x1xf32>
    %77 = vector.broadcast %6 : vector<1x128xf32> to vector<8x128xf32>
    %78 = arith.mulf %44, %77 : vector<8x128xf32>
    %cst_48 = arith.constant dense<0.000000e+00> : vector<8xf32>
    %79 = vector.multi_reduction <add>, %78, %cst_48 [1] : vector<8x128xf32> to vector<8xf32>
    %80 = vector.shape_cast %79 : vector<8xf32> to vector<8x1xf32>
    %81 = vector.broadcast %76 : vector<8x1xf32> to vector<8x128xf32>
    %82 = vector.broadcast %4 : vector<1x128xf32> to vector<8x128xf32>
    %83 = arith.mulf %81, %82 : vector<8x128xf32>
    %84 = vector.broadcast %80 : vector<8x1xf32> to vector<8x128xf32>
    %85 = vector.broadcast %6 : vector<1x128xf32> to vector<8x128xf32>
    %86 = arith.mulf %84, %85 : vector<8x128xf32>
    %87 = arith.addf %83, %86 : vector<8x128xf32>
    %cst_49 = arith.constant 1.562500e-02 : f32
    %88 = vector.broadcast %cst_49 : f32 to vector<8x128xf32>
    %89 = arith.mulf %87, %88 : vector<8x128xf32>
    %90 = arith.subf %44, %89 : vector<8x128xf32>
    %91 = arith.mulf %90, %90 : vector<8x128xf32>
    %92 = vector.broadcast %4 : vector<1x128xf32> to vector<8x128xf32>
    %93 = arith.mulf %91, %92 : vector<8x128xf32>
    %cst_50 = arith.constant dense<0.000000e+00> : vector<8xf32>
    %94 = vector.multi_reduction <add>, %93, %cst_50 [1] : vector<8x128xf32> to vector<8xf32>
    %95 = vector.shape_cast %94 : vector<8xf32> to vector<8x1xf32>
    %96 = vector.broadcast %6 : vector<1x128xf32> to vector<8x128xf32>
    %97 = arith.mulf %91, %96 : vector<8x128xf32>
    %cst_51 = arith.constant dense<0.000000e+00> : vector<8xf32>
    %98 = vector.multi_reduction <add>, %97, %cst_51 [1] : vector<8x128xf32> to vector<8xf32>
    %99 = vector.shape_cast %98 : vector<8xf32> to vector<8x1xf32>
    %100 = vector.broadcast %95 : vector<8x1xf32> to vector<8x128xf32>
    %101 = vector.broadcast %4 : vector<1x128xf32> to vector<8x128xf32>
    %102 = arith.mulf %100, %101 : vector<8x128xf32>
    %103 = vector.broadcast %99 : vector<8x1xf32> to vector<8x128xf32>
    %104 = vector.broadcast %6 : vector<1x128xf32> to vector<8x128xf32>
    %105 = arith.mulf %103, %104 : vector<8x128xf32>
    %106 = arith.addf %102, %105 : vector<8x128xf32>
    %cst_52 = arith.constant 1.562500e-02 : f32
    %107 = vector.broadcast %cst_52 : f32 to vector<8x128xf32>
    %108 = arith.mulf %106, %107 : vector<8x128xf32>
    %cst_53 = arith.constant 9.99999974E-6 : f32
    %109 = vector.broadcast %cst_53 : f32 to vector<8x128xf32>
    %110 = arith.addf %108, %109 : vector<8x128xf32>
    %111 = math.rsqrt %110 : vector<8x128xf32>
    %112 = arith.mulf %90, %111 : vector<8x128xf32>
    %113 = vector.broadcast %70 : vector<1x128xf32> to vector<8x128xf32>
    %114 = arith.mulf %112, %113 : vector<8x128xf32>
    %115 = vector.broadcast %72 : vector<1x128xf32> to vector<8x128xf32>
    %116 = arith.addf %114, %115 : vector<8x128xf32>
    %117 = vector.broadcast %4 : vector<1x128xf32> to vector<8x128xf32>
    %118 = arith.addf %60, %117 : vector<8x128xf32>
    %119 = vector.extract_strided_slice %118 {offsets = [0, 64], sizes = [8, 64], strides = [1, 1]} : vector<8x128xf32> to vector<8x64xf32>
    %120 = vector.extract_strided_slice %118 {offsets = [0, 0], sizes = [8, 64], strides = [1, 1]} : vector<8x128xf32> to vector<8x64xf32>
    %121 = tpu.concatenate %119, %120 in 1 : vector<8x64xf32>, vector<8x64xf32> -> vector<8x128xf32>
    %122 = vector.extract_strided_slice %116 {offsets = [0, 64], sizes = [8, 64], strides = [1, 1]} : vector<8x128xf32> to vector<8x64xf32>
    %123 = vector.extract_strided_slice %116 {offsets = [0, 0], sizes = [8, 64], strides = [1, 1]} : vector<8x128xf32> to vector<8x64xf32>
    %124 = tpu.concatenate %122, %123 in 1 : vector<8x64xf32>, vector<8x64xf32> -> vector<8x128xf32>
    %125 = vector.broadcast %4 : vector<1x128xf32> to vector<8x128xf32>
    %126 = arith.mulf %118, %125 : vector<8x128xf32>
    %127 = vector.broadcast %6 : vector<1x128xf32> to vector<8x128xf32>
    %128 = arith.mulf %121, %127 : vector<8x128xf32>
    %129 = arith.addf %126, %128 : vector<8x128xf32>
    %130 = vector.broadcast %6 : vector<1x128xf32> to vector<8x128xf32>
    %131 = arith.mulf %118, %130 : vector<8x128xf32>
    %132 = vector.broadcast %4 : vector<1x128xf32> to vector<8x128xf32>
    %133 = arith.mulf %121, %132 : vector<8x128xf32>
    %134 = arith.subf %131, %133 : vector<8x128xf32>
    %135 = arith.mulf %116, %129 : vector<8x128xf32>
    %136 = arith.mulf %124, %134 : vector<8x128xf32>
    %137 = arith.addf %135, %136 : vector<8x128xf32>
    %138 = arith.addf %137, %68 : vector<8x128xf32>
    %cst_54 = arith.constant 0.000000e+00 : f32
    %139 = vector.broadcast %cst_54 : f32 to vector<8x128xf32>
    %140 = arith.subf %139, %138 : vector<8x128xf32>
    %141 = math.exp %140 : vector<8x128xf32>
    %cst_55 = arith.constant 1.000000e+00 : f32
    %142 = vector.broadcast %cst_55 : f32 to vector<8x128xf32>
    %143 = arith.addf %142, %141 : vector<8x128xf32>
    %cst_56 = arith.constant 1.000000e+00 : f32
    %144 = vector.broadcast %cst_56 : f32 to vector<8x128xf32>
    %145 = arith.divf %144, %143 : vector<8x128xf32>
    %146 = arith.mulf %138, %145 : vector<8x128xf32>
    %c1 = arith.constant 1 : index
    %c0_57 = arith.constant 0 : index
    %c0_58 = arith.constant 0 : index
    %147 = vector.load %arg10[%c1, %c0_57, %c0_58] : memref<6x128x128xbf16, #tpu.memory_space<vmem>>, vector<1x128x128xbf16>
    %148 = vector.shape_cast %147 : vector<1x128x128xbf16> to vector<128x128xbf16>
    %c1_59 = arith.constant 1 : index
    %c0_60 = arith.constant 0 : index
    %c0_61 = arith.constant 0 : index
    %149 = vector.load %arg11[%c1_59, %c0_60, %c0_61] : memref<6x1x128xf32, #tpu.memory_space<vmem>>, vector<1x1x128xf32>
    %150 = vector.shape_cast %149 : vector<1x1x128xf32> to vector<1x128xf32>
    %151 = arith.truncf %146 : vector<8x128xf32> to vector<8x128xbf16>
    %cst_62 = arith.constant dense<0.000000e+00> : vector<8x128xf32>
    %152 = tpu.matmul %151, %148, %cst_62 {dimension_numbers = #tpu.dot_dimension_numbers<[1], [0], [0], [1], [0, 0, 1, 1], [], []>} : vector<8x128xbf16>, vector<128x128xbf16>, vector<8x128xf32> -> vector<8x128xf32>
    %153 = vector.broadcast %150 : vector<1x128xf32> to vector<8x128xf32>
    %154 = arith.addf %152, %153 : vector<8x128xf32>
    %cst_63 = arith.constant 0.000000e+00 : f32
    %155 = vector.broadcast %cst_63 : f32 to vector<8x128xf32>
    %156 = arith.subf %155, %52 : vector<8x128xf32>
    %157 = math.exp %156 : vector<8x128xf32>
    %cst_64 = arith.constant 1.000000e+00 : f32
    %158 = vector.broadcast %cst_64 : f32 to vector<8x128xf32>
    %159 = arith.addf %158, %157 : vector<8x128xf32>
    %cst_65 = arith.constant 1.000000e+00 : f32
    %160 = vector.broadcast %cst_65 : f32 to vector<8x128xf32>
    %161 = arith.divf %160, %159 : vector<8x128xf32>
    %162 = arith.mulf %52, %161 : vector<8x128xf32>
    %c1_66 = arith.constant 1 : index
    %c0_67 = arith.constant 0 : index
    %c0_68 = arith.constant 0 : index
    %163 = vector.load %arg12[%c1_66, %c0_67, %c0_68] : memref<5x128x128xbf16, #tpu.memory_space<vmem>>, vector<1x128x128xbf16>
    %164 = vector.shape_cast %163 : vector<1x128x128xbf16> to vector<128x128xbf16>
    %c1_69 = arith.constant 1 : index
    %c0_70 = arith.constant 0 : index
    %c0_71 = arith.constant 0 : index
    %165 = vector.load %arg13[%c1_69, %c0_70, %c0_71] : memref<5x1x128xf32, #tpu.memory_space<vmem>>, vector<1x1x128xf32>
    %166 = vector.shape_cast %165 : vector<1x1x128xf32> to vector<1x128xf32>
    %167 = arith.truncf %162 : vector<8x128xf32> to vector<8x128xbf16>
    %cst_72 = arith.constant dense<0.000000e+00> : vector<8x128xf32>
    %168 = tpu.matmul %167, %164, %cst_72 {dimension_numbers = #tpu.dot_dimension_numbers<[1], [0], [0], [1], [0, 0, 1, 1], [], []>} : vector<8x128xbf16>, vector<128x128xbf16>, vector<8x128xf32> -> vector<8x128xf32>
    %169 = vector.broadcast %166 : vector<1x128xf32> to vector<8x128xf32>
    %170 = arith.addf %168, %169 : vector<8x128xf32>
    %c1_73 = arith.constant 1 : index
    %c0_74 = arith.constant 0 : index
    %c0_75 = arith.constant 0 : index
    %171 = vector.load %arg14[%c1_73, %c0_74, %c0_75] : memref<5x128x128xbf16, #tpu.memory_space<vmem>>, vector<1x128x128xbf16>
    %172 = vector.shape_cast %171 : vector<1x128x128xbf16> to vector<128x128xbf16>
    %c1_76 = arith.constant 1 : index
    %c0_77 = arith.constant 0 : index
    %c0_78 = arith.constant 0 : index
    %173 = vector.load %arg15[%c1_76, %c0_77, %c0_78] : memref<5x1x128xf32, #tpu.memory_space<vmem>>, vector<1x1x128xf32>
    %174 = vector.shape_cast %173 : vector<1x1x128xf32> to vector<1x128xf32>
    %175 = arith.truncf %162 : vector<8x128xf32> to vector<8x128xbf16>
    %cst_79 = arith.constant dense<0.000000e+00> : vector<8x128xf32>
    %176 = tpu.matmul %175, %172, %cst_79 {dimension_numbers = #tpu.dot_dimension_numbers<[1], [0], [0], [1], [0, 0, 1, 1], [], []>} : vector<8x128xbf16>, vector<128x128xbf16>, vector<8x128xf32> -> vector<8x128xf32>
    %177 = vector.broadcast %174 : vector<1x128xf32> to vector<8x128xf32>
    %178 = arith.addf %176, %177 : vector<8x128xf32>
    %c1_80 = arith.constant 1 : index
    %c0_81 = arith.constant 0 : index
    %c0_82 = arith.constant 0 : index
    %179 = vector.load %arg16[%c1_80, %c0_81, %c0_82] : memref<5x1x128xf32, #tpu.memory_space<vmem>>, vector<1x1x128xf32>
    %180 = vector.shape_cast %179 : vector<1x1x128xf32> to vector<1x128xf32>
    %c1_83 = arith.constant 1 : index
    %c0_84 = arith.constant 0 : index
    %c0_85 = arith.constant 0 : index
    %181 = vector.load %arg17[%c1_83, %c0_84, %c0_85] : memref<5x1x128xf32, #tpu.memory_space<vmem>>, vector<1x1x128xf32>
    %182 = vector.shape_cast %181 : vector<1x1x128xf32> to vector<1x128xf32>
    %183 = vector.broadcast %4 : vector<1x128xf32> to vector<8x128xf32>
    %184 = arith.mulf %154, %183 : vector<8x128xf32>
    %cst_86 = arith.constant dense<0.000000e+00> : vector<8xf32>
    %185 = vector.multi_reduction <add>, %184, %cst_86 [1] : vector<8x128xf32> to vector<8xf32>
    %186 = vector.shape_cast %185 : vector<8xf32> to vector<8x1xf32>
    %187 = vector.broadcast %6 : vector<1x128xf32> to vector<8x128xf32>
    %188 = arith.mulf %154, %187 : vector<8x128xf32>
    %cst_87 = arith.constant dense<0.000000e+00> : vector<8xf32>
    %189 = vector.multi_reduction <add>, %188, %cst_87 [1] : vector<8x128xf32> to vector<8xf32>
    %190 = vector.shape_cast %189 : vector<8xf32> to vector<8x1xf32>
    %191 = vector.broadcast %186 : vector<8x1xf32> to vector<8x128xf32>
    %192 = vector.broadcast %4 : vector<1x128xf32> to vector<8x128xf32>
    %193 = arith.mulf %191, %192 : vector<8x128xf32>
    %194 = vector.broadcast %190 : vector<8x1xf32> to vector<8x128xf32>
    %195 = vector.broadcast %6 : vector<1x128xf32> to vector<8x128xf32>
    %196 = arith.mulf %194, %195 : vector<8x128xf32>
    %197 = arith.addf %193, %196 : vector<8x128xf32>
    %cst_88 = arith.constant 1.562500e-02 : f32
    %198 = vector.broadcast %cst_88 : f32 to vector<8x128xf32>
    %199 = arith.mulf %197, %198 : vector<8x128xf32>
    %200 = arith.subf %154, %199 : vector<8x128xf32>
    %201 = arith.mulf %200, %200 : vector<8x128xf32>
    %202 = vector.broadcast %4 : vector<1x128xf32> to vector<8x128xf32>
    %203 = arith.mulf %201, %202 : vector<8x128xf32>
    %cst_89 = arith.constant dense<0.000000e+00> : vector<8xf32>
    %204 = vector.multi_reduction <add>, %203, %cst_89 [1] : vector<8x128xf32> to vector<8xf32>
    %205 = vector.shape_cast %204 : vector<8xf32> to vector<8x1xf32>
    %206 = vector.broadcast %6 : vector<1x128xf32> to vector<8x128xf32>
    %207 = arith.mulf %201, %206 : vector<8x128xf32>
    %cst_90 = arith.constant dense<0.000000e+00> : vector<8xf32>
    %208 = vector.multi_reduction <add>, %207, %cst_90 [1] : vector<8x128xf32> to vector<8xf32>
    %209 = vector.shape_cast %208 : vector<8xf32> to vector<8x1xf32>
    %210 = vector.broadcast %205 : vector<8x1xf32> to vector<8x128xf32>
    %211 = vector.broadcast %4 : vector<1x128xf32> to vector<8x128xf32>
    %212 = arith.mulf %210, %211 : vector<8x128xf32>
    %213 = vector.broadcast %209 : vector<8x1xf32> to vector<8x128xf32>
    %214 = vector.broadcast %6 : vector<1x128xf32> to vector<8x128xf32>
    %215 = arith.mulf %213, %214 : vector<8x128xf32>
    %216 = arith.addf %212, %215 : vector<8x128xf32>
    %cst_91 = arith.constant 1.562500e-02 : f32
    %217 = vector.broadcast %cst_91 : f32 to vector<8x128xf32>
    %218 = arith.mulf %216, %217 : vector<8x128xf32>
    %cst_92 = arith.constant 9.99999974E-6 : f32
    %219 = vector.broadcast %cst_92 : f32 to vector<8x128xf32>
    %220 = arith.addf %218, %219 : vector<8x128xf32>
    %221 = math.rsqrt %220 : vector<8x128xf32>
    %222 = arith.mulf %200, %221 : vector<8x128xf32>
    %223 = vector.broadcast %180 : vector<1x128xf32> to vector<8x128xf32>
    %224 = arith.mulf %222, %223 : vector<8x128xf32>
    %225 = vector.broadcast %182 : vector<1x128xf32> to vector<8x128xf32>
    %226 = arith.addf %224, %225 : vector<8x128xf32>
    %227 = vector.broadcast %4 : vector<1x128xf32> to vector<8x128xf32>
    %228 = arith.addf %170, %227 : vector<8x128xf32>
    %229 = vector.extract_strided_slice %228 {offsets = [0, 64], sizes = [8, 64], strides = [1, 1]} : vector<8x128xf32> to vector<8x64xf32>
    %230 = vector.extract_strided_slice %228 {offsets = [0, 0], sizes = [8, 64], strides = [1, 1]} : vector<8x128xf32> to vector<8x64xf32>
    %231 = tpu.concatenate %229, %230 in 1 : vector<8x64xf32>, vector<8x64xf32> -> vector<8x128xf32>
    %232 = vector.extract_strided_slice %226 {offsets = [0, 64], sizes = [8, 64], strides = [1, 1]} : vector<8x128xf32> to vector<8x64xf32>
    %233 = vector.extract_strided_slice %226 {offsets = [0, 0], sizes = [8, 64], strides = [1, 1]} : vector<8x128xf32> to vector<8x64xf32>
    %234 = tpu.concatenate %232, %233 in 1 : vector<8x64xf32>, vector<8x64xf32> -> vector<8x128xf32>
    %235 = vector.broadcast %4 : vector<1x128xf32> to vector<8x128xf32>
    %236 = arith.mulf %228, %235 : vector<8x128xf32>
    %237 = vector.broadcast %6 : vector<1x128xf32> to vector<8x128xf32>
    %238 = arith.mulf %231, %237 : vector<8x128xf32>
    %239 = arith.addf %236, %238 : vector<8x128xf32>
    %240 = vector.broadcast %6 : vector<1x128xf32> to vector<8x128xf32>
    %241 = arith.mulf %228, %240 : vector<8x128xf32>
    %242 = vector.broadcast %4 : vector<1x128xf32> to vector<8x128xf32>
    %243 = arith.mulf %231, %242 : vector<8x128xf32>
    %244 = arith.subf %241, %243 : vector<8x128xf32>
    %245 = arith.mulf %226, %239 : vector<8x128xf32>
    %246 = arith.mulf %234, %244 : vector<8x128xf32>
    %247 = arith.addf %245, %246 : vector<8x128xf32>
    %248 = arith.addf %247, %178 : vector<8x128xf32>
    %cst_93 = arith.constant 0.000000e+00 : f32
    %249 = vector.broadcast %cst_93 : f32 to vector<8x128xf32>
    %250 = arith.subf %249, %248 : vector<8x128xf32>
    %251 = math.exp %250 : vector<8x128xf32>
    %cst_94 = arith.constant 1.000000e+00 : f32
    %252 = vector.broadcast %cst_94 : f32 to vector<8x128xf32>
    %253 = arith.addf %252, %251 : vector<8x128xf32>
    %cst_95 = arith.constant 1.000000e+00 : f32
    %254 = vector.broadcast %cst_95 : f32 to vector<8x128xf32>
    %255 = arith.divf %254, %253 : vector<8x128xf32>
    %256 = arith.mulf %248, %255 : vector<8x128xf32>
    %c2 = arith.constant 2 : index
    %c0_96 = arith.constant 0 : index
    %c0_97 = arith.constant 0 : index
    %257 = vector.load %arg10[%c2, %c0_96, %c0_97] : memref<6x128x128xbf16, #tpu.memory_space<vmem>>, vector<1x128x128xbf16>
    %258 = vector.shape_cast %257 : vector<1x128x128xbf16> to vector<128x128xbf16>
    %c2_98 = arith.constant 2 : index
    %c0_99 = arith.constant 0 : index
    %c0_100 = arith.constant 0 : index
    %259 = vector.load %arg11[%c2_98, %c0_99, %c0_100] : memref<6x1x128xf32, #tpu.memory_space<vmem>>, vector<1x1x128xf32>
    %260 = vector.shape_cast %259 : vector<1x1x128xf32> to vector<1x128xf32>
    %261 = arith.truncf %256 : vector<8x128xf32> to vector<8x128xbf16>
    %cst_101 = arith.constant dense<0.000000e+00> : vector<8x128xf32>
    %262 = tpu.matmul %261, %258, %cst_101 {dimension_numbers = #tpu.dot_dimension_numbers<[1], [0], [0], [1], [0, 0, 1, 1], [], []>} : vector<8x128xbf16>, vector<128x128xbf16>, vector<8x128xf32> -> vector<8x128xf32>
    %263 = vector.broadcast %260 : vector<1x128xf32> to vector<8x128xf32>
    %264 = arith.addf %262, %263 : vector<8x128xf32>
    %c2_102 = arith.constant 2 : index
    %c0_103 = arith.constant 0 : index
    %c0_104 = arith.constant 0 : index
    %265 = vector.load %arg12[%c2_102, %c0_103, %c0_104] : memref<5x128x128xbf16, #tpu.memory_space<vmem>>, vector<1x128x128xbf16>
    %266 = vector.shape_cast %265 : vector<1x128x128xbf16> to vector<128x128xbf16>
    %c2_105 = arith.constant 2 : index
    %c0_106 = arith.constant 0 : index
    %c0_107 = arith.constant 0 : index
    %267 = vector.load %arg13[%c2_105, %c0_106, %c0_107] : memref<5x1x128xf32, #tpu.memory_space<vmem>>, vector<1x1x128xf32>
    %268 = vector.shape_cast %267 : vector<1x1x128xf32> to vector<1x128xf32>
    %269 = arith.truncf %162 : vector<8x128xf32> to vector<8x128xbf16>
    %cst_108 = arith.constant dense<0.000000e+00> : vector<8x128xf32>
    %270 = tpu.matmul %269, %266, %cst_108 {dimension_numbers = #tpu.dot_dimension_numbers<[1], [0], [0], [1], [0, 0, 1, 1], [], []>} : vector<8x128xbf16>, vector<128x128xbf16>, vector<8x128xf32> -> vector<8x128xf32>
    %271 = vector.broadcast %268 : vector<1x128xf32> to vector<8x128xf32>
    %272 = arith.addf %270, %271 : vector<8x128xf32>
    %c2_109 = arith.constant 2 : index
    %c0_110 = arith.constant 0 : index
    %c0_111 = arith.constant 0 : index
    %273 = vector.load %arg14[%c2_109, %c0_110, %c0_111] : memref<5x128x128xbf16, #tpu.memory_space<vmem>>, vector<1x128x128xbf16>
    %274 = vector.shape_cast %273 : vector<1x128x128xbf16> to vector<128x128xbf16>
    %c2_112 = arith.constant 2 : index
    %c0_113 = arith.constant 0 : index
    %c0_114 = arith.constant 0 : index
    %275 = vector.load %arg15[%c2_112, %c0_113, %c0_114] : memref<5x1x128xf32, #tpu.memory_space<vmem>>, vector<1x1x128xf32>
    %276 = vector.shape_cast %275 : vector<1x1x128xf32> to vector<1x128xf32>
    %277 = arith.truncf %162 : vector<8x128xf32> to vector<8x128xbf16>
    %cst_115 = arith.constant dense<0.000000e+00> : vector<8x128xf32>
    %278 = tpu.matmul %277, %274, %cst_115 {dimension_numbers = #tpu.dot_dimension_numbers<[1], [0], [0], [1], [0, 0, 1, 1], [], []>} : vector<8x128xbf16>, vector<128x128xbf16>, vector<8x128xf32> -> vector<8x128xf32>
    %279 = vector.broadcast %276 : vector<1x128xf32> to vector<8x128xf32>
    %280 = arith.addf %278, %279 : vector<8x128xf32>
    %c2_116 = arith.constant 2 : index
    %c0_117 = arith.constant 0 : index
    %c0_118 = arith.constant 0 : index
    %281 = vector.load %arg16[%c2_116, %c0_117, %c0_118] : memref<5x1x128xf32, #tpu.memory_space<vmem>>, vector<1x1x128xf32>
    %282 = vector.shape_cast %281 : vector<1x1x128xf32> to vector<1x128xf32>
    %c2_119 = arith.constant 2 : index
    %c0_120 = arith.constant 0 : index
    %c0_121 = arith.constant 0 : index
    %283 = vector.load %arg17[%c2_119, %c0_120, %c0_121] : memref<5x1x128xf32, #tpu.memory_space<vmem>>, vector<1x1x128xf32>
    %284 = vector.shape_cast %283 : vector<1x1x128xf32> to vector<1x128xf32>
    %285 = vector.broadcast %4 : vector<1x128xf32> to vector<8x128xf32>
    %286 = arith.mulf %264, %285 : vector<8x128xf32>
    %cst_122 = arith.constant dense<0.000000e+00> : vector<8xf32>
    %287 = vector.multi_reduction <add>, %286, %cst_122 [1] : vector<8x128xf32> to vector<8xf32>
    %288 = vector.shape_cast %287 : vector<8xf32> to vector<8x1xf32>
    %289 = vector.broadcast %6 : vector<1x128xf32> to vector<8x128xf32>
    %290 = arith.mulf %264, %289 : vector<8x128xf32>
    %cst_123 = arith.constant dense<0.000000e+00> : vector<8xf32>
    %291 = vector.multi_reduction <add>, %290, %cst_123 [1] : vector<8x128xf32> to vector<8xf32>
    %292 = vector.shape_cast %291 : vector<8xf32> to vector<8x1xf32>
    %293 = vector.broadcast %288 : vector<8x1xf32> to vector<8x128xf32>
    %294 = vector.broadcast %4 : vector<1x128xf32> to vector<8x128xf32>
    %295 = arith.mulf %293, %294 : vector<8x128xf32>
    %296 = vector.broadcast %292 : vector<8x1xf32> to vector<8x128xf32>
    %297 = vector.broadcast %6 : vector<1x128xf32> to vector<8x128xf32>
    %298 = arith.mulf %296, %297 : vector<8x128xf32>
    %299 = arith.addf %295, %298 : vector<8x128xf32>
    %cst_124 = arith.constant 1.562500e-02 : f32
    %300 = vector.broadcast %cst_124 : f32 to vector<8x128xf32>
    %301 = arith.mulf %299, %300 : vector<8x128xf32>
    %302 = arith.subf %264, %301 : vector<8x128xf32>
    %303 = arith.mulf %302, %302 : vector<8x128xf32>
    %304 = vector.broadcast %4 : vector<1x128xf32> to vector<8x128xf32>
    %305 = arith.mulf %303, %304 : vector<8x128xf32>
    %cst_125 = arith.constant dense<0.000000e+00> : vector<8xf32>
    %306 = vector.multi_reduction <add>, %305, %cst_125 [1] : vector<8x128xf32> to vector<8xf32>
    %307 = vector.shape_cast %306 : vector<8xf32> to vector<8x1xf32>
    %308 = vector.broadcast %6 : vector<1x128xf32> to vector<8x128xf32>
    %309 = arith.mulf %303, %308 : vector<8x128xf32>
    %cst_126 = arith.constant dense<0.000000e+00> : vector<8xf32>
    %310 = vector.multi_reduction <add>, %309, %cst_126 [1] : vector<8x128xf32> to vector<8xf32>
    %311 = vector.shape_cast %310 : vector<8xf32> to vector<8x1xf32>
    %312 = vector.broadcast %307 : vector<8x1xf32> to vector<8x128xf32>
    %313 = vector.broadcast %4 : vector<1x128xf32> to vector<8x128xf32>
    %314 = arith.mulf %312, %313 : vector<8x128xf32>
    %315 = vector.broadcast %311 : vector<8x1xf32> to vector<8x128xf32>
    %316 = vector.broadcast %6 : vector<1x128xf32> to vector<8x128xf32>
    %317 = arith.mulf %315, %316 : vector<8x128xf32>
    %318 = arith.addf %314, %317 : vector<8x128xf32>
    %cst_127 = arith.constant 1.562500e-02 : f32
    %319 = vector.broadcast %cst_127 : f32 to vector<8x128xf32>
    %320 = arith.mulf %318, %319 : vector<8x128xf32>
    %cst_128 = arith.constant 9.99999974E-6 : f32
    %321 = vector.broadcast %cst_128 : f32 to vector<8x128xf32>
    %322 = arith.addf %320, %321 : vector<8x128xf32>
    %323 = math.rsqrt %322 : vector<8x128xf32>
    %324 = arith.mulf %302, %323 : vector<8x128xf32>
    %325 = vector.broadcast %282 : vector<1x128xf32> to vector<8x128xf32>
    %326 = arith.mulf %324, %325 : vector<8x128xf32>
    %327 = vector.broadcast %284 : vector<1x128xf32> to vector<8x128xf32>
    %328 = arith.addf %326, %327 : vector<8x128xf32>
    %329 = vector.broadcast %4 : vector<1x128xf32> to vector<8x128xf32>
    %330 = arith.addf %272, %329 : vector<8x128xf32>
    %331 = vector.extract_strided_slice %330 {offsets = [0, 64], sizes = [8, 64], strides = [1, 1]} : vector<8x128xf32> to vector<8x64xf32>
    %332 = vector.extract_strided_slice %330 {offsets = [0, 0], sizes = [8, 64], strides = [1, 1]} : vector<8x128xf32> to vector<8x64xf32>
    %333 = tpu.concatenate %331, %332 in 1 : vector<8x64xf32>, vector<8x64xf32> -> vector<8x128xf32>
    %334 = vector.extract_strided_slice %328 {offsets = [0, 64], sizes = [8, 64], strides = [1, 1]} : vector<8x128xf32> to vector<8x64xf32>
    %335 = vector.extract_strided_slice %328 {offsets = [0, 0], sizes = [8, 64], strides = [1, 1]} : vector<8x128xf32> to vector<8x64xf32>
    %336 = tpu.concatenate %334, %335 in 1 : vector<8x64xf32>, vector<8x64xf32> -> vector<8x128xf32>
    %337 = vector.broadcast %4 : vector<1x128xf32> to vector<8x128xf32>
    %338 = arith.mulf %330, %337 : vector<8x128xf32>
    %339 = vector.broadcast %6 : vector<1x128xf32> to vector<8x128xf32>
    %340 = arith.mulf %333, %339 : vector<8x128xf32>
    %341 = arith.addf %338, %340 : vector<8x128xf32>
    %342 = vector.broadcast %6 : vector<1x128xf32> to vector<8x128xf32>
    %343 = arith.mulf %330, %342 : vector<8x128xf32>
    %344 = vector.broadcast %4 : vector<1x128xf32> to vector<8x128xf32>
    %345 = arith.mulf %333, %344 : vector<8x128xf32>
    %346 = arith.subf %343, %345 : vector<8x128xf32>
    %347 = arith.mulf %328, %341 : vector<8x128xf32>
    %348 = arith.mulf %336, %346 : vector<8x128xf32>
    %349 = arith.addf %347, %348 : vector<8x128xf32>
    %350 = arith.addf %349, %280 : vector<8x128xf32>
    %cst_129 = arith.constant 0.000000e+00 : f32
    %351 = vector.broadcast %cst_129 : f32 to vector<8x128xf32>
    %352 = arith.subf %351, %350 : vector<8x128xf32>
    %353 = math.exp %352 : vector<8x128xf32>
    %cst_130 = arith.constant 1.000000e+00 : f32
    %354 = vector.broadcast %cst_130 : f32 to vector<8x128xf32>
    %355 = arith.addf %354, %353 : vector<8x128xf32>
    %cst_131 = arith.constant 1.000000e+00 : f32
    %356 = vector.broadcast %cst_131 : f32 to vector<8x128xf32>
    %357 = arith.divf %356, %355 : vector<8x128xf32>
    %358 = arith.mulf %350, %357 : vector<8x128xf32>
    %c3 = arith.constant 3 : index
    %c0_132 = arith.constant 0 : index
    %c0_133 = arith.constant 0 : index
    %359 = vector.load %arg10[%c3, %c0_132, %c0_133] : memref<6x128x128xbf16, #tpu.memory_space<vmem>>, vector<1x128x128xbf16>
    %360 = vector.shape_cast %359 : vector<1x128x128xbf16> to vector<128x128xbf16>
    %c3_134 = arith.constant 3 : index
    %c0_135 = arith.constant 0 : index
    %c0_136 = arith.constant 0 : index
    %361 = vector.load %arg11[%c3_134, %c0_135, %c0_136] : memref<6x1x128xf32, #tpu.memory_space<vmem>>, vector<1x1x128xf32>
    %362 = vector.shape_cast %361 : vector<1x1x128xf32> to vector<1x128xf32>
    %363 = arith.truncf %358 : vector<8x128xf32> to vector<8x128xbf16>
    %cst_137 = arith.constant dense<0.000000e+00> : vector<8x128xf32>
    %364 = tpu.matmul %363, %360, %cst_137 {dimension_numbers = #tpu.dot_dimension_numbers<[1], [0], [0], [1], [0, 0, 1, 1], [], []>} : vector<8x128xbf16>, vector<128x128xbf16>, vector<8x128xf32> -> vector<8x128xf32>
    %365 = vector.broadcast %362 : vector<1x128xf32> to vector<8x128xf32>
    %366 = arith.addf %364, %365 : vector<8x128xf32>
    %367 = arith.addf %154, %366 : vector<8x128xf32>
    %c3_138 = arith.constant 3 : index
    %c0_139 = arith.constant 0 : index
    %c0_140 = arith.constant 0 : index
    %368 = vector.load %arg12[%c3_138, %c0_139, %c0_140] : memref<5x128x128xbf16, #tpu.memory_space<vmem>>, vector<1x128x128xbf16>
    %369 = vector.shape_cast %368 : vector<1x128x128xbf16> to vector<128x128xbf16>
    %c3_141 = arith.constant 3 : index
    %c0_142 = arith.constant 0 : index
    %c0_143 = arith.constant 0 : index
    %370 = vector.load %arg13[%c3_141, %c0_142, %c0_143] : memref<5x1x128xf32, #tpu.memory_space<vmem>>, vector<1x1x128xf32>
    %371 = vector.shape_cast %370 : vector<1x1x128xf32> to vector<1x128xf32>
    %372 = arith.truncf %162 : vector<8x128xf32> to vector<8x128xbf16>
    %cst_144 = arith.constant dense<0.000000e+00> : vector<8x128xf32>
    %373 = tpu.matmul %372, %369, %cst_144 {dimension_numbers = #tpu.dot_dimension_numbers<[1], [0], [0], [1], [0, 0, 1, 1], [], []>} : vector<8x128xbf16>, vector<128x128xbf16>, vector<8x128xf32> -> vector<8x128xf32>
    %374 = vector.broadcast %371 : vector<1x128xf32> to vector<8x128xf32>
    %375 = arith.addf %373, %374 : vector<8x128xf32>
    %c3_145 = arith.constant 3 : index
    %c0_146 = arith.constant 0 : index
    %c0_147 = arith.constant 0 : index
    %376 = vector.load %arg14[%c3_145, %c0_146, %c0_147] : memref<5x128x128xbf16, #tpu.memory_space<vmem>>, vector<1x128x128xbf16>
    %377 = vector.shape_cast %376 : vector<1x128x128xbf16> to vector<128x128xbf16>
    %c3_148 = arith.constant 3 : index
    %c0_149 = arith.constant 0 : index
    %c0_150 = arith.constant 0 : index
    %378 = vector.load %arg15[%c3_148, %c0_149, %c0_150] : memref<5x1x128xf32, #tpu.memory_space<vmem>>, vector<1x1x128xf32>
    %379 = vector.shape_cast %378 : vector<1x1x128xf32> to vector<1x128xf32>
    %380 = arith.truncf %162 : vector<8x128xf32> to vector<8x128xbf16>
    %cst_151 = arith.constant dense<0.000000e+00> : vector<8x128xf32>
    %381 = tpu.matmul %380, %377, %cst_151 {dimension_numbers = #tpu.dot_dimension_numbers<[1], [0], [0], [1], [0, 0, 1, 1], [], []>} : vector<8x128xbf16>, vector<128x128xbf16>, vector<8x128xf32> -> vector<8x128xf32>
    %382 = vector.broadcast %379 : vector<1x128xf32> to vector<8x128xf32>
    %383 = arith.addf %381, %382 : vector<8x128xf32>
    %c3_152 = arith.constant 3 : index
    %c0_153 = arith.constant 0 : index
    %c0_154 = arith.constant 0 : index
    %384 = vector.load %arg16[%c3_152, %c0_153, %c0_154] : memref<5x1x128xf32, #tpu.memory_space<vmem>>, vector<1x1x128xf32>
    %385 = vector.shape_cast %384 : vector<1x1x128xf32> to vector<1x128xf32>
    %c3_155 = arith.constant 3 : index
    %c0_156 = arith.constant 0 : index
    %c0_157 = arith.constant 0 : index
    %386 = vector.load %arg17[%c3_155, %c0_156, %c0_157] : memref<5x1x128xf32, #tpu.memory_space<vmem>>, vector<1x1x128xf32>
    %387 = vector.shape_cast %386 : vector<1x1x128xf32> to vector<1x128xf32>
    %388 = vector.broadcast %4 : vector<1x128xf32> to vector<8x128xf32>
    %389 = arith.mulf %367, %388 : vector<8x128xf32>
    %cst_158 = arith.constant dense<0.000000e+00> : vector<8xf32>
    %390 = vector.multi_reduction <add>, %389, %cst_158 [1] : vector<8x128xf32> to vector<8xf32>
    %391 = vector.shape_cast %390 : vector<8xf32> to vector<8x1xf32>
    %392 = vector.broadcast %6 : vector<1x128xf32> to vector<8x128xf32>
    %393 = arith.mulf %367, %392 : vector<8x128xf32>
    %cst_159 = arith.constant dense<0.000000e+00> : vector<8xf32>
    %394 = vector.multi_reduction <add>, %393, %cst_159 [1] : vector<8x128xf32> to vector<8xf32>
    %395 = vector.shape_cast %394 : vector<8xf32> to vector<8x1xf32>
    %396 = vector.broadcast %391 : vector<8x1xf32> to vector<8x128xf32>
    %397 = vector.broadcast %4 : vector<1x128xf32> to vector<8x128xf32>
    %398 = arith.mulf %396, %397 : vector<8x128xf32>
    %399 = vector.broadcast %395 : vector<8x1xf32> to vector<8x128xf32>
    %400 = vector.broadcast %6 : vector<1x128xf32> to vector<8x128xf32>
    %401 = arith.mulf %399, %400 : vector<8x128xf32>
    %402 = arith.addf %398, %401 : vector<8x128xf32>
    %cst_160 = arith.constant 1.562500e-02 : f32
    %403 = vector.broadcast %cst_160 : f32 to vector<8x128xf32>
    %404 = arith.mulf %402, %403 : vector<8x128xf32>
    %405 = arith.subf %367, %404 : vector<8x128xf32>
    %406 = arith.mulf %405, %405 : vector<8x128xf32>
    %407 = vector.broadcast %4 : vector<1x128xf32> to vector<8x128xf32>
    %408 = arith.mulf %406, %407 : vector<8x128xf32>
    %cst_161 = arith.constant dense<0.000000e+00> : vector<8xf32>
    %409 = vector.multi_reduction <add>, %408, %cst_161 [1] : vector<8x128xf32> to vector<8xf32>
    %410 = vector.shape_cast %409 : vector<8xf32> to vector<8x1xf32>
    %411 = vector.broadcast %6 : vector<1x128xf32> to vector<8x128xf32>
    %412 = arith.mulf %406, %411 : vector<8x128xf32>
    %cst_162 = arith.constant dense<0.000000e+00> : vector<8xf32>
    %413 = vector.multi_reduction <add>, %412, %cst_162 [1] : vector<8x128xf32> to vector<8xf32>
    %414 = vector.shape_cast %413 : vector<8xf32> to vector<8x1xf32>
    %415 = vector.broadcast %410 : vector<8x1xf32> to vector<8x128xf32>
    %416 = vector.broadcast %4 : vector<1x128xf32> to vector<8x128xf32>
    %417 = arith.mulf %415, %416 : vector<8x128xf32>
    %418 = vector.broadcast %414 : vector<8x1xf32> to vector<8x128xf32>
    %419 = vector.broadcast %6 : vector<1x128xf32> to vector<8x128xf32>
    %420 = arith.mulf %418, %419 : vector<8x128xf32>
    %421 = arith.addf %417, %420 : vector<8x128xf32>
    %cst_163 = arith.constant 1.562500e-02 : f32
    %422 = vector.broadcast %cst_163 : f32 to vector<8x128xf32>
    %423 = arith.mulf %421, %422 : vector<8x128xf32>
    %cst_164 = arith.constant 9.99999974E-6 : f32
    %424 = vector.broadcast %cst_164 : f32 to vector<8x128xf32>
    %425 = arith.addf %423, %424 : vector<8x128xf32>
    %426 = math.rsqrt %425 : vector<8x128xf32>
    %427 = arith.mulf %405, %426 : vector<8x128xf32>
    %428 = vector.broadcast %385 : vector<1x128xf32> to vector<8x128xf32>
    %429 = arith.mulf %427, %428 : vector<8x128xf32>
    %430 = vector.broadcast %387 : vector<1x128xf32> to vector<8x128xf32>
    %431 = arith.addf %429, %430 : vector<8x128xf32>
    %432 = vector.broadcast %4 : vector<1x128xf32> to vector<8x128xf32>
    %433 = arith.addf %375, %432 : vector<8x128xf32>
    %434 = vector.extract_strided_slice %433 {offsets = [0, 64], sizes = [8, 64], strides = [1, 1]} : vector<8x128xf32> to vector<8x64xf32>
    %435 = vector.extract_strided_slice %433 {offsets = [0, 0], sizes = [8, 64], strides = [1, 1]} : vector<8x128xf32> to vector<8x64xf32>
    %436 = tpu.concatenate %434, %435 in 1 : vector<8x64xf32>, vector<8x64xf32> -> vector<8x128xf32>
    %437 = vector.extract_strided_slice %431 {offsets = [0, 64], sizes = [8, 64], strides = [1, 1]} : vector<8x128xf32> to vector<8x64xf32>
    %438 = vector.extract_strided_slice %431 {offsets = [0, 0], sizes = [8, 64], strides = [1, 1]} : vector<8x128xf32> to vector<8x64xf32>
    %439 = tpu.concatenate %437, %438 in 1 : vector<8x64xf32>, vector<8x64xf32> -> vector<8x128xf32>
    %440 = vector.broadcast %4 : vector<1x128xf32> to vector<8x128xf32>
    %441 = arith.mulf %433, %440 : vector<8x128xf32>
    %442 = vector.broadcast %6 : vector<1x128xf32> to vector<8x128xf32>
    %443 = arith.mulf %436, %442 : vector<8x128xf32>
    %444 = arith.addf %441, %443 : vector<8x128xf32>
    %445 = vector.broadcast %6 : vector<1x128xf32> to vector<8x128xf32>
    %446 = arith.mulf %433, %445 : vector<8x128xf32>
    %447 = vector.broadcast %4 : vector<1x128xf32> to vector<8x128xf32>
    %448 = arith.mulf %436, %447 : vector<8x128xf32>
    %449 = arith.subf %446, %448 : vector<8x128xf32>
    %450 = arith.mulf %431, %444 : vector<8x128xf32>
    %451 = arith.mulf %439, %449 : vector<8x128xf32>
    %452 = arith.addf %450, %451 : vector<8x128xf32>
    %453 = arith.addf %452, %383 : vector<8x128xf32>
    %cst_165 = arith.constant 0.000000e+00 : f32
    %454 = vector.broadcast %cst_165 : f32 to vector<8x128xf32>
    %455 = arith.subf %454, %453 : vector<8x128xf32>
    %456 = math.exp %455 : vector<8x128xf32>
    %cst_166 = arith.constant 1.000000e+00 : f32
    %457 = vector.broadcast %cst_166 : f32 to vector<8x128xf32>
    %458 = arith.addf %457, %456 : vector<8x128xf32>
    %cst_167 = arith.constant 1.000000e+00 : f32
    %459 = vector.broadcast %cst_167 : f32 to vector<8x128xf32>
    %460 = arith.divf %459, %458 : vector<8x128xf32>
    %461 = arith.mulf %453, %460 : vector<8x128xf32>
    %c4 = arith.constant 4 : index
    %c0_168 = arith.constant 0 : index
    %c0_169 = arith.constant 0 : index
    %462 = vector.load %arg10[%c4, %c0_168, %c0_169] : memref<6x128x128xbf16, #tpu.memory_space<vmem>>, vector<1x128x128xbf16>
    %463 = vector.shape_cast %462 : vector<1x128x128xbf16> to vector<128x128xbf16>
    %c4_170 = arith.constant 4 : index
    %c0_171 = arith.constant 0 : index
    %c0_172 = arith.constant 0 : index
    %464 = vector.load %arg11[%c4_170, %c0_171, %c0_172] : memref<6x1x128xf32, #tpu.memory_space<vmem>>, vector<1x1x128xf32>
    %465 = vector.shape_cast %464 : vector<1x1x128xf32> to vector<1x128xf32>
    %466 = arith.truncf %461 : vector<8x128xf32> to vector<8x128xbf16>
    %cst_173 = arith.constant dense<0.000000e+00> : vector<8x128xf32>
    %467 = tpu.matmul %466, %463, %cst_173 {dimension_numbers = #tpu.dot_dimension_numbers<[1], [0], [0], [1], [0, 0, 1, 1], [], []>} : vector<8x128xbf16>, vector<128x128xbf16>, vector<8x128xf32> -> vector<8x128xf32>
    %468 = vector.broadcast %465 : vector<1x128xf32> to vector<8x128xf32>
    %469 = arith.addf %467, %468 : vector<8x128xf32>
    %c4_174 = arith.constant 4 : index
    %c0_175 = arith.constant 0 : index
    %c0_176 = arith.constant 0 : index
    %470 = vector.load %arg12[%c4_174, %c0_175, %c0_176] : memref<5x128x128xbf16, #tpu.memory_space<vmem>>, vector<1x128x128xbf16>
    %471 = vector.shape_cast %470 : vector<1x128x128xbf16> to vector<128x128xbf16>
    %c4_177 = arith.constant 4 : index
    %c0_178 = arith.constant 0 : index
    %c0_179 = arith.constant 0 : index
    %472 = vector.load %arg13[%c4_177, %c0_178, %c0_179] : memref<5x1x128xf32, #tpu.memory_space<vmem>>, vector<1x1x128xf32>
    %473 = vector.shape_cast %472 : vector<1x1x128xf32> to vector<1x128xf32>
    %474 = arith.truncf %162 : vector<8x128xf32> to vector<8x128xbf16>
    %cst_180 = arith.constant dense<0.000000e+00> : vector<8x128xf32>
    %475 = tpu.matmul %474, %471, %cst_180 {dimension_numbers = #tpu.dot_dimension_numbers<[1], [0], [0], [1], [0, 0, 1, 1], [], []>} : vector<8x128xbf16>, vector<128x128xbf16>, vector<8x128xf32> -> vector<8x128xf32>
    %476 = vector.broadcast %473 : vector<1x128xf32> to vector<8x128xf32>
    %477 = arith.addf %475, %476 : vector<8x128xf32>
    %c4_181 = arith.constant 4 : index
    %c0_182 = arith.constant 0 : index
    %c0_183 = arith.constant 0 : index
    %478 = vector.load %arg14[%c4_181, %c0_182, %c0_183] : memref<5x128x128xbf16, #tpu.memory_space<vmem>>, vector<1x128x128xbf16>
    %479 = vector.shape_cast %478 : vector<1x128x128xbf16> to vector<128x128xbf16>
    %c4_184 = arith.constant 4 : index
    %c0_185 = arith.constant 0 : index
    %c0_186 = arith.constant 0 : index
    %480 = vector.load %arg15[%c4_184, %c0_185, %c0_186] : memref<5x1x128xf32, #tpu.memory_space<vmem>>, vector<1x1x128xf32>
    %481 = vector.shape_cast %480 : vector<1x1x128xf32> to vector<1x128xf32>
    %482 = arith.truncf %162 : vector<8x128xf32> to vector<8x128xbf16>
    %cst_187 = arith.constant dense<0.000000e+00> : vector<8x128xf32>
    %483 = tpu.matmul %482, %479, %cst_187 {dimension_numbers = #tpu.dot_dimension_numbers<[1], [0], [0], [1], [0, 0, 1, 1], [], []>} : vector<8x128xbf16>, vector<128x128xbf16>, vector<8x128xf32> -> vector<8x128xf32>
    %484 = vector.broadcast %481 : vector<1x128xf32> to vector<8x128xf32>
    %485 = arith.addf %483, %484 : vector<8x128xf32>
    %c4_188 = arith.constant 4 : index
    %c0_189 = arith.constant 0 : index
    %c0_190 = arith.constant 0 : index
    %486 = vector.load %arg16[%c4_188, %c0_189, %c0_190] : memref<5x1x128xf32, #tpu.memory_space<vmem>>, vector<1x1x128xf32>
    %487 = vector.shape_cast %486 : vector<1x1x128xf32> to vector<1x128xf32>
    %c4_191 = arith.constant 4 : index
    %c0_192 = arith.constant 0 : index
    %c0_193 = arith.constant 0 : index
    %488 = vector.load %arg17[%c4_191, %c0_192, %c0_193] : memref<5x1x128xf32, #tpu.memory_space<vmem>>, vector<1x1x128xf32>
    %489 = vector.shape_cast %488 : vector<1x1x128xf32> to vector<1x128xf32>
    %490 = vector.broadcast %4 : vector<1x128xf32> to vector<8x128xf32>
    %491 = arith.mulf %469, %490 : vector<8x128xf32>
    %cst_194 = arith.constant dense<0.000000e+00> : vector<8xf32>
    %492 = vector.multi_reduction <add>, %491, %cst_194 [1] : vector<8x128xf32> to vector<8xf32>
    %493 = vector.shape_cast %492 : vector<8xf32> to vector<8x1xf32>
    %494 = vector.broadcast %6 : vector<1x128xf32> to vector<8x128xf32>
    %495 = arith.mulf %469, %494 : vector<8x128xf32>
    %cst_195 = arith.constant dense<0.000000e+00> : vector<8xf32>
    %496 = vector.multi_reduction <add>, %495, %cst_195 [1] : vector<8x128xf32> to vector<8xf32>
    %497 = vector.shape_cast %496 : vector<8xf32> to vector<8x1xf32>
    %498 = vector.broadcast %493 : vector<8x1xf32> to vector<8x128xf32>
    %499 = vector.broadcast %4 : vector<1x128xf32> to vector<8x128xf32>
    %500 = arith.mulf %498, %499 : vector<8x128xf32>
    %501 = vector.broadcast %497 : vector<8x1xf32> to vector<8x128xf32>
    %502 = vector.broadcast %6 : vector<1x128xf32> to vector<8x128xf32>
    %503 = arith.mulf %501, %502 : vector<8x128xf32>
    %504 = arith.addf %500, %503 : vector<8x128xf32>
    %cst_196 = arith.constant 1.562500e-02 : f32
    %505 = vector.broadcast %cst_196 : f32 to vector<8x128xf32>
    %506 = arith.mulf %504, %505 : vector<8x128xf32>
    %507 = arith.subf %469, %506 : vector<8x128xf32>
    %508 = arith.mulf %507, %507 : vector<8x128xf32>
    %509 = vector.broadcast %4 : vector<1x128xf32> to vector<8x128xf32>
    %510 = arith.mulf %508, %509 : vector<8x128xf32>
    %cst_197 = arith.constant dense<0.000000e+00> : vector<8xf32>
    %511 = vector.multi_reduction <add>, %510, %cst_197 [1] : vector<8x128xf32> to vector<8xf32>
    %512 = vector.shape_cast %511 : vector<8xf32> to vector<8x1xf32>
    %513 = vector.broadcast %6 : vector<1x128xf32> to vector<8x128xf32>
    %514 = arith.mulf %508, %513 : vector<8x128xf32>
    %cst_198 = arith.constant dense<0.000000e+00> : vector<8xf32>
    %515 = vector.multi_reduction <add>, %514, %cst_198 [1] : vector<8x128xf32> to vector<8xf32>
    %516 = vector.shape_cast %515 : vector<8xf32> to vector<8x1xf32>
    %517 = vector.broadcast %512 : vector<8x1xf32> to vector<8x128xf32>
    %518 = vector.broadcast %4 : vector<1x128xf32> to vector<8x128xf32>
    %519 = arith.mulf %517, %518 : vector<8x128xf32>
    %520 = vector.broadcast %516 : vector<8x1xf32> to vector<8x128xf32>
    %521 = vector.broadcast %6 : vector<1x128xf32> to vector<8x128xf32>
    %522 = arith.mulf %520, %521 : vector<8x128xf32>
    %523 = arith.addf %519, %522 : vector<8x128xf32>
    %cst_199 = arith.constant 1.562500e-02 : f32
    %524 = vector.broadcast %cst_199 : f32 to vector<8x128xf32>
    %525 = arith.mulf %523, %524 : vector<8x128xf32>
    %cst_200 = arith.constant 9.99999974E-6 : f32
    %526 = vector.broadcast %cst_200 : f32 to vector<8x128xf32>
    %527 = arith.addf %525, %526 : vector<8x128xf32>
    %528 = math.rsqrt %527 : vector<8x128xf32>
    %529 = arith.mulf %507, %528 : vector<8x128xf32>
    %530 = vector.broadcast %487 : vector<1x128xf32> to vector<8x128xf32>
    %531 = arith.mulf %529, %530 : vector<8x128xf32>
    %532 = vector.broadcast %489 : vector<1x128xf32> to vector<8x128xf32>
    %533 = arith.addf %531, %532 : vector<8x128xf32>
    %534 = vector.broadcast %4 : vector<1x128xf32> to vector<8x128xf32>
    %535 = arith.addf %477, %534 : vector<8x128xf32>
    %536 = vector.extract_strided_slice %535 {offsets = [0, 64], sizes = [8, 64], strides = [1, 1]} : vector<8x128xf32> to vector<8x64xf32>
    %537 = vector.extract_strided_slice %535 {offsets = [0, 0], sizes = [8, 64], strides = [1, 1]} : vector<8x128xf32> to vector<8x64xf32>
    %538 = tpu.concatenate %536, %537 in 1 : vector<8x64xf32>, vector<8x64xf32> -> vector<8x128xf32>
    %539 = vector.extract_strided_slice %533 {offsets = [0, 64], sizes = [8, 64], strides = [1, 1]} : vector<8x128xf32> to vector<8x64xf32>
    %540 = vector.extract_strided_slice %533 {offsets = [0, 0], sizes = [8, 64], strides = [1, 1]} : vector<8x128xf32> to vector<8x64xf32>
    %541 = tpu.concatenate %539, %540 in 1 : vector<8x64xf32>, vector<8x64xf32> -> vector<8x128xf32>
    %542 = vector.broadcast %4 : vector<1x128xf32> to vector<8x128xf32>
    %543 = arith.mulf %535, %542 : vector<8x128xf32>
    %544 = vector.broadcast %6 : vector<1x128xf32> to vector<8x128xf32>
    %545 = arith.mulf %538, %544 : vector<8x128xf32>
    %546 = arith.addf %543, %545 : vector<8x128xf32>
    %547 = vector.broadcast %6 : vector<1x128xf32> to vector<8x128xf32>
    %548 = arith.mulf %535, %547 : vector<8x128xf32>
    %549 = vector.broadcast %4 : vector<1x128xf32> to vector<8x128xf32>
    %550 = arith.mulf %538, %549 : vector<8x128xf32>
    %551 = arith.subf %548, %550 : vector<8x128xf32>
    %552 = arith.mulf %533, %546 : vector<8x128xf32>
    %553 = arith.mulf %541, %551 : vector<8x128xf32>
    %554 = arith.addf %552, %553 : vector<8x128xf32>
    %555 = arith.addf %554, %485 : vector<8x128xf32>
    %cst_201 = arith.constant 0.000000e+00 : f32
    %556 = vector.broadcast %cst_201 : f32 to vector<8x128xf32>
    %557 = arith.subf %556, %555 : vector<8x128xf32>
    %558 = math.exp %557 : vector<8x128xf32>
    %cst_202 = arith.constant 1.000000e+00 : f32
    %559 = vector.broadcast %cst_202 : f32 to vector<8x128xf32>
    %560 = arith.addf %559, %558 : vector<8x128xf32>
    %cst_203 = arith.constant 1.000000e+00 : f32
    %561 = vector.broadcast %cst_203 : f32 to vector<8x128xf32>
    %562 = arith.divf %561, %560 : vector<8x128xf32>
    %563 = arith.mulf %555, %562 : vector<8x128xf32>
    %c5 = arith.constant 5 : index
    %c0_204 = arith.constant 0 : index
    %c0_205 = arith.constant 0 : index
    %564 = vector.load %arg10[%c5, %c0_204, %c0_205] : memref<6x128x128xbf16, #tpu.memory_space<vmem>>, vector<1x128x128xbf16>
    %565 = vector.shape_cast %564 : vector<1x128x128xbf16> to vector<128x128xbf16>
    %c5_206 = arith.constant 5 : index
    %c0_207 = arith.constant 0 : index
    %c0_208 = arith.constant 0 : index
    %566 = vector.load %arg11[%c5_206, %c0_207, %c0_208] : memref<6x1x128xf32, #tpu.memory_space<vmem>>, vector<1x1x128xf32>
    %567 = vector.shape_cast %566 : vector<1x1x128xf32> to vector<1x128xf32>
    %568 = arith.truncf %563 : vector<8x128xf32> to vector<8x128xbf16>
    %cst_209 = arith.constant dense<0.000000e+00> : vector<8x128xf32>
    %569 = tpu.matmul %568, %565, %cst_209 {dimension_numbers = #tpu.dot_dimension_numbers<[1], [0], [0], [1], [0, 0, 1, 1], [], []>} : vector<8x128xbf16>, vector<128x128xbf16>, vector<8x128xf32> -> vector<8x128xf32>
    %570 = vector.broadcast %567 : vector<1x128xf32> to vector<8x128xf32>
    %571 = arith.addf %569, %570 : vector<8x128xf32>
    %572 = arith.addf %367, %571 : vector<8x128xf32>
    %c0_210 = arith.constant 0 : index
    %c0_211 = arith.constant 0 : index
    %573 = vector.load %arg8[%c0_210, %c0_211] : memref<128x128xbf16, #tpu.memory_space<vmem>>, vector<128x128xbf16>
    %c0_212 = arith.constant 0 : index
    %c0_213 = arith.constant 0 : index
    %574 = vector.load %arg9[%c0_212, %c0_213] : memref<1x128xf32, #tpu.memory_space<vmem>>, vector<1x128xf32>
    %575 = arith.truncf %572 : vector<8x128xf32> to vector<8x128xbf16>
    %cst_214 = arith.constant dense<0.000000e+00> : vector<8x128xf32>
    %576 = tpu.matmul %575, %573, %cst_214 {dimension_numbers = #tpu.dot_dimension_numbers<[1], [0], [0], [1], [0, 0, 1, 1], [], []>} : vector<8x128xbf16>, vector<128x128xbf16>, vector<8x128xf32> -> vector<8x128xf32>
    %577 = vector.broadcast %574 : vector<1x128xf32> to vector<8x128xf32>
    %578 = arith.addf %576, %577 : vector<8x128xf32>
    %c0_215 = arith.constant 0 : index
    %c0_216 = arith.constant 0 : index
    %579 = vector.load %arg18[%c0_215, %c0_216] : memref<1x128xf32, #tpu.memory_space<vmem>>, vector<1x128xf32>
    %580 = vector.broadcast %579 : vector<1x128xf32> to vector<8x128xf32>
    %581 = arith.mulf %578, %580 : vector<8x128xf32>
    %582 = vector.extract_strided_slice %578 {offsets = [0, 64], sizes = [8, 64], strides = [1, 1]} : vector<8x128xf32> to vector<8x64xf32>
    %583 = vector.extract_strided_slice %578 {offsets = [0, 0], sizes = [8, 64], strides = [1, 1]} : vector<8x128xf32> to vector<8x64xf32>
    %584 = tpu.concatenate %582, %583 in 1 : vector<8x64xf32>, vector<8x64xf32> -> vector<8x128xf32>
    %c0_217 = arith.constant 0 : index
    %c0_218 = arith.constant 0 : index
    %585 = vector.load %arg19[%c0_217, %c0_218] : memref<1x128xf32, #tpu.memory_space<vmem>>, vector<1x128xf32>
    %586 = vector.broadcast %585 : vector<1x128xf32> to vector<8x128xf32>
    %587 = arith.mulf %584, %586 : vector<8x128xf32>
    %588 = arith.addf %581, %587 : vector<8x128xf32>
    %589 = vector.broadcast %7 : vector<8x1xf32> to vector<8x128xf32>
    %590 = arith.divf %588, %589 : vector<8x128xf32>
    %c0_219 = arith.constant 0 : index
    %c0_220 = arith.constant 0 : index
    %591 = vector.load %arg20[%c0_219, %c0_220] : memref<8x128xf32, #tpu.memory_space<vmem>>, vector<8x128xf32>
    tpu.vector_store %arg20[%c0_219, %c0_220], %590 {strides = array<i32>} : memref<8x128xf32, #tpu.memory_space<vmem>>, vector<8x128xf32>,
    return
  }
  func.func @transform_0(%arg0: i32) -> (i32, i32) {
    %c0_i32 = arith.constant 0 : i32
    %c0_i32_0 = arith.constant 0 : i32
    return %arg0, %c0_i32 : i32, i32
  }
  func.func @transform_1(%arg0: i32) -> (i32, i32) {
    %c0_i32 = arith.constant 0 : i32
    %c0_i32_0 = arith.constant 0 : i32
    return %arg0, %c0_i32 : i32, i32
  }
  func.func @transform_2(%arg0: i32) -> (i32, i32) {
    %c0_i32 = arith.constant 0 : i32
    %c0_i32_0 = arith.constant 0 : i32
    %c0_i32_1 = arith.constant 0 : i32
    return %c0_i32, %c0_i32_0 : i32, i32
  }
  func.func @transform_3(%arg0: i32) -> (i32, i32) {
    %c0_i32 = arith.constant 0 : i32
    %c0_i32_0 = arith.constant 0 : i32
    %c0_i32_1 = arith.constant 0 : i32
    return %c0_i32, %c0_i32_0 : i32, i32
  }
  func.func @transform_4(%arg0: i32) -> (i32, i32) {
    %c0_i32 = arith.constant 0 : i32
    %c0_i32_0 = arith.constant 0 : i32
    %c0_i32_1 = arith.constant 0 : i32
    return %c0_i32, %c0_i32_0 : i32, i32
  }
  func.func @transform_5(%arg0: i32) -> (i32, i32) {
    %c0_i32 = arith.constant 0 : i32
    %c0_i32_0 = arith.constant 0 : i32
    %c0_i32_1 = arith.constant 0 : i32
    return %c0_i32, %c0_i32_0 : i32, i32
  }
  func.func @transform_6(%arg0: i32) -> (i32, i32) {
    %c0_i32 = arith.constant 0 : i32
    %c0_i32_0 = arith.constant 0 : i32
    %c0_i32_1 = arith.constant 0 : i32
    return %c0_i32, %c0_i32_0 : i32, i32
  }
  func.func @transform_7(%arg0: i32) -> (i32, i32) {
    %c0_i32 = arith.constant 0 : i32
    %c0_i32_0 = arith.constant 0 : i32
    %c0_i32_1 = arith.constant 0 : i32
    return %c0_i32, %c0_i32_0 : i32, i32
  }
  func.func @transform_8(%arg0: i32) -> (i32, i32) {
    %c0_i32 = arith.constant 0 : i32
    %c0_i32_0 = arith.constant 0 : i32
    %c0_i32_1 = arith.constant 0 : i32
    return %c0_i32, %c0_i32_0 : i32, i32
  }
  func.func @transform_9(%arg0: i32) -> (i32, i32, i32) {
    %c0_i32 = arith.constant 0 : i32
    %c0_i32_0 = arith.constant 0 : i32
    %c0_i32_1 = arith.constant 0 : i32
    %c0_i32_2 = arith.constant 0 : i32
    return %c0_i32, %c0_i32_0, %c0_i32_1 : i32, i32, i32
  }
  func.func @transform_10(%arg0: i32) -> (i32, i32, i32) {
    %c0_i32 = arith.constant 0 : i32
    %c0_i32_0 = arith.constant 0 : i32
    %c0_i32_1 = arith.constant 0 : i32
    %c0_i32_2 = arith.constant 0 : i32
    return %c0_i32, %c0_i32_0, %c0_i32_1 : i32, i32, i32
  }
  func.func @transform_11(%arg0: i32) -> (i32, i32, i32) {
    %c0_i32 = arith.constant 0 : i32
    %c0_i32_0 = arith.constant 0 : i32
    %c0_i32_1 = arith.constant 0 : i32
    %c0_i32_2 = arith.constant 0 : i32
    return %c0_i32, %c0_i32_0, %c0_i32_1 : i32, i32, i32
  }
  func.func @transform_12(%arg0: i32) -> (i32, i32, i32) {
    %c0_i32 = arith.constant 0 : i32
    %c0_i32_0 = arith.constant 0 : i32
    %c0_i32_1 = arith.constant 0 : i32
    %c0_i32_2 = arith.constant 0 : i32
    return %c0_i32, %c0_i32_0, %c0_i32_1 : i32, i32, i32
  }
  func.func @transform_13(%arg0: i32) -> (i32, i32, i32) {
    %c0_i32 = arith.constant 0 : i32
    %c0_i32_0 = arith.constant 0 : i32
    %c0_i32_1 = arith.constant 0 : i32
    %c0_i32_2 = arith.constant 0 : i32
    return %c0_i32, %c0_i32_0, %c0_i32_1 : i32, i32, i32
  }
  func.func @transform_14(%arg0: i32) -> (i32, i32, i32) {
    %c0_i32 = arith.constant 0 : i32
    %c0_i32_0 = arith.constant 0 : i32
    %c0_i32_1 = arith.constant 0 : i32
    %c0_i32_2 = arith.constant 0 : i32
    return %c0_i32, %c0_i32_0, %c0_i32_1 : i32, i32, i32
  }
  func.func @transform_15(%arg0: i32) -> (i32, i32, i32) {
    %c0_i32 = arith.constant 0 : i32
    %c0_i32_0 = arith.constant 0 : i32
    %c0_i32_1 = arith.constant 0 : i32
    %c0_i32_2 = arith.constant 0 : i32
    return %c0_i32, %c0_i32_0, %c0_i32_1 : i32, i32, i32
  }
  func.func @transform_16(%arg0: i32) -> (i32, i32, i32) {
    %c0_i32 = arith.constant 0 : i32
    %c0_i32_0 = arith.constant 0 : i32
    %c0_i32_1 = arith.constant 0 : i32
    %c0_i32_2 = arith.constant 0 : i32
    return %c0_i32, %c0_i32_0, %c0_i32_1 : i32, i32, i32
  }
  func.func @transform_17(%arg0: i32) -> (i32, i32) {
    %c0_i32 = arith.constant 0 : i32
    %c0_i32_0 = arith.constant 0 : i32
    %c0_i32_1 = arith.constant 0 : i32
    return %c0_i32, %c0_i32_0 : i32, i32
  }
  func.func @transform_18(%arg0: i32) -> (i32, i32) {
    %c0_i32 = arith.constant 0 : i32
    %c0_i32_0 = arith.constant 0 : i32
    %c0_i32_1 = arith.constant 0 : i32
    return %c0_i32, %c0_i32_0 : i32, i32
  }
  func.func @transform_19(%arg0: i32) -> (i32, i32) {
    %c0_i32 = arith.constant 0 : i32
    %c0_i32_0 = arith.constant 0 : i32
    return %arg0, %c0_i32 : i32, i32
  }
}

</mosaic_0001>

<llo_original>
// kernel: tpu_custom_call.1
$region0: #{tpu_custom_call.1}
  #allocation0 [shape = 'u32[]', space=smem, size = 0x4, offset = 0x4, fixed_abs, tag = 'smem constant byte address 0x4 - core index']
  #allocation1 [shape = 'u32[72,128]{1,0:T(1,128)}', space=vmem, size = 0x9000, scoped, tag = 'internal scratch']
  %s0 = inlined_call_operand.vmem [shape: f32[24,1], index: 0, kind: input, shape index: {}]
  %s1 = inlined_call_operand.vmem [shape: f32[24,128], index: 1, kind: input, shape index: {}]
  %s2 = inlined_call_operand.hbm [shape: f32[1,128], index: 2, kind: input, shape index: {}]
  %s3 = inlined_call_operand.hbm [shape: f32[1,128], index: 3, kind: input, shape index: {}]
  %s4 = inlined_call_operand.hbm [shape: f32[1,128], index: 4, kind: input, shape index: {}]
  %s5 = inlined_call_operand.hbm [shape: bf16[128,128], index: 5, kind: input, shape index: {}]
  %s6 = inlined_call_operand.hbm [shape: f32[1,128], index: 6, kind: input, shape index: {}]
  %s7 = inlined_call_operand.hbm [shape: bf16[128,128], index: 7, kind: input, shape index: {}]
  %s8 = inlined_call_operand.hbm [shape: f32[1,128], index: 8, kind: input, shape index: {}]
  %s9 = inlined_call_operand.hbm [shape: bf16[6,128,128], index: 9, kind: input, shape index: {}]
  %s10 = inlined_call_operand.vmem [shape: f32[6,1,128], index: 10, kind: input, shape index: {}]
  %s11 = inlined_call_operand.hbm [shape: bf16[5,128,128], index: 11, kind: input, shape index: {}]
  %s12 = inlined_call_operand.vmem [shape: f32[5,1,128], index: 12, kind: input, shape index: {}]
  %s13 = inlined_call_operand.hbm [shape: bf16[5,128,128], index: 13, kind: input, shape index: {}]
  %s14 = inlined_call_operand.hbm [shape: f32[5,1,128], index: 14, kind: input, shape index: {}]
  %s15 = inlined_call_operand.hbm [shape: f32[5,1,128], index: 15, kind: input, shape index: {}]
  %s16 = inlined_call_operand.vmem [shape: f32[5,1,128], index: 16, kind: input, shape index: {}]
  %s17 = inlined_call_operand.vmem [shape: f32[1,128], index: 17, kind: input, shape index: {}]
  %s18 = inlined_call_operand.vmem [shape: f32[1,128], index: 18, kind: input, shape index: {}]
  %s19 = inlined_call_operand.hbm [shape: f32[24,128], index: 19, kind: output, shape index: {}]
  %s20 = sld [smem:[#allocation0]]
  $region157: #{tpu_custom_call.1} parent=0
    _
  %s22 = ssub.s32 1, %s20
  %s23 = scalar_select 0, %s22, %s20
  $region1: #{tpu_custom_call.1} parent=0
    #allocation2 [shape = 'u8[512]{0}', space=vmem, size = 0x400, scoped, tag = 'input window, operand 2, single buffered']
    #allocation3 [shape = 's32[2]{0}', space=sflag, size = 0x8, scoped, tag = 'scoped memory for tpu_custom_call.1']
    #allocation4 [shape = 's32[2]{0}', space=sflag, size = 0x8, scoped, tag = 'scoped memory for tpu_custom_call.1']
    #allocation5 [shape = 'u8[512]{0}', space=vmem, size = 0x400, scoped, tag = 'input window, operand 3, single buffered']
    #allocation6 [shape = 's32[1]{0}', space=sflag, size = 0x4, scoped, tag = 'scoped memory for tpu_custom_call.1']
    #allocation7 [shape = 'u8[512]{0}', space=vmem, size = 0x400, scoped, tag = 'input window, operand 4, single buffered']
    #allocation8 [shape = 'u8[32768]{0}', space=vmem, size = 0x8000, scoped, tag = 'input window, operand 5, single buffered']
    #allocation9 [shape = 's32[1]{0}', space=sflag, size = 0x4, scoped, tag = 'scoped memory for tpu_custom_call.1']
    #allocation10 [shape = 'u8[512]{0}', space=vmem, size = 0x400, scoped, tag = 'input window, operand 6, single buffered']
    #allocation11 [shape = 'u8[32768]{0}', space=vmem, size = 0x8000, scoped, tag = 'input window, operand 7, single buffered']
    #allocation12 [shape = 's32[1]{0}', space=sflag, size = 0x4, scoped, tag = 'scoped memory for tpu_custom_call.1']
    #allocation13 [shape = 'u8[512]{0}', space=vmem, size = 0x400, scoped, tag = 'input window, operand 8, single buffered']
    #allocation14 [shape = 'u8[196608]{0}', space=vmem, size = 0x30000, scoped, tag = 'input window, operand 9, single buffered']
    #allocation15 [shape = 's32[1]{0}', space=sflag, size = 0x4, scoped, tag = 'scoped memory for tpu_custom_call.1']
    #allocation16 [shape = 'u8[163840]{0}', space=vmem, size = 0x28000, scoped, tag = 'input window, operand 11, single buffered']
    #allocation17 [shape = 'u8[163840]{0}', space=vmem, size = 0x28000, scoped, tag = 'input window, operand 13, single buffered']
    #allocation18 [shape = 's32[1]{0}', space=sflag, size = 0x4, scoped, tag = 'scoped memory for tpu_custom_call.1']
    #allocation19 [shape = 'u8[2560]{0}', space=vmem, size = 0xc00, scoped, tag = 'input window, operand 14, single buffered']
    #allocation20 [shape = 'u8[2560]{0}', space=vmem, size = 0xc00, scoped, tag = 'input window, operand 15, single buffered']
    #allocation21 [shape = 's32[1]{0}', space=sflag, size = 0x4, scoped, tag = 'scoped memory for tpu_custom_call.1']
    #allocation22 [shape = 'u8[8192]{0}', space=vmem, size = 0x2000, scoped, tag = 'output window, operand 0']
    %24 = vsyncpa [#allocation3], 0
    %25 = vsyncpa [#allocation6], 0
    %26 = vsyncpa [#allocation9], 0
    %27 = vsyncpa [#allocation12], 0
    %28 = vsyncpa [#allocation15], 0
    %29 = vsyncpa [#allocation18], 0
    %30 = vsyncpa [#allocation21], 0
    %31 = vsyncpa [#allocation4], 0
    %s32 = scalar_lea.sflag [#allocation4], 1
    %33 = vsyncpa %s32, 0
    loop: start=0, step=1, limit=5
    $region2: #{tpu_custom_call.1} parent=1 // loop_pre_header
      _
    $region3: #{tpu_custom_call.1} parent=1 // loop_header
      %s35 = sphi 0, %s39
      %p36 = scmp.ge.s32.totalorder %s35, 5
      %s45 = sphi 0, %s47
      %s48 = sphi 0, %s45
      %s49 = sphi 0, %s48
      %s65 = sphi 0, %s49
      %s71 = sphi 0, %s73
      %s74 = sphi 0, %s71
      %s75 = sphi 0, %s74
      %s91 = sphi 0, %s75
      %s95 = sphi 0, %s95
      %s97 = sphi 0, %s95
      %s98 = sphi 0, %s97
      %s112 = sphi 0, %s98
      %s116 = sphi 0, %s116
      %s118 = sphi 0, %s116
      %s119 = sphi 0, %s118
      %s133 = sphi 0, %s119
      %s137 = sphi 0, %s137
      %s139 = sphi 0, %s137
      %s140 = sphi 0, %s139
      %s154 = sphi 0, %s140
      %s158 = sphi 0, %s158
      %s160 = sphi 0, %s158
      %s161 = sphi 0, %s160
      %s175 = sphi 0, %s161
      %s179 = sphi 0, %s179
      %s181 = sphi 0, %s179
      %s182 = sphi 0, %s181
      %s196 = sphi 0, %s182
      %s200 = sphi 0, %s200
      %s202 = sphi 0, %s200
      %s203 = sphi 0, %s202
      %s217 = sphi 0, %s203
      %s221 = sphi 0, %s221
      %s223 = sphi 0, %s221
      %s224 = sphi 0, %s223
      %s238 = sphi 0, %s224
      %s242 = sphi 0, %s242
      %s244 = sphi 0, %s242
      %s245 = sphi 0, %s244
      %s259 = sphi 0, %s245
      %s263 = sphi 0, %s263
      %s265 = sphi 0, %s263
      %s266 = sphi 0, %s265
      %s280 = sphi 0, %s266
      %s284 = sphi 0, %s284
      %s286 = sphi 0, %s284
      %s287 = sphi 0, %s286
      %s301 = sphi 0, %s287
      %s305 = sphi 0, %s305
      %s307 = sphi 0, %s305
      %s308 = sphi 0, %s307
      %s322 = sphi 0, %s308
      %s326 = sphi 0, %s326
      %s328 = sphi 0, %s326
      %s329 = sphi 0, %s328
      %s343 = sphi 0, %s329
      %s347 = sphi 0, %s347
      %s349 = sphi 0, %s347
      %s350 = sphi 0, %s349
      %s364 = sphi 0, %s350
      %s368 = sphi 0, %s368
      %s370 = sphi 0, %s368
      %s371 = sphi 0, %s370
      %s385 = sphi 0, %s371
      %s389 = sphi 0, %s389
      %s391 = sphi 0, %s389
      %s392 = sphi 0, %s391
      %s406 = sphi 0, %s392
      %s410 = sphi 0, %s410
      %s412 = sphi 0, %s410
      %s413 = sphi 0, %s412
      %s427 = sphi 0, %s413
      %s431 = sphi 0, %s431
      %s433 = sphi 0, %s431
      %s434 = sphi 0, %s433
      %s448 = sphi 0, %s434
      %s454 = sphi 0, %s456
      %s457 = sphi 0, %s454
      %s458 = sphi 0, %s457
      %s474 = sphi 0, %s458
    $region4: #{tpu_custom_call.1} parent=1 // loop_header_branch
      %38 = sbr.rel (%p36) target = $region8
    $region5: #{tpu_custom_call.1} parent=1 // loop_body
      %s40 = ssub.s32 %s35, 1
      %s41 = ssub.s32 %s35, 2
      %s42 = sadd.s32 %s35, 1
      %s43 = ssub.s32 %s35, %s42
      %p44 = scmp.eq.s32.totalorder %s43, 0
      %s46 = sadd.s32 %s45, 1
      %s47 = scalar_select %p44, %s45, %s46
      %p50 = pneg %p44
      %p51 = scmp.eq.s32.totalorder %s35, 2
      %p52 = por %p50, %p51
      %p53 = scmp.ne.s32.totalorder %s45, %s48
      %p54 = scmp.eq.s32.totalorder %s35, 0
      %p55 = por %p53, %p54
      %p56 = scmp.ne.s32.totalorder %s45, %s48
      %p57 = scmp.eq.s32.totalorder %s40, 2
      %p58 = por %p56, %p57
      %p59 = scmp.ne.s32.totalorder %s48, %s49
      %p60 = scmp.eq.s32.totalorder %s40, 0
      %p61 = por %p59, %p60
      %p62 = scmp.ne.s32.totalorder %s48, %s49
      %p63 = scmp.eq.s32.totalorder %s41, 2
      %p64 = por %p62, %p63
      %p66 = scmp.ne.s32.totalorder %s49, %s65
      %p67 = scmp.eq.s32.totalorder %s41, 0
      %p68 = por %p66, %p67
      %s69 = ssub.s32 %s35, %s42
      %p70 = scmp.eq.s32.totalorder %s69, 0
      %s72 = sadd.s32 %s71, 1
      %s73 = scalar_select %p70, %s71, %s72
      %p76 = pneg %p70
      %p77 = scmp.eq.s32.totalorder %s35, 2
      %p78 = por %p76, %p77
      %p79 = scmp.ne.s32.totalorder %s71, %s74
      %p80 = scmp.eq.s32.totalorder %s35, 0
      %p81 = por %p79, %p80
      %p82 = scmp.ne.s32.totalorder %s71, %s74
      %p83 = scmp.eq.s32.totalorder %s40, 2
      %p84 = por %p82, %p83
      %p85 = scmp.ne.s32.totalorder %s74, %s75
      %p86 = scmp.eq.s32.totalorder %s40, 0
      %p87 = por %p85, %p86
      %p88 = scmp.ne.s32.totalorder %s74, %s75
      %p89 = scmp.eq.s32.totalorder %s41, 2
      %p90 = por %p88, %p89
      %p92 = scmp.ne.s32.totalorder %s75, %s91
      %p93 = scmp.eq.s32.totalorder %s41, 0
      %p94 = por %p92, %p93
      %s96 = sadd.s32 %s95, 1
      %p99 = scmp.eq.s32.totalorder %s35, 2
      %p100 = scmp.ne.s32.totalorder %s95, %s97
      %p101 = scmp.eq.s32.totalorder %s35, 0
      %p102 = por %p100, %p101
      %p103 = scmp.ne.s32.totalorder %s95, %s97
      %p104 = scmp.eq.s32.totalorder %s40, 2
      %p105 = por %p103, %p104
      %p106 = scmp.ne.s32.totalorder %s97, %s98
      %p107 = scmp.eq.s32.totalorder %s40, 0
      %p108 = por %p106, %p107
      %p109 = scmp.ne.s32.totalorder %s97, %s98
      %p110 = scmp.eq.s32.totalorder %s41, 2
      %p111 = por %p109, %p110
      %p113 = scmp.ne.s32.totalorder %s98, %s112
      %p114 = scmp.eq.s32.totalorder %s41, 0
      %p115 = por %p113, %p114
      %s117 = sadd.s32 %s116, 1
      %p120 = scmp.eq.s32.totalorder %s35, 2
      %p121 = scmp.ne.s32.totalorder %s116, %s118
      %p122 = scmp.eq.s32.totalorder %s35, 0
      %p123 = por %p121, %p122
      %p124 = scmp.ne.s32.totalorder %s116, %s118
      %p125 = scmp.eq.s32.totalorder %s40, 2
      %p126 = por %p124, %p125
      %p127 = scmp.ne.s32.totalorder %s118, %s119
      %p128 = scmp.eq.s32.totalorder %s40, 0
      %p129 = por %p127, %p128
      %p130 = scmp.ne.s32.totalorder %s118, %s119
      %p131 = scmp.eq.s32.totalorder %s41, 2
      %p132 = por %p130, %p131
      %p134 = scmp.ne.s32.totalorder %s119, %s133
      %p135 = scmp.eq.s32.totalorder %s41, 0
      %p136 = por %p134, %p135
      %s138 = sadd.s32 %s137, 1
      %p141 = scmp.eq.s32.totalorder %s35, 2
      %p142 = scmp.ne.s32.totalorder %s137, %s139
      %p143 = scmp.eq.s32.totalorder %s35, 0
      %p144 = por %p142, %p143
      %p145 = scmp.ne.s32.totalorder %s137, %s139
      %p146 = scmp.eq.s32.totalorder %s40, 2
      %p147 = por %p145, %p146
      %p148 = scmp.ne.s32.totalorder %s139, %s140
      %p149 = scmp.eq.s32.totalorder %s40, 0
      %p150 = por %p148, %p149
      %p151 = scmp.ne.s32.totalorder %s139, %s140
      %p152 = scmp.eq.s32.totalorder %s41, 2
      %p153 = por %p151, %p152
      %p155 = scmp.ne.s32.totalorder %s140, %s154
      %p156 = scmp.eq.s32.totalorder %s41, 0
      %p157 = por %p155, %p156
      %s159 = sadd.s32 %s158, 1
      %p162 = scmp.eq.s32.totalorder %s35, 2
      %p163 = scmp.ne.s32.totalorder %s158, %s160
      %p164 = scmp.eq.s32.totalorder %s35, 0
      %p165 = por %p163, %p164
      %p166 = scmp.ne.s32.totalorder %s158, %s160
      %p167 = scmp.eq.s32.totalorder %s40, 2
      %p168 = por %p166, %p167
      %p169 = scmp.ne.s32.totalorder %s160, %s161
      %p170 = scmp.eq.s32.totalorder %s40, 0
      %p171 = por %p169, %p170
      %p172 = scmp.ne.s32.totalorder %s160, %s161
      %p173 = scmp.eq.s32.totalorder %s41, 2
      %p174 = por %p172, %p173
      %p176 = scmp.ne.s32.totalorder %s161, %s175
      %p177 = scmp.eq.s32.totalorder %s41, 0
      %p178 = por %p176, %p177
      %s180 = sadd.s32 %s179, 1
      %p183 = scmp.eq.s32.totalorder %s35, 2
      %p184 = scmp.ne.s32.totalorder %s179, %s181
      %p185 = scmp.eq.s32.totalorder %s35, 0
      %p186 = por %p184, %p185
      %p187 = scmp.ne.s32.totalorder %s179, %s181
      %p188 = scmp.eq.s32.totalorder %s40, 2
      %p189 = por %p187, %p188
      %p190 = scmp.ne.s32.totalorder %s181, %s182
      %p191 = scmp.eq.s32.totalorder %s40, 0
      %p192 = por %p190, %p191
      %p193 = scmp.ne.s32.totalorder %s181, %s182
      %p194 = scmp.eq.s32.totalorder %s41, 2
      %p195 = por %p193, %p194
      %p197 = scmp.ne.s32.totalorder %s182, %s196
      %p198 = scmp.eq.s32.totalorder %s41, 0
      %p199 = por %p197, %p198
      %s201 = sadd.s32 %s200, 1
      %p204 = scmp.eq.s32.totalorder %s35, 2
      %p205 = scmp.ne.s32.totalorder %s200, %s202
      %p206 = scmp.eq.s32.totalorder %s35, 0
      %p207 = por %p205, %p206
      %p208 = scmp.ne.s32.totalorder %s200, %s202
      %p209 = scmp.eq.s32.totalorder %s40, 2
      %p210 = por %p208, %p209
      %p211 = scmp.ne.s32.totalorder %s202, %s203
      %p212 = scmp.eq.s32.totalorder %s40, 0
      %p213 = por %p211, %p212
      %p214 = scmp.ne.s32.totalorder %s202, %s203
      %p215 = scmp.eq.s32.totalorder %s41, 2
      %p216 = por %p214, %p215
      %p218 = scmp.ne.s32.totalorder %s203, %s217
      %p219 = scmp.eq.s32.totalorder %s41, 0
      %p220 = por %p218, %p219
      %s222 = sadd.s32 %s221, 1
      %p225 = scmp.eq.s32.totalorder %s35, 2
      %p226 = scmp.ne.s32.totalorder %s221, %s223
      %p227 = scmp.eq.s32.totalorder %s35, 0
      %p228 = por %p226, %p227
      %p229 = scmp.ne.s32.totalorder %s221, %s223
      %p230 = scmp.eq.s32.totalorder %s40, 2
      %p231 = por %p229, %p230
      %p232 = scmp.ne.s32.totalorder %s223, %s224
      %p233 = scmp.eq.s32.totalorder %s40, 0
      %p234 = por %p232, %p233
      %p235 = scmp.ne.s32.totalorder %s223, %s224
      %p236 = scmp.eq.s32.totalorder %s41, 2
      %p237 = por %p235, %p236
      %p239 = scmp.ne.s32.totalorder %s224, %s238
      %p240 = scmp.eq.s32.totalorder %s41, 0
      %p241 = por %p239, %p240
      %s243 = sadd.s32 %s242, 1
      %p246 = scmp.eq.s32.totalorder %s35, 2
      %p247 = scmp.ne.s32.totalorder %s242, %s244
      %p248 = scmp.eq.s32.totalorder %s35, 0
      %p249 = por %p247, %p248
      %p250 = scmp.ne.s32.totalorder %s242, %s244
      %p251 = scmp.eq.s32.totalorder %s40, 2
      %p252 = por %p250, %p251
      %p253 = scmp.ne.s32.totalorder %s244, %s245
      %p254 = scmp.eq.s32.totalorder %s40, 0
      %p255 = por %p253, %p254
      %p256 = scmp.ne.s32.totalorder %s244, %s245
      %p257 = scmp.eq.s32.totalorder %s41, 2
      %p258 = por %p256, %p257
      %p260 = scmp.ne.s32.totalorder %s245, %s259
      %p261 = scmp.eq.s32.totalorder %s41, 0
      %p262 = por %p260, %p261
      %s264 = sadd.s32 %s263, 1
      %p267 = scmp.eq.s32.totalorder %s35, 2
      %p268 = scmp.ne.s32.totalorder %s263, %s265
      %p269 = scmp.eq.s32.totalorder %s35, 0
      %p270 = por %p268, %p269
      %p271 = scmp.ne.s32.totalorder %s263, %s265
      %p272 = scmp.eq.s32.totalorder %s40, 2
      %p273 = por %p271, %p272
      %p274 = scmp.ne.s32.totalorder %s265, %s266
      %p275 = scmp.eq.s32.totalorder %s40, 0
      %p276 = por %p274, %p275
      %p277 = scmp.ne.s32.totalorder %s265, %s266
      %p278 = scmp.eq.s32.totalorder %s41, 2
      %p279 = por %p277, %p278
      %p281 = scmp.ne.s32.totalorder %s266, %s280
      %p282 = scmp.eq.s32.totalorder %s41, 0
      %p283 = por %p281, %p282
      %s285 = sadd.s32 %s284, 1
      %p288 = scmp.eq.s32.totalorder %s35, 2
      %p289 = scmp.ne.s32.totalorder %s284, %s286
      %p290 = scmp.eq.s32.totalorder %s35, 0
      %p291 = por %p289, %p290
      %p292 = scmp.ne.s32.totalorder %s284, %s286
      %p293 = scmp.eq.s32.totalorder %s40, 2
      %p294 = por %p292, %p293
      %p295 = scmp.ne.s32.totalorder %s286, %s287
      %p296 = scmp.eq.s32.totalorder %s40, 0
      %p297 = por %p295, %p296
      %p298 = scmp.ne.s32.totalorder %s286, %s287
      %p299 = scmp.eq.s32.totalorder %s41, 2
      %p300 = por %p298, %p299
      %p302 = scmp.ne.s32.totalorder %s287, %s301
      %p303 = scmp.eq.s32.totalorder %s41, 0
      %p304 = por %p302, %p303
      %s306 = sadd.s32 %s305, 1
      %p309 = scmp.eq.s32.totalorder %s35, 2
      %p310 = scmp.ne.s32.totalorder %s305, %s307
      %p311 = scmp.eq.s32.totalorder %s35, 0
      %p312 = por %p310, %p311
      %p313 = scmp.ne.s32.totalorder %s305, %s307
      %p314 = scmp.eq.s32.totalorder %s40, 2
      %p315 = por %p313, %p314
      %p316 = scmp.ne.s32.totalorder %s307, %s308
      %p317 = scmp.eq.s32.totalorder %s40, 0
      %p318 = por %p316, %p317
      %p319 = scmp.ne.s32.totalorder %s307, %s308
      %p320 = scmp.eq.s32.totalorder %s41, 2
      %p321 = por %p319, %p320
      %p323 = scmp.ne.s32.totalorder %s308, %s322
      %p324 = scmp.eq.s32.totalorder %s41, 0
      %p325 = por %p323, %p324
      %s327 = sadd.s32 %s326, 1
      %p330 = scmp.eq.s32.totalorder %s35, 2
      %p331 = scmp.ne.s32.totalorder %s326, %s328
      %p332 = scmp.eq.s32.totalorder %s35, 0
      %p333 = por %p331, %p332
      %p334 = scmp.ne.s32.totalorder %s326, %s328
      %p335 = scmp.eq.s32.totalorder %s40, 2
      %p336 = por %p334, %p335
      %p337 = scmp.ne.s32.totalorder %s328, %s329
      %p338 = scmp.eq.s32.totalorder %s40, 0
      %p339 = por %p337, %p338
      %p340 = scmp.ne.s32.totalorder %s328, %s329
      %p341 = scmp.eq.s32.totalorder %s41, 2
      %p342 = por %p340, %p341
      %p344 = scmp.ne.s32.totalorder %s329, %s343
      %p345 = scmp.eq.s32.totalorder %s41, 0
      %p346 = por %p344, %p345
      %s348 = sadd.s32 %s347, 1
      %p351 = scmp.eq.s32.totalorder %s35, 2
      %p352 = scmp.ne.s32.totalorder %s347, %s349
      %p353 = scmp.eq.s32.totalorder %s35, 0
      %p354 = por %p352, %p353
      %p355 = scmp.ne.s32.totalorder %s347, %s349
      %p356 = scmp.eq.s32.totalorder %s40, 2
      %p357 = por %p355, %p356
      %p358 = scmp.ne.s32.totalorder %s349, %s350
      %p359 = scmp.eq.s32.totalorder %s40, 0
      %p360 = por %p358, %p359
      %p361 = scmp.ne.s32.totalorder %s349, %s350
      %p362 = scmp.eq.s32.totalorder %s41, 2
      %p363 = por %p361, %p362
      %p365 = scmp.ne.s32.totalorder %s350, %s364
      %p366 = scmp.eq.s32.totalorder %s41, 0
      %p367 = por %p365, %p366
      %s369 = sadd.s32 %s368, 1
      %p372 = scmp.eq.s32.totalorder %s35, 2
      %p373 = scmp.ne.s32.totalorder %s368, %s370
      %p374 = scmp.eq.s32.totalorder %s35, 0
      %p375 = por %p373, %p374
      %p376 = scmp.ne.s32.totalorder %s368, %s370
      %p377 = scmp.eq.s32.totalorder %s40, 2
      %p378 = por %p376, %p377
      %p379 = scmp.ne.s32.totalorder %s370, %s371
      %p380 = scmp.eq.s32.totalorder %s40, 0
      %p381 = por %p379, %p380
      %p382 = scmp.ne.s32.totalorder %s370, %s371
      %p383 = scmp.eq.s32.totalorder %s41, 2
      %p384 = por %p382, %p383
      %p386 = scmp.ne.s32.totalorder %s371, %s385
      %p387 = scmp.eq.s32.totalorder %s41, 0
      %p388 = por %p386, %p387
      %s390 = sadd.s32 %s389, 1
      %p393 = scmp.eq.s32.totalorder %s35, 2
      %p394 = scmp.ne.s32.totalorder %s389, %s391
      %p395 = scmp.eq.s32.totalorder %s35, 0
      %p396 = por %p394, %p395
      %p397 = scmp.ne.s32.totalorder %s389, %s391
      %p398 = scmp.eq.s32.totalorder %s40, 2
      %p399 = por %p397, %p398
      %p400 = scmp.ne.s32.totalorder %s391, %s392
      %p401 = scmp.eq.s32.totalorder %s40, 0
      %p402 = por %p400, %p401
      %p403 = scmp.ne.s32.totalorder %s391, %s392
      %p404 = scmp.eq.s32.totalorder %s41, 2
      %p405 = por %p403, %p404
      %p407 = scmp.ne.s32.totalorder %s392, %s406
      %p408 = scmp.eq.s32.totalorder %s41, 0
      %p409 = por %p407, %p408
      %s411 = sadd.s32 %s410, 1
      %p414 = scmp.eq.s32.totalorder %s35, 2
      %p415 = scmp.ne.s32.totalorder %s410, %s412
      %p416 = scmp.eq.s32.totalorder %s35, 0
      %p417 = por %p415, %p416
      %p418 = scmp.ne.s32.totalorder %s410, %s412
      %p419 = scmp.eq.s32.totalorder %s40, 2
      %p420 = por %p418, %p419
      %p421 = scmp.ne.s32.totalorder %s412, %s413
      %p422 = scmp.eq.s32.totalorder %s40, 0
      %p423 = por %p421, %p422
      %p424 = scmp.ne.s32.totalorder %s412, %s413
      %p425 = scmp.eq.s32.totalorder %s41, 2
      %p426 = por %p424, %p425
      %p428 = scmp.ne.s32.totalorder %s413, %s427
      %p429 = scmp.eq.s32.totalorder %s41, 0
      %p430 = por %p428, %p429
      %s432 = sadd.s32 %s431, 1
      %p435 = scmp.eq.s32.totalorder %s35, 2
      %p436 = scmp.ne.s32.totalorder %s431, %s433
      %p437 = scmp.eq.s32.totalorder %s35, 0
      %p438 = por %p436, %p437
      %p439 = scmp.ne.s32.totalorder %s431, %s433
      %p440 = scmp.eq.s32.totalorder %s40, 2
      %p441 = por %p439, %p440
      %p442 = scmp.ne.s32.totalorder %s433, %s434
      %p443 = scmp.eq.s32.totalorder %s40, 0
      %p444 = por %p442, %p443
      %p445 = scmp.ne.s32.totalorder %s433, %s434
      %p446 = scmp.eq.s32.totalorder %s41, 2
      %p447 = por %p445, %p446
      %p449 = scmp.ne.s32.totalorder %s434, %s448
      %p450 = scmp.eq.s32.totalorder %s41, 0
      %p451 = por %p449, %p450
      %s452 = ssub.s32 %s35, %s42
      %p453 = scmp.eq.s32.totalorder %s452, 0
      %s455 = sadd.s32 %s454, 1
      %s456 = scalar_select %p453, %s454, %s455
      %p459 = pneg %p453
      %p460 = scmp.eq.s32.totalorder %s35, 2
      %p461 = por %p459, %p460
      %p462 = scmp.ne.s32.totalorder %s454, %s457
      %p463 = scmp.eq.s32.totalorder %s35, 0
      %p464 = por %p462, %p463
      %p465 = scmp.ne.s32.totalorder %s454, %s457
      %p466 = scmp.eq.s32.totalorder %s40, 2
      %p467 = por %p465, %p466
      %p468 = scmp.ne.s32.totalorder %s457, %s458
      %p469 = scmp.eq.s32.totalorder %s40, 0
      %p470 = por %p468, %p469
      %p471 = scmp.ne.s32.totalorder %s457, %s458
      %p472 = scmp.eq.s32.totalorder %s41, 2
      %p473 = por %p471, %p472
      %p475 = scmp.ne.s32.totalorder %s458, %s474
      %p476 = scmp.eq.s32.totalorder %s41, 0
      %p477 = por %p475, %p476
      %p478 = scmp.le.s32.totalorder 1, %s35
      %p479 = scmp.lt.s32.totalorder %s35, 4
      %p480 = pnand %p478, %p479
      %p481 = pneg %p480
      // Predicated region
      $region9: #{tpu_custom_call.1} parent=5 // pred_check
        _
      $region10: #{tpu_custom_call.1} parent=5 // pred_check_branch
        %483 = sbr.rel (%p480) target = $region12
      $region11: #{tpu_custom_call.1} parent=5 // pred_region
        %s484 = ssub.s32 %s35, 1
        // Predicated region
        $region13: #{tpu_custom_call.1} parent=11 // pred_check
          %p485 = pneg %p108
        $region14: #{tpu_custom_call.1} parent=11 // pred_check_branch
          %487 = sbr.rel (%p485) target = $region16
        $region15: #{tpu_custom_call.1} parent=11 // pred_region
          %489 = vsyncadd [#allocation3], 0
          %s491 = sshll.u32 %s2, 4
          %s492 = int_to_ptr.hbm [resolvable:$true] %s491
          %s493 = sshll.u32 [#allocation2], 4
          %s494 = int_to_ptr.vmem [resolvable:$true] %s493
          %496 = dma.hbm_to_vmem [thread:$0]  %s492, 16, %s494, [#allocation3]
        $region16: #{tpu_custom_call.1} parent=11 // pred_fallthru
          _
        // Predicated region
        $region17: #{tpu_custom_call.1} parent=11 // pred_check
          %p497 = pneg %p129
        $region18: #{tpu_custom_call.1} parent=11 // pred_check_branch
          %499 = sbr.rel (%p497) target = $region20
        $region19: #{tpu_custom_call.1} parent=11 // pred_region
          %501 = vsyncadd [#allocation6], 0
          %s503 = sshll.u32 %s3, 4
          %s504 = int_to_ptr.hbm [resolvable:$true] %s503
          %s505 = sshll.u32 [#allocation5], 4
          %s506 = int_to_ptr.vmem [resolvable:$true] %s505
          %508 = dma.hbm_to_vmem [thread:$0]  %s504, 16, %s506, [#allocation6]
        $region20: #{tpu_custom_call.1} parent=11 // pred_fallthru
          _
        // Predicated region
        $region21: #{tpu_custom_call.1} parent=11 // pred_check
          %p509 = pneg %p150
        $region22: #{tpu_custom_call.1} parent=11 // pred_check_branch
          %511 = sbr.rel (%p509) target = $region24
        $region23: #{tpu_custom_call.1} parent=11 // pred_region
          %513 = vsyncadd [#allocation6], 0
          %s515 = sshll.u32 %s4, 4
          %s516 = int_to_ptr.hbm [resolvable:$true] %s515
          %s517 = sshll.u32 [#allocation7], 4
          %s518 = int_to_ptr.vmem [resolvable:$true] %s517
          %520 = dma.hbm_to_vmem [thread:$0]  %s516, 16, %s518, [#allocation6]
        $region24: #{tpu_custom_call.1} parent=11 // pred_fallthru
          _
        // Predicated region
        $region25: #{tpu_custom_call.1} parent=11 // pred_check
          %p521 = pneg %p171
        $region26: #{tpu_custom_call.1} parent=11 // pred_check_branch
          %523 = sbr.rel (%p521) target = $region28
        $region27: #{tpu_custom_call.1} parent=11 // pred_region
          %525 = vsyncadd [#allocation9], 0
          %s526 = sshll.u32 %s5, 4
          %s527 = int_to_ptr.hbm [resolvable:$true] %s526
          %s528 = sshll.u32 [#allocation8], 4
          %s529 = int_to_ptr.vmem [resolvable:$true] %s528
          %534 = dma.hbm_to_vmem [thread:$0]  %s527, 1024, %s529, [#allocation9], 64, 64, 4
        $region28: #{tpu_custom_call.1} parent=11 // pred_fallthru
          _
        // Predicated region
        $region29: #{tpu_custom_call.1} parent=11 // pred_check
          %p535 = pneg %p192
        $region30: #{tpu_custom_call.1} parent=11 // pred_check_branch
          %537 = sbr.rel (%p535) target = $region32
        $region31: #{tpu_custom_call.1} parent=11 // pred_region
          %539 = vsyncadd [#allocation9], 0
          %s541 = sshll.u32 %s6, 4
          %s542 = int_to_ptr.hbm [resolvable:$true] %s541
          %s543 = sshll.u32 [#allocation10], 4
          %s544 = int_to_ptr.vmem [resolvable:$true] %s543
          %546 = dma.hbm_to_vmem [thread:$0]  %s542, 16, %s544, [#allocation9]
        $region32: #{tpu_custom_call.1} parent=11 // pred_fallthru
          _
        // Predicated region
        $region33: #{tpu_custom_call.1} parent=11 // pred_check
          %p547 = pneg %p213
        $region34: #{tpu_custom_call.1} parent=11 // pred_check_branch
          %549 = sbr.rel (%p547) target = $region36
        $region35: #{tpu_custom_call.1} parent=11 // pred_region
          %551 = vsyncadd [#allocation12], 0
          %s552 = sshll.u32 %s7, 4
          %s553 = int_to_ptr.hbm [resolvable:$true] %s552
          %s554 = sshll.u32 [#allocation11], 4
          %s555 = int_to_ptr.vmem [resolvable:$true] %s554
          %560 = dma.hbm_to_vmem [thread:$0]  %s553, 1024, %s555, [#allocation12], 64, 64, 4
        $region36: #{tpu_custom_call.1} parent=11 // pred_fallthru
          _
        // Predicated region
        $region37: #{tpu_custom_call.1} parent=11 // pred_check
          %p561 = pneg %p234
        $region38: #{tpu_custom_call.1} parent=11 // pred_check_branch
          %563 = sbr.rel (%p561) target = $region40
        $region39: #{tpu_custom_call.1} parent=11 // pred_region
          %565 = vsyncadd [#allocation12], 0
          %s567 = sshll.u32 %s8, 4
          %s568 = int_to_ptr.hbm [resolvable:$true] %s567
          %s569 = sshll.u32 [#allocation13], 4
          %s570 = int_to_ptr.vmem [resolvable:$true] %s569
          %572 = dma.hbm_to_vmem [thread:$0]  %s568, 16, %s570, [#allocation12]
        $region40: #{tpu_custom_call.1} parent=11 // pred_fallthru
          _
        // Predicated region
        $region41: #{tpu_custom_call.1} parent=11 // pred_check
          %p573 = pneg %p255
        $region42: #{tpu_custom_call.1} parent=11 // pred_check_branch
          %575 = sbr.rel (%p573) target = $region44
        $region43: #{tpu_custom_call.1} parent=11 // pred_region
          %577 = vsyncadd [#allocation15], 0
          %s578 = sshll.u32 %s9, 4
          %s579 = int_to_ptr.hbm [resolvable:$true] %s578
          %s580 = sshll.u32 [#allocation14], 4
          %s581 = int_to_ptr.vmem [resolvable:$true] %s580
          %586 = dma.hbm_to_vmem [thread:$0]  %s579, 6144, %s581, [#allocation15], 64, 64, 4
        $region44: #{tpu_custom_call.1} parent=11 // pred_fallthru
          _
        // Predicated region
        $region45: #{tpu_custom_call.1} parent=11 // pred_check
          %p587 = pneg %p276
        $region46: #{tpu_custom_call.1} parent=11 // pred_check_branch
          %589 = sbr.rel (%p587) target = $region48
        $region47: #{tpu_custom_call.1} parent=11 // pred_region
          _
        $region48: #{tpu_custom_call.1} parent=11 // pred_fallthru
          _
        // Predicated region
        $region49: #{tpu_custom_call.1} parent=11 // pred_check
          %p590 = pneg %p297
        $region50: #{tpu_custom_call.1} parent=11 // pred_check_branch
          %592 = sbr.rel (%p590) target = $region52
        $region51: #{tpu_custom_call.1} parent=11 // pred_region
          %594 = vsyncadd [#allocation15], 0
          %s595 = sshll.u32 %s11, 4
          %s596 = int_to_ptr.hbm [resolvable:$true] %s595
          %s597 = sshll.u32 [#allocation16], 4
          %s598 = int_to_ptr.vmem [resolvable:$true] %s597
          %603 = dma.hbm_to_vmem [thread:$0]  %s596, 5120, %s598, [#allocation15], 64, 64, 4
        $region52: #{tpu_custom_call.1} parent=11 // pred_fallthru
          _
        // Predicated region
        $region53: #{tpu_custom_call.1} parent=11 // pred_check
          %p604 = pneg %p318
        $region54: #{tpu_custom_call.1} parent=11 // pred_check_branch
          %606 = sbr.rel (%p604) target = $region56
        $region55: #{tpu_custom_call.1} parent=11 // pred_region
          _
        $region56: #{tpu_custom_call.1} parent=11 // pred_fallthru
          _
        // Predicated region
        $region57: #{tpu_custom_call.1} parent=11 // pred_check
          %p607 = pneg %p339
        $region58: #{tpu_custom_call.1} parent=11 // pred_check_branch
          %609 = sbr.rel (%p607) target = $region60
        $region59: #{tpu_custom_call.1} parent=11 // pred_region
          %611 = vsyncadd [#allocation18], 0
          %s612 = sshll.u32 %s13, 4
          %s613 = int_to_ptr.hbm [resolvable:$true] %s612
          %s614 = sshll.u32 [#allocation17], 4
          %s615 = int_to_ptr.vmem [resolvable:$true] %s614
          %620 = dma.hbm_to_vmem [thread:$0]  %s613, 5120, %s615, [#allocation18], 64, 64, 4
        $region60: #{tpu_custom_call.1} parent=11 // pred_fallthru
          _
        // Predicated region
        $region61: #{tpu_custom_call.1} parent=11 // pred_check
          %p621 = pneg %p360
        $region62: #{tpu_custom_call.1} parent=11 // pred_check_branch
          %623 = sbr.rel (%p621) target = $region64
        $region63: #{tpu_custom_call.1} parent=11 // pred_region
          %625 = vsyncadd [#allocation18], 0
          %s626 = sshll.u32 %s14, 4
          %s627 = int_to_ptr.hbm [resolvable:$true] %s626
          %s628 = sshll.u32 [#allocation19], 4
          %s629 = int_to_ptr.vmem [resolvable:$true] %s628
          %634 = dma.hbm_to_vmem [thread:$0]  %s627, 80, %s629, [#allocation18], 16, 16, 1
        $region64: #{tpu_custom_call.1} parent=11 // pred_fallthru
          _
        // Predicated region
        $region65: #{tpu_custom_call.1} parent=11 // pred_check
          %p635 = pneg %p381
        $region66: #{tpu_custom_call.1} parent=11 // pred_check_branch
          %637 = sbr.rel (%p635) target = $region68
        $region67: #{tpu_custom_call.1} parent=11 // pred_region
          %639 = vsyncadd [#allocation21], 0
          %s640 = sshll.u32 %s15, 4
          %s641 = int_to_ptr.hbm [resolvable:$true] %s640
          %s642 = sshll.u32 [#allocation20], 4
          %s643 = int_to_ptr.vmem [resolvable:$true] %s642
          %648 = dma.hbm_to_vmem [thread:$0]  %s641, 80, %s643, [#allocation21], 16, 16, 1
        $region68: #{tpu_custom_call.1} parent=11 // pred_fallthru
          _
        // Predicated region
        $region69: #{tpu_custom_call.1} parent=11 // pred_check
          %p649 = pneg %p402
        $region70: #{tpu_custom_call.1} parent=11 // pred_check_branch
          %651 = sbr.rel (%p649) target = $region72
        $region71: #{tpu_custom_call.1} parent=11 // pred_region
          _
        $region72: #{tpu_custom_call.1} parent=11 // pred_fallthru
          _
        // Predicated region
        $region73: #{tpu_custom_call.1} parent=11 // pred_check
          %p652 = pneg %p423
        $region74: #{tpu_custom_call.1} parent=11 // pred_check_branch
          %654 = sbr.rel (%p652) target = $region76
        $region75: #{tpu_custom_call.1} parent=11 // pred_region
          _
        $region76: #{tpu_custom_call.1} parent=11 // pred_fallthru
          _
        // Predicated region
        $region77: #{tpu_custom_call.1} parent=11 // pred_check
          %p655 = pneg %p444
        $region78: #{tpu_custom_call.1} parent=11 // pred_check_branch
          %657 = sbr.rel (%p655) target = $region80
        $region79: #{tpu_custom_call.1} parent=11 // pred_region
          _
        $region80: #{tpu_custom_call.1} parent=11 // pred_fallthru
          _
      $region12: #{tpu_custom_call.1} parent=5 // pred_fallthru
        _
      %p658 = scmp.lt.s32.totalorder %s35, 3
      // Predicated region
      $region81: #{tpu_custom_call.1} parent=5 // pred_check
        %p659 = pneg %p658
      $region82: #{tpu_custom_call.1} parent=5 // pred_check_branch
        %661 = sbr.rel (%p659) target = $region84
      $region83: #{tpu_custom_call.1} parent=5 // pred_region
        // Predicated region
        $region85: #{tpu_custom_call.1} parent=83 // pred_check
          %p662 = pneg %p55
        $region86: #{tpu_custom_call.1} parent=83 // pred_check_branch
          %664 = sbr.rel (%p662) target = $region88
        $region87: #{tpu_custom_call.1} parent=83 // pred_region
          %p665 = scmp.lt.s32.totalorder %s35, 2
          %s666 = scalar_select %p665, %s35, 2
          %s667 = smul.addr %s666, 8
          %s668 = scalar_lea.vmem %s0, %s667
        $region88: #{tpu_custom_call.1} parent=83 // pred_fallthru
          _
        // Predicated region
        $region89: #{tpu_custom_call.1} parent=83 // pred_check
          %p669 = pneg %p81
        $region90: #{tpu_custom_call.1} parent=83 // pred_check_branch
          %671 = sbr.rel (%p669) target = $region92
        $region91: #{tpu_custom_call.1} parent=83 // pred_region
          %p672 = scmp.lt.s32.totalorder %s35, 2
          %s673 = scalar_select %p672, %s35, 2
          %s674 = smul.addr %s673, 8
          %s675 = scalar_lea.vmem %s1, %s674
        $region92: #{tpu_custom_call.1} parent=83 // pred_fallthru
          _
      $region84: #{tpu_custom_call.1} parent=5 // pred_fallthru
        _
      %p676 = scmp.le.s32.totalorder 1, %s35
      %p677 = scmp.lt.s32.totalorder %s35, 4
      %p678 = pnand %p676, %p677
      %p679 = pneg %p678
      // Predicated region
      $region93: #{tpu_custom_call.1} parent=5 // pred_check
        _
      $region94: #{tpu_custom_call.1} parent=5 // pred_check_branch
        %681 = sbr.rel (%p678) target = $region96
      $region95: #{tpu_custom_call.1} parent=5 // pred_region
        %s682 = ssub.s32 %s35, 1
        // Predicated region
        $region97: #{tpu_custom_call.1} parent=95 // pred_check
          %p683 = pneg %p108
        $region98: #{tpu_custom_call.1} parent=95 // pred_check_branch
          %685 = sbr.rel (%p683) target = $region100
        $region99: #{tpu_custom_call.1} parent=95 // pred_region
          %687 = dma.done [#allocation3], 16
        $region100: #{tpu_custom_call.1} parent=95 // pred_fallthru
          _
        // Predicated region
        $region101: #{tpu_custom_call.1} parent=95 // pred_check
          %p688 = pneg %p129
        $region102: #{tpu_custom_call.1} parent=95 // pred_check_branch
          %690 = sbr.rel (%p688) target = $region104
        $region103: #{tpu_custom_call.1} parent=95 // pred_region
          %692 = dma.done [#allocation6], 16
        $region104: #{tpu_custom_call.1} parent=95 // pred_fallthru
          _
        // Predicated region
        $region105: #{tpu_custom_call.1} parent=95 // pred_check
          %p693 = pneg %p150
        $region106: #{tpu_custom_call.1} parent=95 // pred_check_branch
          %695 = sbr.rel (%p693) target = $region108
        $region107: #{tpu_custom_call.1} parent=95 // pred_region
          %697 = dma.done [#allocation6], 16
        $region108: #{tpu_custom_call.1} parent=95 // pred_fallthru
          _
        // Predicated region
        $region109: #{tpu_custom_call.1} parent=95 // pred_check
          %p698 = pneg %p171
        $region110: #{tpu_custom_call.1} parent=95 // pred_check_branch
          %700 = sbr.rel (%p698) target = $region112
        $region111: #{tpu_custom_call.1} parent=95 // pred_region
          %702 = dma.done [#allocation9], 1024
        $region112: #{tpu_custom_call.1} parent=95 // pred_fallthru
          _
        // Predicated region
        $region113: #{tpu_custom_call.1} parent=95 // pred_check
          %p703 = pneg %p192
        $region114: #{tpu_custom_call.1} parent=95 // pred_check_branch
          %705 = sbr.rel (%p703) target = $region116
        $region115: #{tpu_custom_call.1} parent=95 // pred_region
          %707 = dma.done [#allocation9], 16
        $region116: #{tpu_custom_call.1} parent=95 // pred_fallthru
          _
        // Predicated region
        $region117: #{tpu_custom_call.1} parent=95 // pred_check
          %p708 = pneg %p213
        $region118: #{tpu_custom_call.1} parent=95 // pred_check_branch
          %710 = sbr.rel (%p708) target = $region120
        $region119: #{tpu_custom_call.1} parent=95 // pred_region
          %712 = dma.done [#allocation12], 1024
        $region120: #{tpu_custom_call.1} parent=95 // pred_fallthru
          _
        // Predicated region
        $region121: #{tpu_custom_call.1} parent=95 // pred_check
          %p713 = pneg %p234
        $region122: #{tpu_custom_call.1} parent=95 // pred_check_branch
          %715 = sbr.rel (%p713) target = $region124
        $region123: #{tpu_custom_call.1} parent=95 // pred_region
          %717 = dma.done [#allocation12], 16
        $region124: #{tpu_custom_call.1} parent=95 // pred_fallthru
          _
        // Predicated region
        $region125: #{tpu_custom_call.1} parent=95 // pred_check
          %p718 = pneg %p255
        $region126: #{tpu_custom_call.1} parent=95 // pred_check_branch
          %720 = sbr.rel (%p718) target = $region128
        $region127: #{tpu_custom_call.1} parent=95 // pred_region
          %722 = dma.done [#allocation15], 6144
        $region128: #{tpu_custom_call.1} parent=95 // pred_fallthru
          _
        // Predicated region
        $region129: #{tpu_custom_call.1} parent=95 // pred_check
          %p723 = pneg %p297
        $region130: #{tpu_custom_call.1} parent=95 // pred_check_branch
          %725 = sbr.rel (%p723) target = $region132
        $region131: #{tpu_custom_call.1} parent=95 // pred_region
          %727 = dma.done [#allocation15], 5120
        $region132: #{tpu_custom_call.1} parent=95 // pred_fallthru
          _
        // Predicated region
        $region133: #{tpu_custom_call.1} parent=95 // pred_check
          %p728 = pneg %p339
        $region134: #{tpu_custom_call.1} parent=95 // pred_check_branch
          %730 = sbr.rel (%p728) target = $region136
        $region135: #{tpu_custom_call.1} parent=95 // pred_region
          %732 = dma.done [#allocation18], 5120
        $region136: #{tpu_custom_call.1} parent=95 // pred_fallthru
          _
        // Predicated region
        $region137: #{tpu_custom_call.1} parent=95 // pred_check
          %p733 = pneg %p360
        $region138: #{tpu_custom_call.1} parent=95 // pred_check_branch
          %735 = sbr.rel (%p733) target = $region140
        $region139: #{tpu_custom_call.1} parent=95 // pred_region
          %737 = dma.done [#allocation18], 80
        $region140: #{tpu_custom_call.1} parent=95 // pred_fallthru
          _
        // Predicated region
        $region141: #{tpu_custom_call.1} parent=95 // pred_check
          %p738 = pneg %p381
        $region142: #{tpu_custom_call.1} parent=95 // pred_check_branch
          %740 = sbr.rel (%p738) target = $region144
        $region143: #{tpu_custom_call.1} parent=95 // pred_region
          %742 = dma.done [#allocation21], 80
        $region144: #{tpu_custom_call.1} parent=95 // pred_fallthru
          _
        %p743 = scmp.lt.s32.totalorder %s40, 2
        %s744 = scalar_select %p743, %s40, 2
        %s745 = smul.addr %s744, 8
        %s746 = scalar_lea.vmem %s0, %s745
        %p747 = pneg %p61
        %p748 = pneg %p58
        %p749 = scmp.lt.s32.totalorder %s40, 2
        %s750 = scalar_select %p749, %s40, 2
        %s751 = smul.addr %s750, 8
        %s752 = scalar_lea.vmem %s1, %s751
        %p753 = pneg %p87
        %p754 = pneg %p84
        %p755 = pneg %p108
        %p756 = pneg %p105
        %p757 = pneg %p129
        %p758 = pneg %p126
        %p759 = pneg %p150
        %p760 = pneg %p147
        %p761 = pneg %p171
        %p762 = pneg %p168
        %p763 = pneg %p192
        %p764 = pneg %p189
        %p765 = pneg %p213
        %p766 = pneg %p210
        %p767 = pneg %p234
        %p768 = pneg %p231
        %p769 = pneg %p255
        %p770 = pneg %p252
        %p771 = pneg %p276
        %p772 = pneg %p273
        %p773 = pneg %p297
        %p774 = pneg %p294
        %p775 = pneg %p318
        %p776 = pneg %p315
        %p777 = pneg %p339
        %p778 = pneg %p336
        %p779 = pneg %p360
        %p780 = pneg %p357
        %p781 = pneg %p381
        %p782 = pneg %p378
        %p783 = pneg %p402
        %p784 = pneg %p399
        %p785 = pneg %p423
        %p786 = pneg %p420
        %p787 = pneg %p444
        %p788 = pneg %p441
        %p789 = pneg %p470
        %p790 = pneg %p467
        %s791 = sand.u32 %s457, 1
        %s792 = scalar_lea.sflag [#allocation4], %s791
        %s793 = sand.u32 %s457, 1
        %s794 = smul.addr %s793, 8
        %s795 = scalar_lea.vmem [#allocation22], %s794
        %p796 = scmp.lt.s32.totalorder %s40, 2
        %s797 = scalar_select %p796, %s40, 2
        %s798 = smul.addr %s797, 8
        %s799 = scalar_lea.vmem %s0, %s798
        %p800 = scmp.lt.s32.totalorder %s40, 2
        %s801 = scalar_select %p800, %s40, 2
        %s802 = smul.addr %s801, 8
        %s803 = scalar_lea.vmem %s1, %s802
        %v804 = vlaneseq
        %v805 = vand.u32 %v804, 127
        %vm806 = vcmp.lt.s32.totalorder %v805, 64
        %v807 = vsel %vm806, 1, 0
        %v808 = vcvt.s32.f32 %v807
        %v809 = vsub.f32 1.0, %v808
        %v810 = vld [vmem:[%s799] sm:$0xff]
        %v811 = vlog2.pop %v810
        %v812 = vmul.f32 %v811, 0.6931472
        %v813 = vld [vmem:[#allocation2] sm:$0x1]
        %815 = vset.pattern.permute.xlu0 0
        %816 = vperm.xlu0 %815, %v812
        %v817 = vpop.permute.xlu0 %816
        %v820 = vperm.slane %v813, 0
        %v822 = vmul.f32 %v817, %v820
        %v823 = vld [vmem:[#allocation5] sm:$0x1]
        %v824 = vand.u32 2147483647, %v822
        %vm825 = vcmp.le.f32.partialorder %v824, 0.7853982
        %vm826 = vcmp.lt.s32.totalorder %v822, 0
        %v827 = vand.u32 %v822, 2139095040
        %v828 = vshrl.u32 %v827, 23
        %v829 = vsub.s32 %v828, 127
        %v830 = vand.u32 2147483647, %v822
        %v831 = vand.u32 %v830, 8388607
        %v832 = vor.u32 %v831, 8388608
        %v833 = vsub.s32 0, %v832
        %v834 = vadd.s32 %v829, 1
        %vm835 = vcmp.gt.s32.totalorder %v834, 0
        %v836 = vsel %vm835, %v834, 0
        %v837 = vshrl.u32 %v836, 5
        %v838 = vand.u32 %v836, 31
        %v839 = vsub.s32 32, %v838
        %v840 = vshrl.u32 683565275, %v839
        %v841 = vshll.u32 683565275, %v838
        %v842 = vshrl.u32 2475754826, %v839
        %v843 = vor.u32 %v841, %v842
        %v844 = vshll.u32 2475754826, %v838
        %v845 = vshrl.u32 2131351028, %v839
        %v846 = vor.u32 %v844, %v845
        %v847 = vshll.u32 2131351028, %v838
        %v848 = vshrl.u32 2102212464, %v839
        %v849 = vor.u32 %v847, %v848
        %v850 = vshll.u32 2102212464, %v838
        %v851 = vshrl.u32 920167782, %v839
        %v852 = vor.u32 %v850, %v851
        %v853 = vshll.u32 920167782, %v838
        %v854 = vshrl.u32 1326507024, %v839
        %v855 = vor.u32 %v853, %v854
        %vm856 = vcmp.lt.s32.totalorder %v837, 1
        %vm857 = vcmp.lt.s32.totalorder %v837, 2
        %vm858 = vcmp.lt.s32.totalorder %v837, 3
        %vm859 = vcmp.lt.s32.totalorder %v837, 4
        %v860 = vsel %vm856, %v840, %v843
        %v861 = vsel %vm859, %v849, 2102212464
        %v862 = vsel %vm858, %v846, %v861
        %v863 = vsel %vm857, %v860, %v862
        %v864 = vsel %vm856, %v843, %v846
        %v865 = vsel %vm859, %v852, 920167782
        %v866 = vsel %vm858, %v849, %v865
        %v867 = vsel %vm857, %v864, %v866
        %v868 = vsel %vm856, %v846, %v849
        %v869 = vsel %vm859, %v855, 1326507024
        %v870 = vsel %vm858, %v852, %v869
        %v871 = vsel %vm857, %v868, %v870
        %v872 = vshll.u32 %v832, 8
        %v873 = vand.u32 %v872, 65535
        %v874 = vshrl.u32 %v872, 16
        %v875 = vand.u32 %v871, 65535
        %v876 = vshrl.u32 %v871, 16
        %v877 = vmul.u32 %v873, %v875
        %v878 = vmul.u32 %v873, %v876
        %v879 = vmul.u32 %v874, %v875
        %v880 = vmul.u32 %v874, %v876
        %v881 = vshll.u32 %v878, 16
        %v882 = vshrl.u32 %v878, 16
        %v883 = vshll.u32 %v879, 16
        %v884 = vshrl.u32 %v879, 16
        %vm885 = vc.u32 %v877, %v881
        %v886 = vsel %vm885, 1, 0
        %v887 = vadd.s32 %v877, %v881
        %v888 = vadd.s32 %v880, %v886
        %vm889 = vc.u32 %v887, %v883
        %v890 = vsel %vm889, 1, 0
        %v891 = vadd.s32 %v887, %v883
        %v892 = vadd.s32 %v888, %v890
        %v893 = vadd.s32 %v892, %v882
        %v894 = vadd.s32 %v893, %v884
        %v895 = vand.u32 %v872, 65535
        %v896 = vshrl.u32 %v872, 16
        %v897 = vand.u32 %v867, 65535
        %v898 = vshrl.u32 %v867, 16
        %v899 = vmul.u32 %v895, %v897
        %v900 = vmul.u32 %v895, %v898
        %v901 = vmul.u32 %v896, %v897
        %v902 = vmul.u32 %v896, %v898
        %v903 = vshll.u32 %v900, 16
        %v904 = vshrl.u32 %v900, 16
        %v905 = vshll.u32 %v901, 16
        %v906 = vshrl.u32 %v901, 16
        %vm907 = vc.u32 %v899, %v903
        %v908 = vsel %vm907, 1, 0
        %v909 = vadd.s32 %v899, %v903
        %v910 = vadd.s32 %v902, %v908
        %vm911 = vc.u32 %v909, %v905
        %v912 = vsel %vm911, 1, 0
        %v913 = vadd.s32 %v909, %v905
        %v914 = vadd.s32 %v910, %v912
        %v915 = vadd.s32 %v914, %v904
        %v916 = vadd.s32 %v915, %v906
        %v917 = vmul.u32 %v872, %v863
        %v918 = vadd.s32 %v894, %v913
        %vm919 = vc.u32 %v894, %v913
        %v920 = vadd.s32 %v916, 1
        %v921 = vsel %vm919, %v920, %v916
        %v922 = vadd.s32 %v917, %v921
        %v923 = vadd.s32 %v922, 536870912
        %v924 = vshrl.u32 %v923, 30
        %v925 = vshll.u32 %v924, 30
        %v926 = vsub.s32 %v922, %v925
        %vm927 = vcmp.lt.s32.totalorder %v926, 0
        %v928 = vsub.s32 0, %v926
        %v929 = vsel %vm927, %v928, %v926
        %v930 = vclz %v929
        %v931 = vsub.s32 %v930, 2
        %vm932 = vcmp.gt.s32.totalorder 0, %v931
        %v933 = vsel %vm932, 0, %v931
        %v934 = vsub.s32 32, %v933
        %v935 = vshll.u32 %v926, %v933
        %v936 = vshrl.u32 %v918, %v934
        %v937 = vor.u32 %v935, %v936
        %v938 = vsub.s32 4294967266, %v933
        %v939 = vadd.s32 %v938, 127
        %v940 = vshll.u32 %v939, 23
        %v941 = vor.u32 4788187, %v940
        %v942 = vand.u32 2147483647, %v941
        %v944 = vcvt.s32.f32 %v937
        %v945 = vmul.f32 %v944, %v942
        %v946 = vxor.u32 %v945, 2147483648
        %v947 = vsel %vm826, %v946, %v945
        %v948 = vsub.s32 4, %v924
        %v949 = vsel %vm826, %v948, %v924
        %v950 = vsel %vm825, %v822, %v947
        %v951 = vsel %vm825, 0, %v949
        %v952 = vmul.f32 %v950, %v950
        %v953 = vmul.f32 %v952, -0.001358992
        %v954 = vadd.f32 %v953, 0.041655596
        %v955 = vmul.f32 %v952, %v954
        %v956 = vadd.f32 %v955, -0.4999988
        %v957 = vmul.f32 %v952, %v956
        %v958 = vadd.f32 1.0, %v957
        %v959 = vmul.f32 %v950, %v950
        %v960 = vmul.f32 %v959, -0.00019511016
        %v961 = vadd.f32 %v960, 0.008332121
        %v962 = vmul.f32 %v959, %v961
        %v963 = vadd.f32 %v962, -0.16666654
        %v964 = vmul.f32 %v959, %v963
        %v965 = vadd.f32 %v964, 1.0
        %v966 = vmul.f32 %v965, %v950
        %vm967 = vweird.f32 %v822
        %v968 = vadd.s32 %v951, 3
        %v969 = vand.u32 %v968, 3
        %vm970 = vcmp.lt.s32.totalorder %v969, 2
        %vm971 = vcmp.eq.s32.totalorder %v969, 0
        %v972 = vxor.u32 %v966, 2147483648
        %v973 = vsel %vm971, %v958, %v972
        %vm974 = vcmp.eq.s32.totalorder %v969, 2
        %v975 = vxor.u32 %v958, 2147483648
        %v976 = vsel %vm974, %v975, %v966
        %v977 = vsel %vm970, %v973, %v976
        %v978 = vsel %vm967, nan, %v977
        %v980 = vperm.slane %v823, 0
        %v982 = vmul.f32 %v980, %v978
        %v983 = vld [vmem:[#allocation7] sm:$0x1]
        %v984 = vand.u32 2147483647, %v822
        %vm985 = vcmp.le.f32.partialorder %v984, 0.7853982
        %vm986 = vcmp.lt.s32.totalorder %v822, 0
        %v987 = vand.u32 %v822, 2139095040
        %v988 = vshrl.u32 %v987, 23
        %v989 = vsub.s32 %v988, 127
        %v990 = vand.u32 2147483647, %v822
        %v991 = vand.u32 %v990, 8388607
        %v992 = vor.u32 %v991, 8388608
        %v993 = vsub.s32 0, %v992
        %v994 = vadd.s32 %v989, 1
        %vm995 = vcmp.gt.s32.totalorder %v994, 0
        %v996 = vsel %vm995, %v994, 0
        %v997 = vshrl.u32 %v996, 5
        %v998 = vand.u32 %v996, 31
        %v999 = vsub.s32 32, %v998
        %v1000 = vshrl.u32 683565275, %v999
        %v1001 = vshll.u32 683565275, %v998
        %v1002 = vshrl.u32 2475754826, %v999
        %v1003 = vor.u32 %v1001, %v1002
        %v1004 = vshll.u32 2475754826, %v998
        %v1005 = vshrl.u32 2131351028, %v999
        %v1006 = vor.u32 %v1004, %v1005
        %v1007 = vshll.u32 2131351028, %v998
        %v1008 = vshrl.u32 2102212464, %v999
        %v1009 = vor.u32 %v1007, %v1008
        %v1010 = vshll.u32 2102212464, %v998
        %v1011 = vshrl.u32 920167782, %v999
        %v1012 = vor.u32 %v1010, %v1011
        %v1013 = vshll.u32 920167782, %v998
        %v1014 = vshrl.u32 1326507024, %v999
        %v1015 = vor.u32 %v1013, %v1014
        %vm1016 = vcmp.lt.s32.totalorder %v997, 1
        %vm1017 = vcmp.lt.s32.totalorder %v997, 2
        %vm1018 = vcmp.lt.s32.totalorder %v997, 3
        %vm1019 = vcmp.lt.s32.totalorder %v997, 4
        %v1020 = vsel %vm1016, %v1000, %v1003
        %v1021 = vsel %vm1019, %v1009, 2102212464
        %v1022 = vsel %vm1018, %v1006, %v1021
        %v1023 = vsel %vm1017, %v1020, %v1022
        %v1024 = vsel %vm1016, %v1003, %v1006
        %v1025 = vsel %vm1019, %v1012, 920167782
        %v1026 = vsel %vm1018, %v1009, %v1025
        %v1027 = vsel %vm1017, %v1024, %v1026
        %v1028 = vsel %vm1016, %v1006, %v1009
        %v1029 = vsel %vm1019, %v1015, 1326507024
        %v1030 = vsel %vm1018, %v1012, %v1029
        %v1031 = vsel %vm1017, %v1028, %v1030
        %v1032 = vshll.u32 %v992, 8
        %v1033 = vand.u32 %v1032, 65535
        %v1034 = vshrl.u32 %v1032, 16
        %v1035 = vand.u32 %v1031, 65535
        %v1036 = vshrl.u32 %v1031, 16
        %v1037 = vmul.u32 %v1033, %v1035
        %v1038 = vmul.u32 %v1033, %v1036
        %v1039 = vmul.u32 %v1034, %v1035
        %v1040 = vmul.u32 %v1034, %v1036
        %v1041 = vshll.u32 %v1038, 16
        %v1042 = vshrl.u32 %v1038, 16
        %v1043 = vshll.u32 %v1039, 16
        %v1044 = vshrl.u32 %v1039, 16
        %vm1045 = vc.u32 %v1037, %v1041
        %v1046 = vsel %vm1045, 1, 0
        %v1047 = vadd.s32 %v1037, %v1041
        %v1048 = vadd.s32 %v1040, %v1046
        %vm1049 = vc.u32 %v1047, %v1043
        %v1050 = vsel %vm1049, 1, 0
        %v1051 = vadd.s32 %v1047, %v1043
        %v1052 = vadd.s32 %v1048, %v1050
        %v1053 = vadd.s32 %v1052, %v1042
        %v1054 = vadd.s32 %v1053, %v1044
        %v1055 = vand.u32 %v1032, 65535
        %v1056 = vshrl.u32 %v1032, 16
        %v1057 = vand.u32 %v1027, 65535
        %v1058 = vshrl.u32 %v1027, 16
        %v1059 = vmul.u32 %v1055, %v1057
        %v1060 = vmul.u32 %v1055, %v1058
        %v1061 = vmul.u32 %v1056, %v1057
        %v1062 = vmul.u32 %v1056, %v1058
        %v1063 = vshll.u32 %v1060, 16
        %v1064 = vshrl.u32 %v1060, 16
        %v1065 = vshll.u32 %v1061, 16
        %v1066 = vshrl.u32 %v1061, 16
        %vm1067 = vc.u32 %v1059, %v1063
        %v1068 = vsel %vm1067, 1, 0
        %v1069 = vadd.s32 %v1059, %v1063
        %v1070 = vadd.s32 %v1062, %v1068
        %vm1071 = vc.u32 %v1069, %v1065
        %v1072 = vsel %vm1071, 1, 0
        %v1073 = vadd.s32 %v1069, %v1065
        %v1074 = vadd.s32 %v1070, %v1072
        %v1075 = vadd.s32 %v1074, %v1064
        %v1076 = vadd.s32 %v1075, %v1066
        %v1077 = vmul.u32 %v1032, %v1023
        %v1078 = vadd.s32 %v1054, %v1073
        %vm1079 = vc.u32 %v1054, %v1073
        %v1080 = vadd.s32 %v1076, 1
        %v1081 = vsel %vm1079, %v1080, %v1076
        %v1082 = vadd.s32 %v1077, %v1081
        %v1083 = vadd.s32 %v1082, 536870912
        %v1084 = vshrl.u32 %v1083, 30
        %v1085 = vshll.u32 %v1084, 30
        %v1086 = vsub.s32 %v1082, %v1085
        %vm1087 = vcmp.lt.s32.totalorder %v1086, 0
        %v1088 = vsub.s32 0, %v1086
        %v1089 = vsel %vm1087, %v1088, %v1086
        %v1090 = vclz %v1089
        %v1091 = vsub.s32 %v1090, 2
        %vm1092 = vcmp.gt.s32.totalorder 0, %v1091
        %v1093 = vsel %vm1092, 0, %v1091
        %v1094 = vsub.s32 32, %v1093
        %v1095 = vshll.u32 %v1086, %v1093
        %v1096 = vshrl.u32 %v1078, %v1094
        %v1097 = vor.u32 %v1095, %v1096
        %v1098 = vsub.s32 4294967266, %v1093
        %v1099 = vadd.s32 %v1098, 127
        %v1100 = vshll.u32 %v1099, 23
        %v1101 = vor.u32 4788187, %v1100
        %v1102 = vand.u32 2147483647, %v1101
        %v1104 = vcvt.s32.f32 %v1097
        %v1105 = vmul.f32 %v1104, %v1102
        %v1106 = vxor.u32 %v1105, 2147483648
        %v1107 = vsel %vm986, %v1106, %v1105
        %v1108 = vsub.s32 4, %v1084
        %v1109 = vsel %vm986, %v1108, %v1084
        %v1110 = vsel %vm985, %v822, %v1107
        %v1111 = vsel %vm985, 0, %v1109
        %v1112 = vmul.f32 %v1110, %v1110
        %v1113 = vmul.f32 %v1112, -0.001358992
        %v1114 = vadd.f32 %v1113, 0.041655596
        %v1115 = vmul.f32 %v1112, %v1114
        %v1116 = vadd.f32 %v1115, -0.4999988
        %v1117 = vmul.f32 %v1112, %v1116
        %v1118 = vadd.f32 1.0, %v1117
        %v1119 = vmul.f32 %v1110, %v1110
        %v1120 = vmul.f32 %v1119, -0.00019511016
        %v1121 = vadd.f32 %v1120, 0.008332121
        %v1122 = vmul.f32 %v1119, %v1121
        %v1123 = vadd.f32 %v1122, -0.16666654
        %v1124 = vmul.f32 %v1119, %v1123
        %v1125 = vadd.f32 %v1124, 1.0
        %v1126 = vmul.f32 %v1125, %v1110
        %vm1127 = vweird.f32 %v822
        %v1128 = vand.u32 %v1111, 3
        %vm1129 = vcmp.lt.s32.totalorder %v1128, 2
        %vm1130 = vcmp.eq.s32.totalorder %v1128, 0
        %v1131 = vxor.u32 %v1126, 2147483648
        %v1132 = vsel %vm1130, %v1118, %v1131
        %vm1133 = vcmp.eq.s32.totalorder %v1128, 2
        %v1134 = vxor.u32 %v1118, 2147483648
        %v1135 = vsel %vm1133, %v1134, %v1126
        %v1136 = vsel %vm1129, %v1132, %v1135
        %v1137 = vsel %vm1127, nan, %v1136
        %v1139 = vperm.slane %v983, 0
        %v1141 = vmul.f32 %v1139, %v1137
        %v1142 = vadd.f32 %v982, %v1141
        %v1143 = vld [vmem:[#allocation14] sm:$0xf]
        %v1144 = vld [vmem:[#allocation14 + $0x4] sm:$0xf]
        %v1145 = vld [vmem:[#allocation14 + $0x8] sm:$0xf]
        %v1146 = vld [vmem:[#allocation14 + $0xc] sm:$0xf]
        %v1147 = vld [vmem:[#allocation14 + $0x10] sm:$0xf]
        %v1148 = vld [vmem:[#allocation14 + $0x14] sm:$0xf]
        %v1149 = vld [vmem:[#allocation14 + $0x18] sm:$0xf]
        %v1150 = vld [vmem:[#allocation14 + $0x1c] sm:$0xf]
        %v1151 = vld [vmem:[#allocation14 + $0x20] sm:$0xf]
        %v1152 = vld [vmem:[#allocation14 + $0x24] sm:$0xf]
        %v1153 = vld [vmem:[#allocation14 + $0x28] sm:$0xf]
        %v1154 = vld [vmem:[#allocation14 + $0x2c] sm:$0xf]
        %v1155 = vld [vmem:[#allocation14 + $0x30] sm:$0xf]
        %v1156 = vld [vmem:[#allocation14 + $0x34] sm:$0xf]
        %v1157 = vld [vmem:[#allocation14 + $0x38] sm:$0xf]
        %v1158 = vld [vmem:[#allocation14 + $0x3c] sm:$0xf]
        %v1159 = vld [vmem:[%s10] sm:$0x1]
        %v1160 = vpack.c.bf16 %v1142, %v1142
        %v1162 = vperm.slane %v1159, 0
        %v1180 = vunpack.c.l.b16 %v1143
        %v1181 = vunpack.c.l.b16 %v1144
        %v1182 = vunpack.c.l.b16 %v1145
        %v1183 = vunpack.c.l.b16 %v1146
        %v1184 = vunpack.c.l.b16 %v1147
        %v1185 = vunpack.c.l.b16 %v1148
        %v1186 = vunpack.c.l.b16 %v1149
        %v1187 = vunpack.c.l.b16 %v1150
        %v1188 = vunpack.c.l.b16 %v1151
        %v1189 = vunpack.c.l.b16 %v1152
        %v1190 = vunpack.c.l.b16 %v1153
        %v1191 = vunpack.c.l.b16 %v1154
        %v1192 = vunpack.c.l.b16 %v1155
        %v1193 = vunpack.c.l.b16 %v1156
        %v1194 = vunpack.c.l.b16 %v1157
        %v1195 = vunpack.c.l.b16 %v1158
        %v1196 = vpack.c.b16 %v1181, %v1180
        %v1197 = vpack.c.b16 %v1183, %v1182
        %v1198 = vpack.c.b16 %v1185, %v1184
        %v1199 = vpack.c.b16 %v1187, %v1186
        %v1200 = vpack.c.b16 %v1189, %v1188
        %v1201 = vpack.c.b16 %v1191, %v1190
        %v1202 = vpack.c.b16 %v1193, %v1192
        %v1203 = vpack.c.b16 %v1195, %v1194
        %1212 = vmatpush.bf16.msra.mxu0 %v1203
        %1213 = vmatpush.bf16.msra.mxu0 %v1202
        %1214 = vmatpush.bf16.msra.mxu0 %v1201
        %1215 = vmatpush.bf16.msra.mxu0 %v1200
        %1216 = vmatpush.bf16.msra.mxu0 %v1199
        %1217 = vmatpush.bf16.msra.mxu0 %v1198
        %1218 = vmatpush.bf16.msra.mxu0 %v1197
        %1219 = vmatpush.bf16.msra.mxu0 %v1196
        %1220 = vmatmul.bf16.gmra.mxu0 %v1160
        %v1221 = vpop.f32.mrf.mxu0
        %v1222 = vadd.f32 %v1162, %v1221
        %v1223 = vpop.f32.mrf.mxu0
        %1224 = vdwg.mxu0
        %v1225 = vsub.f32 0.0, %v1222
        %v1226 = vmul.f32 %v1225, 1.442695
        %v1227 = vpow.pop %v1226
        %v1228 = vadd.f32 %v1227, 1.0
        %v1229 = vrcp.pop %v1228
        %v1230 = vmul.f32 %v1228, %v1229
        %v1231 = vsub.f32 1.0, %v1230
        %v1232 = vmul.f32 %v1229, %v1231
        %v1233 = vadd.f32 %v1229, %v1232
        %vm1234 = vweird.f32 %v1228
        %vm1235 = vweird.f32 %v1229
        %vm1236 = vmor %vm1234, %vm1235
        %v1237 = vsel %vm1236, %v1229, %v1233
        %v1238 = vand.u32 2147483647, %v1228
        %vm1239 = vcmp.eq.f32.partialorder %v1238, 8.507059e+37
        %v1240 = vand.u32 %v1228, 2147483648
        %v1241 = vor.u32 1.1754944e-38, %v1240
        %v1242 = vsel %vm1239, %v1241, %v1237
        %v1243 = vmul.f32 1.0, %v1242
        %v1244 = vmul.f32 %v1222, %v1243
        %v1245 = vld [vmem:[%s803] sm:$0xff]
        %v1246 = vld [vmem:[#allocation8] sm:$0xf]
        %v1247 = vld [vmem:[#allocation8 + $0x4] sm:$0xf]
        %v1248 = vld [vmem:[#allocation8 + $0x8] sm:$0xf]
        %v1249 = vld [vmem:[#allocation8 + $0xc] sm:$0xf]
        %v1250 = vld [vmem:[#allocation8 + $0x10] sm:$0xf]
        %v1251 = vld [vmem:[#allocation8 + $0x14] sm:$0xf]
        %v1252 = vld [vmem:[#allocation8 + $0x18] sm:$0xf]
        %v1253 = vld [vmem:[#allocation8 + $0x1c] sm:$0xf]
        %v1254 = vld [vmem:[#allocation8 + $0x20] sm:$0xf]
        %v1255 = vld [vmem:[#allocation8 + $0x24] sm:$0xf]
        %v1256 = vld [vmem:[#allocation8 + $0x28] sm:$0xf]
        %v1257 = vld [vmem:[#allocation8 + $0x2c] sm:$0xf]
        %v1258 = vld [vmem:[#allocation8 + $0x30] sm:$0xf]
        %v1259 = vld [vmem:[#allocation8 + $0x34] sm:$0xf]
        %v1260 = vld [vmem:[#allocation8 + $0x38] sm:$0xf]
        %v1261 = vld [vmem:[#allocation8 + $0x3c] sm:$0xf]
        %v1262 = vld [vmem:[#allocation10] sm:$0x1]
        %v1263 = vpack.c.bf16 %v1245, %v1245
        %v1265 = vperm.slane %v1262, 0
        %v1283 = vunpack.c.l.b16 %v1246
        %v1284 = vunpack.c.l.b16 %v1247
        %v1285 = vunpack.c.l.b16 %v1248
        %v1286 = vunpack.c.l.b16 %v1249
        %v1287 = vunpack.c.l.b16 %v1250
        %v1288 = vunpack.c.l.b16 %v1251
        %v1289 = vunpack.c.l.b16 %v1252
        %v1290 = vunpack.c.l.b16 %v1253
        %v1291 = vunpack.c.l.b16 %v1254
        %v1292 = vunpack.c.l.b16 %v1255
        %v1293 = vunpack.c.l.b16 %v1256
        %v1294 = vunpack.c.l.b16 %v1257
        %v1295 = vunpack.c.l.b16 %v1258
        %v1296 = vunpack.c.l.b16 %v1259
        %v1297 = vunpack.c.l.b16 %v1260
        %v1298 = vunpack.c.l.b16 %v1261
        %v1299 = vpack.c.b16 %v1284, %v1283
        %v1300 = vpack.c.b16 %v1286, %v1285
        %v1301 = vpack.c.b16 %v1288, %v1287
        %v1302 = vpack.c.b16 %v1290, %v1289
        %v1303 = vpack.c.b16 %v1292, %v1291
        %v1304 = vpack.c.b16 %v1294, %v1293
        %v1305 = vpack.c.b16 %v1296, %v1295
        %v1306 = vpack.c.b16 %v1298, %v1297
        %1315 = vmatpush.bf16.msra.mxu0 %v1306
        %1316 = vmatpush.bf16.msra.mxu0 %v1305
        %1317 = vmatpush.bf16.msra.mxu0 %v1304
        %1318 = vmatpush.bf16.msra.mxu0 %v1303
        %1319 = vmatpush.bf16.msra.mxu0 %v1302
        %1320 = vmatpush.bf16.msra.mxu0 %v1301
        %1321 = vmatpush.bf16.msra.mxu0 %v1300
        %1322 = vmatpush.bf16.msra.mxu0 %v1299
        %1323 = vmatmul.bf16.gmra.mxu0 %v1263
        %v1324 = vpop.f32.mrf.mxu0
        %v1325 = vadd.f32 %v1265, %v1324
        %v1326 = vpop.f32.mrf.mxu0
        %1327 = vdwg.mxu0
        %v1328 = vsub.f32 0.0, %v1244
        %v1329 = vmul.f32 %v1328, 1.442695
        %v1330 = vpow.pop %v1329
        %v1331 = vadd.f32 %v1330, 1.0
        %v1332 = vrcp.pop %v1331
        %v1333 = vmul.f32 %v1331, %v1332
        %v1334 = vsub.f32 1.0, %v1333
        %v1335 = vmul.f32 %v1332, %v1334
        %v1336 = vadd.f32 %v1332, %v1335
        %vm1337 = vweird.f32 %v1331
        %vm1338 = vweird.f32 %v1332
        %vm1339 = vmor %vm1337, %vm1338
        %v1340 = vsel %vm1339, %v1332, %v1336
        %v1341 = vand.u32 2147483647, %v1331
        %vm1342 = vcmp.eq.f32.partialorder %v1341, 8.507059e+37
        %v1343 = vand.u32 %v1331, 2147483648
        %v1344 = vor.u32 1.1754944e-38, %v1343
        %v1345 = vsel %vm1342, %v1344, %v1340
        %v1346 = vmul.f32 1.0, %v1345
        %v1347 = vmul.f32 %v1244, %v1346
        %v1348 = vld [vmem:[#allocation16] sm:$0xf]
        %v1349 = vld [vmem:[#allocation16 + $0x4] sm:$0xf]
        %v1350 = vld [vmem:[#allocation16 + $0x8] sm:$0xf]
        %v1351 = vld [vmem:[#allocation16 + $0xc] sm:$0xf]
        %v1352 = vld [vmem:[#allocation16 + $0x10] sm:$0xf]
        %v1353 = vld [vmem:[#allocation16 + $0x14] sm:$0xf]
        %v1354 = vld [vmem:[#allocation16 + $0x18] sm:$0xf]
        %v1355 = vld [vmem:[#allocation16 + $0x1c] sm:$0xf]
        %v1356 = vld [vmem:[#allocation16 + $0x20] sm:$0xf]
        %v1357 = vld [vmem:[#allocation16 + $0x24] sm:$0xf]
        %v1358 = vld [vmem:[#allocation16 + $0x28] sm:$0xf]
        %v1359 = vld [vmem:[#allocation16 + $0x2c] sm:$0xf]
        %v1360 = vld [vmem:[#allocation16 + $0x30] sm:$0xf]
        %v1361 = vld [vmem:[#allocation16 + $0x34] sm:$0xf]
        %v1362 = vld [vmem:[#allocation16 + $0x38] sm:$0xf]
        %v1363 = vld [vmem:[#allocation16 + $0x3c] sm:$0xf]
        %v1364 = vld [vmem:[%s12] sm:$0x1]
        %v1365 = vpack.c.bf16 %v1347, %v1347
        %v1367 = vperm.slane %v1364, 0
        %v1385 = vunpack.c.l.b16 %v1348
        %v1386 = vunpack.c.l.b16 %v1349
        %v1387 = vunpack.c.l.b16 %v1350
        %v1388 = vunpack.c.l.b16 %v1351
        %v1389 = vunpack.c.l.b16 %v1352
        %v1390 = vunpack.c.l.b16 %v1353
        %v1391 = vunpack.c.l.b16 %v1354
        %v1392 = vunpack.c.l.b16 %v1355
        %v1393 = vunpack.c.l.b16 %v1356
        %v1394 = vunpack.c.l.b16 %v1357
        %v1395 = vunpack.c.l.b16 %v1358
        %v1396 = vunpack.c.l.b16 %v1359
        %v1397 = vunpack.c.l.b16 %v1360
        %v1398 = vunpack.c.l.b16 %v1361
        %v1399 = vunpack.c.l.b16 %v1362
        %v1400 = vunpack.c.l.b16 %v1363
        %v1401 = vpack.c.b16 %v1386, %v1385
        %v1402 = vpack.c.b16 %v1388, %v1387
        %v1403 = vpack.c.b16 %v1390, %v1389
        %v1404 = vpack.c.b16 %v1392, %v1391
        %v1405 = vpack.c.b16 %v1394, %v1393
        %v1406 = vpack.c.b16 %v1396, %v1395
        %v1407 = vpack.c.b16 %v1398, %v1397
        %v1408 = vpack.c.b16 %v1400, %v1399
        %1417 = vmatpush.bf16.msra.mxu0 %v1408
        %1418 = vmatpush.bf16.msra.mxu0 %v1407
        %1419 = vmatpush.bf16.msra.mxu0 %v1406
        %1420 = vmatpush.bf16.msra.mxu0 %v1405
        %1421 = vmatpush.bf16.msra.mxu0 %v1404
        %1422 = vmatpush.bf16.msra.mxu0 %v1403
        %1423 = vmatpush.bf16.msra.mxu0 %v1402
        %1424 = vmatpush.bf16.msra.mxu0 %v1401
        %1425 = vmatmul.bf16.gmra.mxu0 %v1365
        %v1426 = vpop.f32.mrf.mxu0
        %v1427 = vadd.f32 %v1367, %v1426
        %v1428 = vpop.f32.mrf.mxu0
        %1429 = vdwg.mxu0
        %v1430 = vld [vmem:[#allocation17] sm:$0xf]
        %v1431 = vld [vmem:[#allocation17 + $0x4] sm:$0xf]
        %v1432 = vld [vmem:[#allocation17 + $0x8] sm:$0xf]
        %v1433 = vld [vmem:[#allocation17 + $0xc] sm:$0xf]
        %v1434 = vld [vmem:[#allocation17 + $0x10] sm:$0xf]
        %v1435 = vld [vmem:[#allocation17 + $0x14] sm:$0xf]
        %v1436 = vld [vmem:[#allocation17 + $0x18] sm:$0xf]
        %v1437 = vld [vmem:[#allocation17 + $0x1c] sm:$0xf]
        %v1438 = vld [vmem:[#allocation17 + $0x20] sm:$0xf]
        %v1439 = vld [vmem:[#allocation17 + $0x24] sm:$0xf]
        %v1440 = vld [vmem:[#allocation17 + $0x28] sm:$0xf]
        %v1441 = vld [vmem:[#allocation17 + $0x2c] sm:$0xf]
        %v1442 = vld [vmem:[#allocation17 + $0x30] sm:$0xf]
        %v1443 = vld [vmem:[#allocation17 + $0x34] sm:$0xf]
        %v1444 = vld [vmem:[#allocation17 + $0x38] sm:$0xf]
        %v1445 = vld [vmem:[#allocation17 + $0x3c] sm:$0xf]
        %v1446 = vld [vmem:[#allocation19] sm:$0x1]
        %v1448 = vperm.slane %v1446, 0
        %v1466 = vunpack.c.l.b16 %v1430
        %v1467 = vunpack.c.l.b16 %v1431
        %v1468 = vunpack.c.l.b16 %v1432
        %v1469 = vunpack.c.l.b16 %v1433
        %v1470 = vunpack.c.l.b16 %v1434
        %v1471 = vunpack.c.l.b16 %v1435
        %v1472 = vunpack.c.l.b16 %v1436
        %v1473 = vunpack.c.l.b16 %v1437
        %v1474 = vunpack.c.l.b16 %v1438
        %v1475 = vunpack.c.l.b16 %v1439
        %v1476 = vunpack.c.l.b16 %v1440
        %v1477 = vunpack.c.l.b16 %v1441
        %v1478 = vunpack.c.l.b16 %v1442
        %v1479 = vunpack.c.l.b16 %v1443
        %v1480 = vunpack.c.l.b16 %v1444
        %v1481 = vunpack.c.l.b16 %v1445
        %v1482 = vpack.c.b16 %v1467, %v1466
        %v1483 = vpack.c.b16 %v1469, %v1468
        %v1484 = vpack.c.b16 %v1471, %v1470
        %v1485 = vpack.c.b16 %v1473, %v1472
        %v1486 = vpack.c.b16 %v1475, %v1474
        %v1487 = vpack.c.b16 %v1477, %v1476
        %v1488 = vpack.c.b16 %v1479, %v1478
        %v1489 = vpack.c.b16 %v1481, %v1480
        %1498 = vmatpush.bf16.msra.mxu0 %v1489
        %1499 = vmatpush.bf16.msra.mxu0 %v1488
        %1500 = vmatpush.bf16.msra.mxu0 %v1487
        %1501 = vmatpush.bf16.msra.mxu0 %v1486
        %1502 = vmatpush.bf16.msra.mxu0 %v1485
        %1503 = vmatpush.bf16.msra.mxu0 %v1484
        %1504 = vmatpush.bf16.msra.mxu0 %v1483
        %1505 = vmatpush.bf16.msra.mxu0 %v1482
        %1506 = vmatmul.bf16.gmra.mxu0 %v1365
        %v1507 = vpop.f32.mrf.mxu0
        %v1508 = vadd.f32 %v1448, %v1507
        %v1509 = vpop.f32.mrf.mxu0
        %1510 = vdwg.mxu0
        %v1511 = vld [vmem:[#allocation20] sm:$0x1]
        %v1512 = vld [vmem:[%s16] sm:$0x1]
        %v1513 = vmul.f32 %v1325, %v808
        %1514 = vadd.xlane.f32.xlu0 %v1513
        %v1515 = vpop.xlane.xlu0 %1514
        %v1516 = vmul.f32 %v1325, %v809
        %1517 = vadd.xlane.f32.xlu0 %v1516
        %v1518 = vpop.xlane.xlu0 %1517
        %v1519 = vmul.f32 %v1515, %v808
        %v1520 = vmul.f32 %v1518, %v809
        %v1521 = vadd.f32 %v1519, %v1520
        %v1522 = vmul.f32 %v1521, 0.015625
        %v1523 = vsub.f32 %v1325, %v1522
        %v1524 = vmul.f32 %v1523, %v1523
        %v1525 = vmul.f32 %v1524, %v808
        %1526 = vadd.xlane.f32.xlu0 %v1525
        %v1527 = vpop.xlane.xlu0 %1526
        %v1528 = vmul.f32 %v1524, %v809
        %1529 = vadd.xlane.f32.xlu0 %v1528
        %v1530 = vpop.xlane.xlu0 %1529
        %v1531 = vmul.f32 %v1527, %v808
        %v1532 = vmul.f32 %v1530, %v809
        %v1533 = vadd.f32 %v1531, %v1532
        %v1534 = vmul.f32 %v1533, 0.015625
        %v1535 = vadd.f32 %v1534, 1e-05
        %v1536 = vrsqrt.pop %v1535
        %v1537 = vmul.f32 %v1536, %v1535
        %v1538 = vmul.f32 %v1537, %v1536
        %v1539 = vmul.f32 0.5, %v1538
        %v1540 = vsub.f32 1.5, %v1539
        %v1541 = vmul.f32 %v1536, %v1540
        %vm1542 = vweird.f32 %v1535
        %vm1543 = vweird.f32 %v1536
        %vm1544 = vmor %vm1542, %vm1543
        %v1545 = vsel %vm1544, %v1536, %v1541
        %v1546 = vmul.f32 %v1523, %v1545
        %v1548 = vperm.slane %v1511, 0
        %v1550 = vmul.f32 %v1546, %v1548
        %v1552 = vperm.slane %v1512, 0
        %v1554 = vadd.f32 %v1550, %v1552
        %v1555 = vadd.f32 %v1427, %v808
        %1557 = vrot.lane.b32.xlu0 %v1555, 64
        %v1558 = vpop.permute.xlu0 %1557
        %1561 = vrot.lane.b32.xlu0 %v1554, 64
        %v1562 = vpop.permute.xlu0 %1561
        %v1564 = vmul.f32 %v1555, %v808
        %v1565 = vmul.f32 %v1558, %v809
        %v1566 = vadd.f32 %v1564, %v1565
        %v1567 = vmul.f32 %v1555, %v809
        %v1568 = vmul.f32 %v1558, %v808
        %v1569 = vsub.f32 %v1567, %v1568
        %v1570 = vmul.f32 %v1554, %v1566
        %v1571 = vmul.f32 %v1562, %v1569
        %v1572 = vadd.f32 %v1570, %v1571
        %v1573 = vadd.f32 %v1572, %v1508
        %v1574 = vsub.f32 0.0, %v1573
        %v1575 = vmul.f32 %v1574, 1.442695
        %v1576 = vpow.pop %v1575
        %v1577 = vadd.f32 %v1576, 1.0
        %v1578 = vrcp.pop %v1577
        %v1579 = vmul.f32 %v1577, %v1578
        %v1580 = vsub.f32 1.0, %v1579
        %v1581 = vmul.f32 %v1578, %v1580
        %v1582 = vadd.f32 %v1578, %v1581
        %vm1583 = vweird.f32 %v1577
        %vm1584 = vweird.f32 %v1578
        %vm1585 = vmor %vm1583, %vm1584
        %v1586 = vsel %vm1585, %v1578, %v1582
        %v1587 = vand.u32 2147483647, %v1577
        %vm1588 = vcmp.eq.f32.partialorder %v1587, 8.507059e+37
        %v1589 = vand.u32 %v1577, 2147483648
        %v1590 = vor.u32 1.1754944e-38, %v1589
        %v1591 = vsel %vm1588, %v1590, %v1586
        %v1592 = vmul.f32 1.0, %v1591
        %v1593 = vmul.f32 %v1573, %v1592
        %s1594 = scalar_lea.vmem [#allocation14], 64
        %v1595 = vld [vmem:[%s1594] sm:$0xf]
        %v1596 = vld [vmem:[%s1594 + $0x4] sm:$0xf]
        %v1597 = vld [vmem:[%s1594 + $0x8] sm:$0xf]
        %v1598 = vld [vmem:[%s1594 + $0xc] sm:$0xf]
        %v1599 = vld [vmem:[%s1594 + $0x10] sm:$0xf]
        %v1600 = vld [vmem:[%s1594 + $0x14] sm:$0xf]
        %v1601 = vld [vmem:[%s1594 + $0x18] sm:$0xf]
        %v1602 = vld [vmem:[%s1594 + $0x1c] sm:$0xf]
        %v1603 = vld [vmem:[%s1594 + $0x20] sm:$0xf]
        %v1604 = vld [vmem:[%s1594 + $0x24] sm:$0xf]
        %v1605 = vld [vmem:[%s1594 + $0x28] sm:$0xf]
        %v1606 = vld [vmem:[%s1594 + $0x2c] sm:$0xf]
        %v1607 = vld [vmem:[%s1594 + $0x30] sm:$0xf]
        %v1608 = vld [vmem:[%s1594 + $0x34] sm:$0xf]
        %v1609 = vld [vmem:[%s1594 + $0x38] sm:$0xf]
        %v1610 = vld [vmem:[%s1594 + $0x3c] sm:$0xf]
        %s1611 = scalar_lea.vmem %s10, 1
        %v1612 = vld [vmem:[%s1611] sm:$0x1]
        %v1613 = vpack.c.bf16 %v1593, %v1593
        %v1615 = vperm.slane %v1612, 0
        %v1633 = vunpack.c.l.b16 %v1595
        %v1634 = vunpack.c.l.b16 %v1596
        %v1635 = vunpack.c.l.b16 %v1597
        %v1636 = vunpack.c.l.b16 %v1598
        %v1637 = vunpack.c.l.b16 %v1599
        %v1638 = vunpack.c.l.b16 %v1600
        %v1639 = vunpack.c.l.b16 %v1601
        %v1640 = vunpack.c.l.b16 %v1602
        %v1641 = vunpack.c.l.b16 %v1603
        %v1642 = vunpack.c.l.b16 %v1604
        %v1643 = vunpack.c.l.b16 %v1605
        %v1644 = vunpack.c.l.b16 %v1606
        %v1645 = vunpack.c.l.b16 %v1607
        %v1646 = vunpack.c.l.b16 %v1608
        %v1647 = vunpack.c.l.b16 %v1609
        %v1648 = vunpack.c.l.b16 %v1610
        %v1649 = vpack.c.b16 %v1634, %v1633
        %v1650 = vpack.c.b16 %v1636, %v1635
        %v1651 = vpack.c.b16 %v1638, %v1637
        %v1652 = vpack.c.b16 %v1640, %v1639
        %v1653 = vpack.c.b16 %v1642, %v1641
        %v1654 = vpack.c.b16 %v1644, %v1643
        %v1655 = vpack.c.b16 %v1646, %v1645
        %v1656 = vpack.c.b16 %v1648, %v1647
        %1665 = vmatpush.bf16.msra.mxu0 %v1656
        %1666 = vmatpush.bf16.msra.mxu0 %v1655
        %1667 = vmatpush.bf16.msra.mxu0 %v1654
        %1668 = vmatpush.bf16.msra.mxu0 %v1653
        %1669 = vmatpush.bf16.msra.mxu0 %v1652
        %1670 = vmatpush.bf16.msra.mxu0 %v1651
        %1671 = vmatpush.bf16.msra.mxu0 %v1650
        %1672 = vmatpush.bf16.msra.mxu0 %v1649
        %1673 = vmatmul.bf16.gmra.mxu0 %v1613
        %v1674 = vpop.f32.mrf.mxu0
        %v1675 = vadd.f32 %v1615, %v1674
        %v1676 = vpop.f32.mrf.mxu0
        %1677 = vdwg.mxu0
        %v1678 = vsub.f32 0.0, %v1347
        %v1679 = vmul.f32 %v1678, 1.442695
        %v1680 = vpow.pop %v1679
        %v1681 = vadd.f32 %v1680, 1.0
        %v1682 = vrcp.pop %v1681
        %v1683 = vmul.f32 %v1681, %v1682
        %v1684 = vsub.f32 1.0, %v1683
        %v1685 = vmul.f32 %v1682, %v1684
        %v1686 = vadd.f32 %v1682, %v1685
        %vm1687 = vweird.f32 %v1681
        %vm1688 = vweird.f32 %v1682
        %vm1689 = vmor %vm1687, %vm1688
        %v1690 = vsel %vm1689, %v1682, %v1686
        %v1691 = vand.u32 2147483647, %v1681
        %vm1692 = vcmp.eq.f32.partialorder %v1691, 8.507059e+37
        %v1693 = vand.u32 %v1681, 2147483648
        %v1694 = vor.u32 1.1754944e-38, %v1693
        %v1695 = vsel %vm1692, %v1694, %v1690
        %v1696 = vmul.f32 1.0, %v1695
        %v1697 = vmul.f32 %v1347, %v1696
        %s1698 = scalar_lea.vmem [#allocation16], 64
        %v1699 = vld [vmem:[%s1698] sm:$0xf]
        %v1700 = vld [vmem:[%s1698 + $0x4] sm:$0xf]
        %v1701 = vld [vmem:[%s1698 + $0x8] sm:$0xf]
        %v1702 = vld [vmem:[%s1698 + $0xc] sm:$0xf]
        %v1703 = vld [vmem:[%s1698 + $0x10] sm:$0xf]
        %v1704 = vld [vmem:[%s1698 + $0x14] sm:$0xf]
        %v1705 = vld [vmem:[%s1698 + $0x18] sm:$0xf]
        %v1706 = vld [vmem:[%s1698 + $0x1c] sm:$0xf]
        %v1707 = vld [vmem:[%s1698 + $0x20] sm:$0xf]
        %v1708 = vld [vmem:[%s1698 + $0x24] sm:$0xf]
        %v1709 = vld [vmem:[%s1698 + $0x28] sm:$0xf]
        %v1710 = vld [vmem:[%s1698 + $0x2c] sm:$0xf]
        %v1711 = vld [vmem:[%s1698 + $0x30] sm:$0xf]
        %v1712 = vld [vmem:[%s1698 + $0x34] sm:$0xf]
        %v1713 = vld [vmem:[%s1698 + $0x38] sm:$0xf]
        %v1714 = vld [vmem:[%s1698 + $0x3c] sm:$0xf]
        %s1715 = scalar_lea.vmem %s12, 1
        %v1716 = vld [vmem:[%s1715] sm:$0x1]
        %v1717 = vpack.c.bf16 %v1697, %v1697
        %v1719 = vperm.slane %v1716, 0
        %v1737 = vunpack.c.l.b16 %v1699
        %v1738 = vunpack.c.l.b16 %v1700
        %v1739 = vunpack.c.l.b16 %v1701
        %v1740 = vunpack.c.l.b16 %v1702
        %v1741 = vunpack.c.l.b16 %v1703
        %v1742 = vunpack.c.l.b16 %v1704
        %v1743 = vunpack.c.l.b16 %v1705
        %v1744 = vunpack.c.l.b16 %v1706
        %v1745 = vunpack.c.l.b16 %v1707
        %v1746 = vunpack.c.l.b16 %v1708
        %v1747 = vunpack.c.l.b16 %v1709
        %v1748 = vunpack.c.l.b16 %v1710
        %v1749 = vunpack.c.l.b16 %v1711
        %v1750 = vunpack.c.l.b16 %v1712
        %v1751 = vunpack.c.l.b16 %v1713
        %v1752 = vunpack.c.l.b16 %v1714
        %v1753 = vpack.c.b16 %v1738, %v1737
        %v1754 = vpack.c.b16 %v1740, %v1739
        %v1755 = vpack.c.b16 %v1742, %v1741
        %v1756 = vpack.c.b16 %v1744, %v1743
        %v1757 = vpack.c.b16 %v1746, %v1745
        %v1758 = vpack.c.b16 %v1748, %v1747
        %v1759 = vpack.c.b16 %v1750, %v1749
        %v1760 = vpack.c.b16 %v1752, %v1751
        %1769 = vmatpush.bf16.msra.mxu0 %v1760
        %1770 = vmatpush.bf16.msra.mxu0 %v1759
        %1771 = vmatpush.bf16.msra.mxu0 %v1758
        %1772 = vmatpush.bf16.msra.mxu0 %v1757
        %1773 = vmatpush.bf16.msra.mxu0 %v1756
        %1774 = vmatpush.bf16.msra.mxu0 %v1755
        %1775 = vmatpush.bf16.msra.mxu0 %v1754
        %1776 = vmatpush.bf16.msra.mxu0 %v1753
        %1777 = vmatmul.bf16.gmra.mxu0 %v1717
        %v1778 = vpop.f32.mrf.mxu0
        %v1779 = vadd.f32 %v1719, %v1778
        %v1780 = vpop.f32.mrf.mxu0
        %1781 = vdwg.mxu0
        %s1782 = scalar_lea.vmem [#allocation17], 64
        %v1783 = vld [vmem:[%s1782] sm:$0xf]
        %v1784 = vld [vmem:[%s1782 + $0x4] sm:$0xf]
        %v1785 = vld [vmem:[%s1782 + $0x8] sm:$0xf]
        %v1786 = vld [vmem:[%s1782 + $0xc] sm:$0xf]
        %v1787 = vld [vmem:[%s1782 + $0x10] sm:$0xf]
        %v1788 = vld [vmem:[%s1782 + $0x14] sm:$0xf]
        %v1789 = vld [vmem:[%s1782 + $0x18] sm:$0xf]
        %v1790 = vld [vmem:[%s1782 + $0x1c] sm:$0xf]
        %v1791 = vld [vmem:[%s1782 + $0x20] sm:$0xf]
        %v1792 = vld [vmem:[%s1782 + $0x24] sm:$0xf]
        %v1793 = vld [vmem:[%s1782 + $0x28] sm:$0xf]
        %v1794 = vld [vmem:[%s1782 + $0x2c] sm:$0xf]
        %v1795 = vld [vmem:[%s1782 + $0x30] sm:$0xf]
        %v1796 = vld [vmem:[%s1782 + $0x34] sm:$0xf]
        %v1797 = vld [vmem:[%s1782 + $0x38] sm:$0xf]
        %v1798 = vld [vmem:[%s1782 + $0x3c] sm:$0xf]
        %s1799 = scalar_lea.vmem [#allocation19], 1
        %v1800 = vld [vmem:[%s1799] sm:$0x1]
        %v1802 = vperm.slane %v1800, 0
        %v1820 = vunpack.c.l.b16 %v1783
        %v1821 = vunpack.c.l.b16 %v1784
        %v1822 = vunpack.c.l.b16 %v1785
        %v1823 = vunpack.c.l.b16 %v1786
        %v1824 = vunpack.c.l.b16 %v1787
        %v1825 = vunpack.c.l.b16 %v1788
        %v1826 = vunpack.c.l.b16 %v1789
        %v1827 = vunpack.c.l.b16 %v1790
        %v1828 = vunpack.c.l.b16 %v1791
        %v1829 = vunpack.c.l.b16 %v1792
        %v1830 = vunpack.c.l.b16 %v1793
        %v1831 = vunpack.c.l.b16 %v1794
        %v1832 = vunpack.c.l.b16 %v1795
        %v1833 = vunpack.c.l.b16 %v1796
        %v1834 = vunpack.c.l.b16 %v1797
        %v1835 = vunpack.c.l.b16 %v1798
        %v1836 = vpack.c.b16 %v1821, %v1820
        %v1837 = vpack.c.b16 %v1823, %v1822
        %v1838 = vpack.c.b16 %v1825, %v1824
        %v1839 = vpack.c.b16 %v1827, %v1826
        %v1840 = vpack.c.b16 %v1829, %v1828
        %v1841 = vpack.c.b16 %v1831, %v1830
        %v1842 = vpack.c.b16 %v1833, %v1832
        %v1843 = vpack.c.b16 %v1835, %v1834
        %1852 = vmatpush.bf16.msra.mxu0 %v1843
        %1853 = vmatpush.bf16.msra.mxu0 %v1842
        %1854 = vmatpush.bf16.msra.mxu0 %v1841
        %1855 = vmatpush.bf16.msra.mxu0 %v1840
        %1856 = vmatpush.bf16.msra.mxu0 %v1839
        %1857 = vmatpush.bf16.msra.mxu0 %v1838
        %1858 = vmatpush.bf16.msra.mxu0 %v1837
        %1859 = vmatpush.bf16.msra.mxu0 %v1836
        %1860 = vmatmul.bf16.gmra.mxu0 %v1717
        %v1861 = vpop.f32.mrf.mxu0
        %v1862 = vadd.f32 %v1802, %v1861
        %v1863 = vpop.f32.mrf.mxu0
        %1864 = vdwg.mxu0
        %s1865 = scalar_lea.vmem [#allocation20], 1
        %v1866 = vld [vmem:[%s1865] sm:$0x1]
        %s1867 = scalar_lea.vmem %s16, 1
        %v1868 = vld [vmem:[%s1867] sm:$0x1]
        %v1869 = vmul.f32 %v1675, %v808
        %1870 = vadd.xlane.f32.xlu0 %v1869
        %v1871 = vpop.xlane.xlu0 %1870
        %v1872 = vmul.f32 %v1675, %v809
        %1873 = vadd.xlane.f32.xlu0 %v1872
        %v1874 = vpop.xlane.xlu0 %1873
        %v1875 = vmul.f32 %v1871, %v808
        %v1876 = vmul.f32 %v1874, %v809
        %v1877 = vadd.f32 %v1875, %v1876
        %v1878 = vmul.f32 %v1877, 0.015625
        %v1879 = vsub.f32 %v1675, %v1878
        %v1880 = vmul.f32 %v1879, %v1879
        %v1881 = vmul.f32 %v1880, %v808
        %1882 = vadd.xlane.f32.xlu0 %v1881
        %v1883 = vpop.xlane.xlu0 %1882
        %v1884 = vmul.f32 %v1880, %v809
        %1885 = vadd.xlane.f32.xlu0 %v1884
        %v1886 = vpop.xlane.xlu0 %1885
        %v1887 = vmul.f32 %v1883, %v808
        %v1888 = vmul.f32 %v1886, %v809
        %v1889 = vadd.f32 %v1887, %v1888
        %v1890 = vmul.f32 %v1889, 0.015625
        %v1891 = vadd.f32 %v1890, 1e-05
        %v1892 = vrsqrt.pop %v1891
        %v1893 = vmul.f32 %v1892, %v1891
        %v1894 = vmul.f32 %v1893, %v1892
        %v1895 = vmul.f32 0.5, %v1894
        %v1896 = vsub.f32 1.5, %v1895
        %v1897 = vmul.f32 %v1892, %v1896
        %vm1898 = vweird.f32 %v1891
        %vm1899 = vweird.f32 %v1892
        %vm1900 = vmor %vm1898, %vm1899
        %v1901 = vsel %vm1900, %v1892, %v1897
        %v1902 = vmul.f32 %v1879, %v1901
        %v1904 = vperm.slane %v1866, 0
        %v1906 = vmul.f32 %v1902, %v1904
        %v1908 = vperm.slane %v1868, 0
        %v1910 = vadd.f32 %v1906, %v1908
        %v1911 = vadd.f32 %v1779, %v808
        %1913 = vrot.lane.b32.xlu0 %v1911, 64
        %v1914 = vpop.permute.xlu0 %1913
        %1917 = vrot.lane.b32.xlu0 %v1910, 64
        %v1918 = vpop.permute.xlu0 %1917
        %v1920 = vmul.f32 %v1911, %v808
        %v1921 = vmul.f32 %v1914, %v809
        %v1922 = vadd.f32 %v1920, %v1921
        %v1923 = vmul.f32 %v1911, %v809
        %v1924 = vmul.f32 %v1914, %v808
        %v1925 = vsub.f32 %v1923, %v1924
        %v1926 = vmul.f32 %v1910, %v1922
        %v1927 = vmul.f32 %v1918, %v1925
        %v1928 = vadd.f32 %v1926, %v1927
        %v1929 = vadd.f32 %v1928, %v1862
        %v1930 = vsub.f32 0.0, %v1929
        %v1931 = vmul.f32 %v1930, 1.442695
        %v1932 = vpow.pop %v1931
        %v1933 = vadd.f32 %v1932, 1.0
        %v1934 = vrcp.pop %v1933
        %v1935 = vmul.f32 %v1933, %v1934
        %v1936 = vsub.f32 1.0, %v1935
        %v1937 = vmul.f32 %v1934, %v1936
        %v1938 = vadd.f32 %v1934, %v1937
        %vm1939 = vweird.f32 %v1933
        %vm1940 = vweird.f32 %v1934
        %vm1941 = vmor %vm1939, %vm1940
        %v1942 = vsel %vm1941, %v1934, %v1938
        %v1943 = vand.u32 2147483647, %v1933
        %vm1944 = vcmp.eq.f32.partialorder %v1943, 8.507059e+37
        %v1945 = vand.u32 %v1933, 2147483648
        %v1946 = vor.u32 1.1754944e-38, %v1945
        %v1947 = vsel %vm1944, %v1946, %v1942
        %v1948 = vmul.f32 1.0, %v1947
        %v1949 = vmul.f32 %v1929, %v1948
        %s1950 = scalar_lea.vmem [#allocation14], 128
        %v1951 = vld [vmem:[%s1950] sm:$0xf]
        %v1952 = vld [vmem:[%s1950 + $0x4] sm:$0xf]
        %v1953 = vld [vmem:[%s1950 + $0x8] sm:$0xf]
        %v1954 = vld [vmem:[%s1950 + $0xc] sm:$0xf]
        %v1955 = vld [vmem:[%s1950 + $0x10] sm:$0xf]
        %v1956 = vld [vmem:[%s1950 + $0x14] sm:$0xf]
        %v1957 = vld [vmem:[%s1950 + $0x18] sm:$0xf]
        %v1958 = vld [vmem:[%s1950 + $0x1c] sm:$0xf]
        %v1959 = vld [vmem:[%s1950 + $0x20] sm:$0xf]
        %v1960 = vld [vmem:[%s1950 + $0x24] sm:$0xf]
        %v1961 = vld [vmem:[%s1950 + $0x28] sm:$0xf]
        %v1962 = vld [vmem:[%s1950 + $0x2c] sm:$0xf]
        %v1963 = vld [vmem:[%s1950 + $0x30] sm:$0xf]
        %v1964 = vld [vmem:[%s1950 + $0x34] sm:$0xf]
        %v1965 = vld [vmem:[%s1950 + $0x38] sm:$0xf]
        %v1966 = vld [vmem:[%s1950 + $0x3c] sm:$0xf]
        %s1967 = scalar_lea.vmem %s10, 2
        %v1968 = vld [vmem:[%s1967] sm:$0x1]
        %v1969 = vpack.c.bf16 %v1949, %v1949
        %v1971 = vperm.slane %v1968, 0
        %v1989 = vunpack.c.l.b16 %v1951
        %v1990 = vunpack.c.l.b16 %v1952
        %v1991 = vunpack.c.l.b16 %v1953
        %v1992 = vunpack.c.l.b16 %v1954
        %v1993 = vunpack.c.l.b16 %v1955
        %v1994 = vunpack.c.l.b16 %v1956
        %v1995 = vunpack.c.l.b16 %v1957
        %v1996 = vunpack.c.l.b16 %v1958
        %v1997 = vunpack.c.l.b16 %v1959
        %v1998 = vunpack.c.l.b16 %v1960
        %v1999 = vunpack.c.l.b16 %v1961
        %v2000 = vunpack.c.l.b16 %v1962
        %v2001 = vunpack.c.l.b16 %v1963
        %v2002 = vunpack.c.l.b16 %v1964
        %v2003 = vunpack.c.l.b16 %v1965
        %v2004 = vunpack.c.l.b16 %v1966
        %v2005 = vpack.c.b16 %v1990, %v1989
        %v2006 = vpack.c.b16 %v1992, %v1991
        %v2007 = vpack.c.b16 %v1994, %v1993
        %v2008 = vpack.c.b16 %v1996, %v1995
        %v2009 = vpack.c.b16 %v1998, %v1997
        %v2010 = vpack.c.b16 %v2000, %v1999
        %v2011 = vpack.c.b16 %v2002, %v2001
        %v2012 = vpack.c.b16 %v2004, %v2003
        %2021 = vmatpush.bf16.msra.mxu0 %v2012
        %2022 = vmatpush.bf16.msra.mxu0 %v2011
        %2023 = vmatpush.bf16.msra.mxu0 %v2010
        %2024 = vmatpush.bf16.msra.mxu0 %v2009
        %2025 = vmatpush.bf16.msra.mxu0 %v2008
        %2026 = vmatpush.bf16.msra.mxu0 %v2007
        %2027 = vmatpush.bf16.msra.mxu0 %v2006
        %2028 = vmatpush.bf16.msra.mxu0 %v2005
        %2029 = vmatmul.bf16.gmra.mxu0 %v1969
        %v2030 = vpop.f32.mrf.mxu0
        %v2031 = vadd.f32 %v1971, %v2030
        %v2032 = vpop.f32.mrf.mxu0
        %2033 = vdwg.mxu0
        %s2034 = scalar_lea.vmem [#allocation16], 128
        %v2035 = vld [vmem:[%s2034] sm:$0xf]
        %v2036 = vld [vmem:[%s2034 + $0x4] sm:$0xf]
        %v2037 = vld [vmem:[%s2034 + $0x8] sm:$0xf]
        %v2038 = vld [vmem:[%s2034 + $0xc] sm:$0xf]
        %v2039 = vld [vmem:[%s2034 + $0x10] sm:$0xf]
        %v2040 = vld [vmem:[%s2034 + $0x14] sm:$0xf]
        %v2041 = vld [vmem:[%s2034 + $0x18] sm:$0xf]
        %v2042 = vld [vmem:[%s2034 + $0x1c] sm:$0xf]
        %v2043 = vld [vmem:[%s2034 + $0x20] sm:$0xf]
        %v2044 = vld [vmem:[%s2034 + $0x24] sm:$0xf]
        %v2045 = vld [vmem:[%s2034 + $0x28] sm:$0xf]
        %v2046 = vld [vmem:[%s2034 + $0x2c] sm:$0xf]
        %v2047 = vld [vmem:[%s2034 + $0x30] sm:$0xf]
        %v2048 = vld [vmem:[%s2034 + $0x34] sm:$0xf]
        %v2049 = vld [vmem:[%s2034 + $0x38] sm:$0xf]
        %v2050 = vld [vmem:[%s2034 + $0x3c] sm:$0xf]
        %s2051 = scalar_lea.vmem %s12, 2
        %v2052 = vld [vmem:[%s2051] sm:$0x1]
        %v2054 = vperm.slane %v2052, 0
        %v2072 = vunpack.c.l.b16 %v2035
        %v2073 = vunpack.c.l.b16 %v2036
        %v2074 = vunpack.c.l.b16 %v2037
        %v2075 = vunpack.c.l.b16 %v2038
        %v2076 = vunpack.c.l.b16 %v2039
        %v2077 = vunpack.c.l.b16 %v2040
        %v2078 = vunpack.c.l.b16 %v2041
        %v2079 = vunpack.c.l.b16 %v2042
        %v2080 = vunpack.c.l.b16 %v2043
        %v2081 = vunpack.c.l.b16 %v2044
        %v2082 = vunpack.c.l.b16 %v2045
        %v2083 = vunpack.c.l.b16 %v2046
        %v2084 = vunpack.c.l.b16 %v2047
        %v2085 = vunpack.c.l.b16 %v2048
        %v2086 = vunpack.c.l.b16 %v2049
        %v2087 = vunpack.c.l.b16 %v2050
        %v2088 = vpack.c.b16 %v2073, %v2072
        %v2089 = vpack.c.b16 %v2075, %v2074
        %v2090 = vpack.c.b16 %v2077, %v2076
        %v2091 = vpack.c.b16 %v2079, %v2078
        %v2092 = vpack.c.b16 %v2081, %v2080
        %v2093 = vpack.c.b16 %v2083, %v2082
        %v2094 = vpack.c.b16 %v2085, %v2084
        %v2095 = vpack.c.b16 %v2087, %v2086
        %2104 = vmatpush.bf16.msra.mxu0 %v2095
        %2105 = vmatpush.bf16.msra.mxu0 %v2094
        %2106 = vmatpush.bf16.msra.mxu0 %v2093
        %2107 = vmatpush.bf16.msra.mxu0 %v2092
        %2108 = vmatpush.bf16.msra.mxu0 %v2091
        %2109 = vmatpush.bf16.msra.mxu0 %v2090
        %2110 = vmatpush.bf16.msra.mxu0 %v2089
        %2111 = vmatpush.bf16.msra.mxu0 %v2088
        %2112 = vmatmul.bf16.gmra.mxu0 %v1717
        %v2113 = vpop.f32.mrf.mxu0
        %v2114 = vadd.f32 %v2054, %v2113
        %v2115 = vpop.f32.mrf.mxu0
        %2116 = vdwg.mxu0
        %s2117 = scalar_lea.vmem [#allocation17], 128
        %v2118 = vld [vmem:[%s2117] sm:$0xf]
        %v2119 = vld [vmem:[%s2117 + $0x4] sm:$0xf]
        %v2120 = vld [vmem:[%s2117 + $0x8] sm:$0xf]
        %v2121 = vld [vmem:[%s2117 + $0xc] sm:$0xf]
        %v2122 = vld [vmem:[%s2117 + $0x10] sm:$0xf]
        %v2123 = vld [vmem:[%s2117 + $0x14] sm:$0xf]
        %v2124 = vld [vmem:[%s2117 + $0x18] sm:$0xf]
        %v2125 = vld [vmem:[%s2117 + $0x1c] sm:$0xf]
        %v2126 = vld [vmem:[%s2117 + $0x20] sm:$0xf]
        %v2127 = vld [vmem:[%s2117 + $0x24] sm:$0xf]
        %v2128 = vld [vmem:[%s2117 + $0x28] sm:$0xf]
        %v2129 = vld [vmem:[%s2117 + $0x2c] sm:$0xf]
        %v2130 = vld [vmem:[%s2117 + $0x30] sm:$0xf]
        %v2131 = vld [vmem:[%s2117 + $0x34] sm:$0xf]
        %v2132 = vld [vmem:[%s2117 + $0x38] sm:$0xf]
        %v2133 = vld [vmem:[%s2117 + $0x3c] sm:$0xf]
        %s2134 = scalar_lea.vmem [#allocation19], 2
        %v2135 = vld [vmem:[%s2134] sm:$0x1]
        %v2137 = vperm.slane %v2135, 0
        %v2155 = vunpack.c.l.b16 %v2118
        %v2156 = vunpack.c.l.b16 %v2119
        %v2157 = vunpack.c.l.b16 %v2120
        %v2158 = vunpack.c.l.b16 %v2121
        %v2159 = vunpack.c.l.b16 %v2122
        %v2160 = vunpack.c.l.b16 %v2123
        %v2161 = vunpack.c.l.b16 %v2124
        %v2162 = vunpack.c.l.b16 %v2125
        %v2163 = vunpack.c.l.b16 %v2126
        %v2164 = vunpack.c.l.b16 %v2127
        %v2165 = vunpack.c.l.b16 %v2128
        %v2166 = vunpack.c.l.b16 %v2129
        %v2167 = vunpack.c.l.b16 %v2130
        %v2168 = vunpack.c.l.b16 %v2131
        %v2169 = vunpack.c.l.b16 %v2132
        %v2170 = vunpack.c.l.b16 %v2133
        %v2171 = vpack.c.b16 %v2156, %v2155
        %v2172 = vpack.c.b16 %v2158, %v2157
        %v2173 = vpack.c.b16 %v2160, %v2159
        %v2174 = vpack.c.b16 %v2162, %v2161
        %v2175 = vpack.c.b16 %v2164, %v2163
        %v2176 = vpack.c.b16 %v2166, %v2165
        %v2177 = vpack.c.b16 %v2168, %v2167
        %v2178 = vpack.c.b16 %v2170, %v2169
        %2187 = vmatpush.bf16.msra.mxu0 %v2178
        %2188 = vmatpush.bf16.msra.mxu0 %v2177
        %2189 = vmatpush.bf16.msra.mxu0 %v2176
        %2190 = vmatpush.bf16.msra.mxu0 %v2175
        %2191 = vmatpush.bf16.msra.mxu0 %v2174
        %2192 = vmatpush.bf16.msra.mxu0 %v2173
        %2193 = vmatpush.bf16.msra.mxu0 %v2172
        %2194 = vmatpush.bf16.msra.mxu0 %v2171
        %2195 = vmatmul.bf16.gmra.mxu0 %v1717
        %v2196 = vpop.f32.mrf.mxu0
        %v2197 = vadd.f32 %v2137, %v2196
        %v2198 = vpop.f32.mrf.mxu0
        %2199 = vdwg.mxu0
        %s2200 = scalar_lea.vmem [#allocation20], 2
        %v2201 = vld [vmem:[%s2200] sm:$0x1]
        %s2202 = scalar_lea.vmem %s16, 2
        %v2203 = vld [vmem:[%s2202] sm:$0x1]
        %v2204 = vmul.f32 %v2031, %v808
        %2205 = vadd.xlane.f32.xlu0 %v2204
        %v2206 = vpop.xlane.xlu0 %2205
        %v2207 = vmul.f32 %v2031, %v809
        %2208 = vadd.xlane.f32.xlu0 %v2207
        %v2209 = vpop.xlane.xlu0 %2208
        %v2210 = vmul.f32 %v2206, %v808
        %v2211 = vmul.f32 %v2209, %v809
        %v2212 = vadd.f32 %v2210, %v2211
        %v2213 = vmul.f32 %v2212, 0.015625
        %v2214 = vsub.f32 %v2031, %v2213
        %v2215 = vmul.f32 %v2214, %v2214
        %v2216 = vmul.f32 %v2215, %v808
        %2217 = vadd.xlane.f32.xlu0 %v2216
        %v2218 = vpop.xlane.xlu0 %2217
        %v2219 = vmul.f32 %v2215, %v809
        %2220 = vadd.xlane.f32.xlu0 %v2219
        %v2221 = vpop.xlane.xlu0 %2220
        %v2222 = vmul.f32 %v2218, %v808
        %v2223 = vmul.f32 %v2221, %v809
        %v2224 = vadd.f32 %v2222, %v2223
        %v2225 = vmul.f32 %v2224, 0.015625
        %v2226 = vadd.f32 %v2225, 1e-05
        %v2227 = vrsqrt.pop %v2226
        %v2228 = vmul.f32 %v2227, %v2226
        %v2229 = vmul.f32 %v2228, %v2227
        %v2230 = vmul.f32 0.5, %v2229
        %v2231 = vsub.f32 1.5, %v2230
        %v2232 = vmul.f32 %v2227, %v2231
        %vm2233 = vweird.f32 %v2226
        %vm2234 = vweird.f32 %v2227
        %vm2235 = vmor %vm2233, %vm2234
        %v2236 = vsel %vm2235, %v2227, %v2232
        %v2237 = vmul.f32 %v2214, %v2236
        %v2239 = vperm.slane %v2201, 0
        %v2241 = vmul.f32 %v2237, %v2239
        %v2243 = vperm.slane %v2203, 0
        %v2245 = vadd.f32 %v2241, %v2243
        %v2246 = vadd.f32 %v2114, %v808
        %2248 = vrot.lane.b32.xlu0 %v2246, 64
        %v2249 = vpop.permute.xlu0 %2248
        %2252 = vrot.lane.b32.xlu0 %v2245, 64
        %v2253 = vpop.permute.xlu0 %2252
        %v2255 = vmul.f32 %v2246, %v808
        %v2256 = vmul.f32 %v2249, %v809
        %v2257 = vadd.f32 %v2255, %v2256
        %v2258 = vmul.f32 %v2246, %v809
        %v2259 = vmul.f32 %v2249, %v808
        %v2260 = vsub.f32 %v2258, %v2259
        %v2261 = vmul.f32 %v2245, %v2257
        %v2262 = vmul.f32 %v2253, %v2260
        %v2263 = vadd.f32 %v2261, %v2262
        %v2264 = vadd.f32 %v2263, %v2197
        %v2265 = vsub.f32 0.0, %v2264
        %v2266 = vmul.f32 %v2265, 1.442695
        %v2267 = vpow.pop %v2266
        %v2268 = vadd.f32 %v2267, 1.0
        %v2269 = vrcp.pop %v2268
        %v2270 = vmul.f32 %v2268, %v2269
        %v2271 = vsub.f32 1.0, %v2270
        %v2272 = vmul.f32 %v2269, %v2271
        %v2273 = vadd.f32 %v2269, %v2272
        %vm2274 = vweird.f32 %v2268
        %vm2275 = vweird.f32 %v2269
        %vm2276 = vmor %vm2274, %vm2275
        %v2277 = vsel %vm2276, %v2269, %v2273
        %v2278 = vand.u32 2147483647, %v2268
        %vm2279 = vcmp.eq.f32.partialorder %v2278, 8.507059e+37
        %v2280 = vand.u32 %v2268, 2147483648
        %v2281 = vor.u32 1.1754944e-38, %v2280
        %v2282 = vsel %vm2279, %v2281, %v2277
        %v2283 = vmul.f32 1.0, %v2282
        %v2284 = vmul.f32 %v2264, %v2283
        %s2285 = scalar_lea.vmem [#allocation14], 192
        %v2286 = vld [vmem:[%s2285] sm:$0xf]
        %v2287 = vld [vmem:[%s2285 + $0x4] sm:$0xf]
        %v2288 = vld [vmem:[%s2285 + $0x8] sm:$0xf]
        %v2289 = vld [vmem:[%s2285 + $0xc] sm:$0xf]
        %v2290 = vld [vmem:[%s2285 + $0x10] sm:$0xf]
        %v2291 = vld [vmem:[%s2285 + $0x14] sm:$0xf]
        %v2292 = vld [vmem:[%s2285 + $0x18] sm:$0xf]
        %v2293 = vld [vmem:[%s2285 + $0x1c] sm:$0xf]
        %v2294 = vld [vmem:[%s2285 + $0x20] sm:$0xf]
        %v2295 = vld [vmem:[%s2285 + $0x24] sm:$0xf]
        %v2296 = vld [vmem:[%s2285 + $0x28] sm:$0xf]
        %v2297 = vld [vmem:[%s2285 + $0x2c] sm:$0xf]
        %v2298 = vld [vmem:[%s2285 + $0x30] sm:$0xf]
        %v2299 = vld [vmem:[%s2285 + $0x34] sm:$0xf]
        %v2300 = vld [vmem:[%s2285 + $0x38] sm:$0xf]
        %v2301 = vld [vmem:[%s2285 + $0x3c] sm:$0xf]
        %s2302 = scalar_lea.vmem %s10, 3
        %v2303 = vld [vmem:[%s2302] sm:$0x1]
        %v2304 = vpack.c.bf16 %v2284, %v2284
        %v2306 = vperm.slane %v2303, 0
        %v2324 = vunpack.c.l.b16 %v2286
        %v2325 = vunpack.c.l.b16 %v2287
        %v2326 = vunpack.c.l.b16 %v2288
        %v2327 = vunpack.c.l.b16 %v2289
        %v2328 = vunpack.c.l.b16 %v2290
        %v2329 = vunpack.c.l.b16 %v2291
        %v2330 = vunpack.c.l.b16 %v2292
        %v2331 = vunpack.c.l.b16 %v2293
        %v2332 = vunpack.c.l.b16 %v2294
        %v2333 = vunpack.c.l.b16 %v2295
        %v2334 = vunpack.c.l.b16 %v2296
        %v2335 = vunpack.c.l.b16 %v2297
        %v2336 = vunpack.c.l.b16 %v2298
        %v2337 = vunpack.c.l.b16 %v2299
        %v2338 = vunpack.c.l.b16 %v2300
        %v2339 = vunpack.c.l.b16 %v2301
        %v2340 = vpack.c.b16 %v2325, %v2324
        %v2341 = vpack.c.b16 %v2327, %v2326
        %v2342 = vpack.c.b16 %v2329, %v2328
        %v2343 = vpack.c.b16 %v2331, %v2330
        %v2344 = vpack.c.b16 %v2333, %v2332
        %v2345 = vpack.c.b16 %v2335, %v2334
        %v2346 = vpack.c.b16 %v2337, %v2336
        %v2347 = vpack.c.b16 %v2339, %v2338
        %2356 = vmatpush.bf16.msra.mxu0 %v2347
        %2357 = vmatpush.bf16.msra.mxu0 %v2346
        %2358 = vmatpush.bf16.msra.mxu0 %v2345
        %2359 = vmatpush.bf16.msra.mxu0 %v2344
        %2360 = vmatpush.bf16.msra.mxu0 %v2343
        %2361 = vmatpush.bf16.msra.mxu0 %v2342
        %2362 = vmatpush.bf16.msra.mxu0 %v2341
        %2363 = vmatpush.bf16.msra.mxu0 %v2340
        %2364 = vmatmul.bf16.gmra.mxu0 %v2304
        %v2365 = vpop.f32.mrf.mxu0
        %v2366 = vadd.f32 %v2306, %v2365
        %v2367 = vpop.f32.mrf.mxu0
        %2368 = vdwg.mxu0
        %v2369 = vadd.f32 %v1675, %v2366
        %s2370 = scalar_lea.vmem [#allocation16], 192
        %v2371 = vld [vmem:[%s2370] sm:$0xf]
        %v2372 = vld [vmem:[%s2370 + $0x4] sm:$0xf]
        %v2373 = vld [vmem:[%s2370 + $0x8] sm:$0xf]
        %v2374 = vld [vmem:[%s2370 + $0xc] sm:$0xf]
        %v2375 = vld [vmem:[%s2370 + $0x10] sm:$0xf]
        %v2376 = vld [vmem:[%s2370 + $0x14] sm:$0xf]
        %v2377 = vld [vmem:[%s2370 + $0x18] sm:$0xf]
        %v2378 = vld [vmem:[%s2370 + $0x1c] sm:$0xf]
        %v2379 = vld [vmem:[%s2370 + $0x20] sm:$0xf]
        %v2380 = vld [vmem:[%s2370 + $0x24] sm:$0xf]
        %v2381 = vld [vmem:[%s2370 + $0x28] sm:$0xf]
        %v2382 = vld [vmem:[%s2370 + $0x2c] sm:$0xf]
        %v2383 = vld [vmem:[%s2370 + $0x30] sm:$0xf]
        %v2384 = vld [vmem:[%s2370 + $0x34] sm:$0xf]
        %v2385 = vld [vmem:[%s2370 + $0x38] sm:$0xf]
        %v2386 = vld [vmem:[%s2370 + $0x3c] sm:$0xf]
        %s2387 = scalar_lea.vmem %s12, 3
        %v2388 = vld [vmem:[%s2387] sm:$0x1]
        %v2390 = vperm.slane %v2388, 0
        %v2408 = vunpack.c.l.b16 %v2371
        %v2409 = vunpack.c.l.b16 %v2372
        %v2410 = vunpack.c.l.b16 %v2373
        %v2411 = vunpack.c.l.b16 %v2374
        %v2412 = vunpack.c.l.b16 %v2375
        %v2413 = vunpack.c.l.b16 %v2376
        %v2414 = vunpack.c.l.b16 %v2377
        %v2415 = vunpack.c.l.b16 %v2378
        %v2416 = vunpack.c.l.b16 %v2379
        %v2417 = vunpack.c.l.b16 %v2380
        %v2418 = vunpack.c.l.b16 %v2381
        %v2419 = vunpack.c.l.b16 %v2382
        %v2420 = vunpack.c.l.b16 %v2383
        %v2421 = vunpack.c.l.b16 %v2384
        %v2422 = vunpack.c.l.b16 %v2385
        %v2423 = vunpack.c.l.b16 %v2386
        %v2424 = vpack.c.b16 %v2409, %v2408
        %v2425 = vpack.c.b16 %v2411, %v2410
        %v2426 = vpack.c.b16 %v2413, %v2412
        %v2427 = vpack.c.b16 %v2415, %v2414
        %v2428 = vpack.c.b16 %v2417, %v2416
        %v2429 = vpack.c.b16 %v2419, %v2418
        %v2430 = vpack.c.b16 %v2421, %v2420
        %v2431 = vpack.c.b16 %v2423, %v2422
        %2440 = vmatpush.bf16.msra.mxu0 %v2431
        %2441 = vmatpush.bf16.msra.mxu0 %v2430
        %2442 = vmatpush.bf16.msra.mxu0 %v2429
        %2443 = vmatpush.bf16.msra.mxu0 %v2428
        %2444 = vmatpush.bf16.msra.mxu0 %v2427
        %2445 = vmatpush.bf16.msra.mxu0 %v2426
        %2446 = vmatpush.bf16.msra.mxu0 %v2425
        %2447 = vmatpush.bf16.msra.mxu0 %v2424
        %2448 = vmatmul.bf16.gmra.mxu0 %v1717
        %v2449 = vpop.f32.mrf.mxu0
        %v2450 = vadd.f32 %v2390, %v2449
        %v2451 = vpop.f32.mrf.mxu0
        %2452 = vdwg.mxu0
        %s2453 = scalar_lea.vmem [#allocation17], 192
        %v2454 = vld [vmem:[%s2453] sm:$0xf]
        %v2455 = vld [vmem:[%s2453 + $0x4] sm:$0xf]
        %v2456 = vld [vmem:[%s2453 + $0x8] sm:$0xf]
        %v2457 = vld [vmem:[%s2453 + $0xc] sm:$0xf]
        %v2458 = vld [vmem:[%s2453 + $0x10] sm:$0xf]
        %v2459 = vld [vmem:[%s2453 + $0x14] sm:$0xf]
        %v2460 = vld [vmem:[%s2453 + $0x18] sm:$0xf]
        %v2461 = vld [vmem:[%s2453 + $0x1c] sm:$0xf]
        %v2462 = vld [vmem:[%s2453 + $0x20] sm:$0xf]
        %v2463 = vld [vmem:[%s2453 + $0x24] sm:$0xf]
        %v2464 = vld [vmem:[%s2453 + $0x28] sm:$0xf]
        %v2465 = vld [vmem:[%s2453 + $0x2c] sm:$0xf]
        %v2466 = vld [vmem:[%s2453 + $0x30] sm:$0xf]
        %v2467 = vld [vmem:[%s2453 + $0x34] sm:$0xf]
        %v2468 = vld [vmem:[%s2453 + $0x38] sm:$0xf]
        %v2469 = vld [vmem:[%s2453 + $0x3c] sm:$0xf]
        %s2470 = scalar_lea.vmem [#allocation19], 3
        %v2471 = vld [vmem:[%s2470] sm:$0x1]
        %v2473 = vperm.slane %v2471, 0
        %v2491 = vunpack.c.l.b16 %v2454
        %v2492 = vunpack.c.l.b16 %v2455
        %v2493 = vunpack.c.l.b16 %v2456
        %v2494 = vunpack.c.l.b16 %v2457
        %v2495 = vunpack.c.l.b16 %v2458
        %v2496 = vunpack.c.l.b16 %v2459
        %v2497 = vunpack.c.l.b16 %v2460
        %v2498 = vunpack.c.l.b16 %v2461
        %v2499 = vunpack.c.l.b16 %v2462
        %v2500 = vunpack.c.l.b16 %v2463
        %v2501 = vunpack.c.l.b16 %v2464
        %v2502 = vunpack.c.l.b16 %v2465
        %v2503 = vunpack.c.l.b16 %v2466
        %v2504 = vunpack.c.l.b16 %v2467
        %v2505 = vunpack.c.l.b16 %v2468
        %v2506 = vunpack.c.l.b16 %v2469
        %v2507 = vpack.c.b16 %v2492, %v2491
        %v2508 = vpack.c.b16 %v2494, %v2493
        %v2509 = vpack.c.b16 %v2496, %v2495
        %v2510 = vpack.c.b16 %v2498, %v2497
        %v2511 = vpack.c.b16 %v2500, %v2499
        %v2512 = vpack.c.b16 %v2502, %v2501
        %v2513 = vpack.c.b16 %v2504, %v2503
        %v2514 = vpack.c.b16 %v2506, %v2505
        %2523 = vmatpush.bf16.msra.mxu0 %v2514
        %2524 = vmatpush.bf16.msra.mxu0 %v2513
        %2525 = vmatpush.bf16.msra.mxu0 %v2512
        %2526 = vmatpush.bf16.msra.mxu0 %v2511
        %2527 = vmatpush.bf16.msra.mxu0 %v2510
        %2528 = vmatpush.bf16.msra.mxu0 %v2509
        %2529 = vmatpush.bf16.msra.mxu0 %v2508
        %2530 = vmatpush.bf16.msra.mxu0 %v2507
        %2531 = vmatmul.bf16.gmra.mxu0 %v1717
        %v2532 = vpop.f32.mrf.mxu0
        %v2533 = vadd.f32 %v2473, %v2532
        %v2534 = vpop.f32.mrf.mxu0
        %2535 = vdwg.mxu0
        %s2536 = scalar_lea.vmem [#allocation20], 3
        %v2537 = vld [vmem:[%s2536] sm:$0x1]
        %s2538 = scalar_lea.vmem %s16, 3
        %v2539 = vld [vmem:[%s2538] sm:$0x1]
        %v2540 = vmul.f32 %v2369, %v808
        %2541 = vadd.xlane.f32.xlu0 %v2540
        %v2542 = vpop.xlane.xlu0 %2541
        %v2543 = vmul.f32 %v2369, %v809
        %2544 = vadd.xlane.f32.xlu0 %v2543
        %v2545 = vpop.xlane.xlu0 %2544
        %v2546 = vmul.f32 %v2542, %v808
        %v2547 = vmul.f32 %v2545, %v809
        %v2548 = vadd.f32 %v2546, %v2547
        %v2549 = vmul.f32 %v2548, 0.015625
        %v2550 = vsub.f32 %v2369, %v2549
        %v2551 = vmul.f32 %v2550, %v2550
        %v2552 = vmul.f32 %v2551, %v808
        %2553 = vadd.xlane.f32.xlu0 %v2552
        %v2554 = vpop.xlane.xlu0 %2553
        %v2555 = vmul.f32 %v2551, %v809
        %2556 = vadd.xlane.f32.xlu0 %v2555
        %v2557 = vpop.xlane.xlu0 %2556
        %v2558 = vmul.f32 %v2554, %v808
        %v2559 = vmul.f32 %v2557, %v809
        %v2560 = vadd.f32 %v2558, %v2559
        %v2561 = vmul.f32 %v2560, 0.015625
        %v2562 = vadd.f32 %v2561, 1e-05
        %v2563 = vrsqrt.pop %v2562
        %v2564 = vmul.f32 %v2563, %v2562
        %v2565 = vmul.f32 %v2564, %v2563
        %v2566 = vmul.f32 0.5, %v2565
        %v2567 = vsub.f32 1.5, %v2566
        %v2568 = vmul.f32 %v2563, %v2567
        %vm2569 = vweird.f32 %v2562
        %vm2570 = vweird.f32 %v2563
        %vm2571 = vmor %vm2569, %vm2570
        %v2572 = vsel %vm2571, %v2563, %v2568
        %v2573 = vmul.f32 %v2550, %v2572
        %v2575 = vperm.slane %v2537, 0
        %v2577 = vmul.f32 %v2573, %v2575
        %v2579 = vperm.slane %v2539, 0
        %v2581 = vadd.f32 %v2577, %v2579
        %v2582 = vadd.f32 %v2450, %v808
        %2584 = vrot.lane.b32.xlu0 %v2582, 64
        %v2585 = vpop.permute.xlu0 %2584
        %2588 = vrot.lane.b32.xlu0 %v2581, 64
        %v2589 = vpop.permute.xlu0 %2588
        %v2591 = vmul.f32 %v2582, %v808
        %v2592 = vmul.f32 %v2585, %v809
        %v2593 = vadd.f32 %v2591, %v2592
        %v2594 = vmul.f32 %v2582, %v809
        %v2595 = vmul.f32 %v2585, %v808
        %v2596 = vsub.f32 %v2594, %v2595
        %v2597 = vmul.f32 %v2581, %v2593
        %v2598 = vmul.f32 %v2589, %v2596
        %v2599 = vadd.f32 %v2597, %v2598
        %v2600 = vadd.f32 %v2599, %v2533
        %v2601 = vsub.f32 0.0, %v2600
        %v2602 = vmul.f32 %v2601, 1.442695
        %v2603 = vpow.pop %v2602
        %v2604 = vadd.f32 %v2603, 1.0
        %v2605 = vrcp.pop %v2604
        %v2606 = vmul.f32 %v2604, %v2605
        %v2607 = vsub.f32 1.0, %v2606
        %v2608 = vmul.f32 %v2605, %v2607
        %v2609 = vadd.f32 %v2605, %v2608
        %vm2610 = vweird.f32 %v2604
        %vm2611 = vweird.f32 %v2605
        %vm2612 = vmor %vm2610, %vm2611
        %v2613 = vsel %vm2612, %v2605, %v2609
        %v2614 = vand.u32 2147483647, %v2604
        %vm2615 = vcmp.eq.f32.partialorder %v2614, 8.507059e+37
        %v2616 = vand.u32 %v2604, 2147483648
        %v2617 = vor.u32 1.1754944e-38, %v2616
        %v2618 = vsel %vm2615, %v2617, %v2613
        %v2619 = vmul.f32 1.0, %v2618
        %v2620 = vmul.f32 %v2600, %v2619
        %s2621 = scalar_lea.vmem [#allocation14], 256
        %v2622 = vld [vmem:[%s2621] sm:$0xf]
        %v2623 = vld [vmem:[%s2621 + $0x4] sm:$0xf]
        %v2624 = vld [vmem:[%s2621 + $0x8] sm:$0xf]
        %v2625 = vld [vmem:[%s2621 + $0xc] sm:$0xf]
        %v2626 = vld [vmem:[%s2621 + $0x10] sm:$0xf]
        %v2627 = vld [vmem:[%s2621 + $0x14] sm:$0xf]
        %v2628 = vld [vmem:[%s2621 + $0x18] sm:$0xf]
        %v2629 = vld [vmem:[%s2621 + $0x1c] sm:$0xf]
        %v2630 = vld [vmem:[%s2621 + $0x20] sm:$0xf]
        %v2631 = vld [vmem:[%s2621 + $0x24] sm:$0xf]
        %v2632 = vld [vmem:[%s2621 + $0x28] sm:$0xf]
        %v2633 = vld [vmem:[%s2621 + $0x2c] sm:$0xf]
        %v2634 = vld [vmem:[%s2621 + $0x30] sm:$0xf]
        %v2635 = vld [vmem:[%s2621 + $0x34] sm:$0xf]
        %v2636 = vld [vmem:[%s2621 + $0x38] sm:$0xf]
        %v2637 = vld [vmem:[%s2621 + $0x3c] sm:$0xf]
        %s2638 = scalar_lea.vmem %s10, 4
        %v2639 = vld [vmem:[%s2638] sm:$0x1]
        %v2640 = vpack.c.bf16 %v2620, %v2620
        %v2642 = vperm.slane %v2639, 0
        %v2660 = vunpack.c.l.b16 %v2622
        %v2661 = vunpack.c.l.b16 %v2623
        %v2662 = vunpack.c.l.b16 %v2624
        %v2663 = vunpack.c.l.b16 %v2625
        %v2664 = vunpack.c.l.b16 %v2626
        %v2665 = vunpack.c.l.b16 %v2627
        %v2666 = vunpack.c.l.b16 %v2628
        %v2667 = vunpack.c.l.b16 %v2629
        %v2668 = vunpack.c.l.b16 %v2630
        %v2669 = vunpack.c.l.b16 %v2631
        %v2670 = vunpack.c.l.b16 %v2632
        %v2671 = vunpack.c.l.b16 %v2633
        %v2672 = vunpack.c.l.b16 %v2634
        %v2673 = vunpack.c.l.b16 %v2635
        %v2674 = vunpack.c.l.b16 %v2636
        %v2675 = vunpack.c.l.b16 %v2637
        %v2676 = vpack.c.b16 %v2661, %v2660
        %v2677 = vpack.c.b16 %v2663, %v2662
        %v2678 = vpack.c.b16 %v2665, %v2664
        %v2679 = vpack.c.b16 %v2667, %v2666
        %v2680 = vpack.c.b16 %v2669, %v2668
        %v2681 = vpack.c.b16 %v2671, %v2670
        %v2682 = vpack.c.b16 %v2673, %v2672
        %v2683 = vpack.c.b16 %v2675, %v2674
        %2692 = vmatpush.bf16.msra.mxu0 %v2683
        %2693 = vmatpush.bf16.msra.mxu0 %v2682
        %2694 = vmatpush.bf16.msra.mxu0 %v2681
        %2695 = vmatpush.bf16.msra.mxu0 %v2680
        %2696 = vmatpush.bf16.msra.mxu0 %v2679
        %2697 = vmatpush.bf16.msra.mxu0 %v2678
        %2698 = vmatpush.bf16.msra.mxu0 %v2677
        %2699 = vmatpush.bf16.msra.mxu0 %v2676
        %2700 = vmatmul.bf16.gmra.mxu0 %v2640
        %v2701 = vpop.f32.mrf.mxu0
        %v2702 = vadd.f32 %v2642, %v2701
        %v2703 = vpop.f32.mrf.mxu0
        %2704 = vdwg.mxu0
        %s2705 = scalar_lea.vmem [#allocation16], 256
        %v2706 = vld [vmem:[%s2705] sm:$0xf]
        %v2707 = vld [vmem:[%s2705 + $0x4] sm:$0xf]
        %v2708 = vld [vmem:[%s2705 + $0x8] sm:$0xf]
        %v2709 = vld [vmem:[%s2705 + $0xc] sm:$0xf]
        %v2710 = vld [vmem:[%s2705 + $0x10] sm:$0xf]
        %v2711 = vld [vmem:[%s2705 + $0x14] sm:$0xf]
        %v2712 = vld [vmem:[%s2705 + $0x18] sm:$0xf]
        %v2713 = vld [vmem:[%s2705 + $0x1c] sm:$0xf]
        %v2714 = vld [vmem:[%s2705 + $0x20] sm:$0xf]
        %v2715 = vld [vmem:[%s2705 + $0x24] sm:$0xf]
        %v2716 = vld [vmem:[%s2705 + $0x28] sm:$0xf]
        %v2717 = vld [vmem:[%s2705 + $0x2c] sm:$0xf]
        %v2718 = vld [vmem:[%s2705 + $0x30] sm:$0xf]
        %v2719 = vld [vmem:[%s2705 + $0x34] sm:$0xf]
        %v2720 = vld [vmem:[%s2705 + $0x38] sm:$0xf]
        %v2721 = vld [vmem:[%s2705 + $0x3c] sm:$0xf]
        %s2722 = scalar_lea.vmem %s12, 4
        %v2723 = vld [vmem:[%s2722] sm:$0x1]
        %v2725 = vperm.slane %v2723, 0
        %v2743 = vunpack.c.l.b16 %v2706
        %v2744 = vunpack.c.l.b16 %v2707
        %v2745 = vunpack.c.l.b16 %v2708
        %v2746 = vunpack.c.l.b16 %v2709
        %v2747 = vunpack.c.l.b16 %v2710
        %v2748 = vunpack.c.l.b16 %v2711
        %v2749 = vunpack.c.l.b16 %v2712
        %v2750 = vunpack.c.l.b16 %v2713
        %v2751 = vunpack.c.l.b16 %v2714
        %v2752 = vunpack.c.l.b16 %v2715
        %v2753 = vunpack.c.l.b16 %v2716
        %v2754 = vunpack.c.l.b16 %v2717
        %v2755 = vunpack.c.l.b16 %v2718
        %v2756 = vunpack.c.l.b16 %v2719
        %v2757 = vunpack.c.l.b16 %v2720
        %v2758 = vunpack.c.l.b16 %v2721
        %v2759 = vpack.c.b16 %v2744, %v2743
        %v2760 = vpack.c.b16 %v2746, %v2745
        %v2761 = vpack.c.b16 %v2748, %v2747
        %v2762 = vpack.c.b16 %v2750, %v2749
        %v2763 = vpack.c.b16 %v2752, %v2751
        %v2764 = vpack.c.b16 %v2754, %v2753
        %v2765 = vpack.c.b16 %v2756, %v2755
        %v2766 = vpack.c.b16 %v2758, %v2757
        %2775 = vmatpush.bf16.msra.mxu0 %v2766
        %2776 = vmatpush.bf16.msra.mxu0 %v2765
        %2777 = vmatpush.bf16.msra.mxu0 %v2764
        %2778 = vmatpush.bf16.msra.mxu0 %v2763
        %2779 = vmatpush.bf16.msra.mxu0 %v2762
        %2780 = vmatpush.bf16.msra.mxu0 %v2761
        %2781 = vmatpush.bf16.msra.mxu0 %v2760
        %2782 = vmatpush.bf16.msra.mxu0 %v2759
        %2783 = vmatmul.bf16.gmra.mxu0 %v1717
        %v2784 = vpop.f32.mrf.mxu0
        %v2785 = vadd.f32 %v2725, %v2784
        %v2786 = vpop.f32.mrf.mxu0
        %2787 = vdwg.mxu0
        %s2788 = scalar_lea.vmem [#allocation17], 256
        %v2789 = vld [vmem:[%s2788] sm:$0xf]
        %v2790 = vld [vmem:[%s2788 + $0x4] sm:$0xf]
        %v2791 = vld [vmem:[%s2788 + $0x8] sm:$0xf]
        %v2792 = vld [vmem:[%s2788 + $0xc] sm:$0xf]
        %v2793 = vld [vmem:[%s2788 + $0x10] sm:$0xf]
        %v2794 = vld [vmem:[%s2788 + $0x14] sm:$0xf]
        %v2795 = vld [vmem:[%s2788 + $0x18] sm:$0xf]
        %v2796 = vld [vmem:[%s2788 + $0x1c] sm:$0xf]
        %v2797 = vld [vmem:[%s2788 + $0x20] sm:$0xf]
        %v2798 = vld [vmem:[%s2788 + $0x24] sm:$0xf]
        %v2799 = vld [vmem:[%s2788 + $0x28] sm:$0xf]
        %v2800 = vld [vmem:[%s2788 + $0x2c] sm:$0xf]
        %v2801 = vld [vmem:[%s2788 + $0x30] sm:$0xf]
        %v2802 = vld [vmem:[%s2788 + $0x34] sm:$0xf]
        %v2803 = vld [vmem:[%s2788 + $0x38] sm:$0xf]
        %v2804 = vld [vmem:[%s2788 + $0x3c] sm:$0xf]
        %s2805 = scalar_lea.vmem [#allocation19], 4
        %v2806 = vld [vmem:[%s2805] sm:$0x1]
        %v2808 = vperm.slane %v2806, 0
        %v2826 = vunpack.c.l.b16 %v2789
        %v2827 = vunpack.c.l.b16 %v2790
        %v2828 = vunpack.c.l.b16 %v2791
        %v2829 = vunpack.c.l.b16 %v2792
        %v2830 = vunpack.c.l.b16 %v2793
        %v2831 = vunpack.c.l.b16 %v2794
        %v2832 = vunpack.c.l.b16 %v2795
        %v2833 = vunpack.c.l.b16 %v2796
        %v2834 = vunpack.c.l.b16 %v2797
        %v2835 = vunpack.c.l.b16 %v2798
        %v2836 = vunpack.c.l.b16 %v2799
        %v2837 = vunpack.c.l.b16 %v2800
        %v2838 = vunpack.c.l.b16 %v2801
        %v2839 = vunpack.c.l.b16 %v2802
        %v2840 = vunpack.c.l.b16 %v2803
        %v2841 = vunpack.c.l.b16 %v2804
        %v2842 = vpack.c.b16 %v2827, %v2826
        %v2843 = vpack.c.b16 %v2829, %v2828
        %v2844 = vpack.c.b16 %v2831, %v2830
        %v2845 = vpack.c.b16 %v2833, %v2832
        %v2846 = vpack.c.b16 %v2835, %v2834
        %v2847 = vpack.c.b16 %v2837, %v2836
        %v2848 = vpack.c.b16 %v2839, %v2838
        %v2849 = vpack.c.b16 %v2841, %v2840
        %2858 = vmatpush.bf16.msra.mxu0 %v2849
        %2859 = vmatpush.bf16.msra.mxu0 %v2848
        %2860 = vmatpush.bf16.msra.mxu0 %v2847
        %2861 = vmatpush.bf16.msra.mxu0 %v2846
        %2862 = vmatpush.bf16.msra.mxu0 %v2845
        %2863 = vmatpush.bf16.msra.mxu0 %v2844
        %2864 = vmatpush.bf16.msra.mxu0 %v2843
        %2865 = vmatpush.bf16.msra.mxu0 %v2842
        %2866 = vmatmul.bf16.gmra.mxu0 %v1717
        %v2867 = vpop.f32.mrf.mxu0
        %v2868 = vadd.f32 %v2808, %v2867
        %v2869 = vpop.f32.mrf.mxu0
        %2870 = vdwg.mxu0
        %s2871 = scalar_lea.vmem [#allocation20], 4
        %v2872 = vld [vmem:[%s2871] sm:$0x1]
        %s2873 = scalar_lea.vmem %s16, 4
        %v2874 = vld [vmem:[%s2873] sm:$0x1]
        %v2875 = vmul.f32 %v2702, %v808
        %2876 = vadd.xlane.f32.xlu0 %v2875
        %v2877 = vpop.xlane.xlu0 %2876
        %v2878 = vmul.f32 %v2702, %v809
        %2879 = vadd.xlane.f32.xlu0 %v2878
        %v2880 = vpop.xlane.xlu0 %2879
        %v2881 = vmul.f32 %v2877, %v808
        %v2882 = vmul.f32 %v2880, %v809
        %v2883 = vadd.f32 %v2881, %v2882
        %v2884 = vmul.f32 %v2883, 0.015625
        %v2885 = vsub.f32 %v2702, %v2884
        %v2886 = vmul.f32 %v2885, %v2885
        %v2887 = vmul.f32 %v2886, %v808
        %2888 = vadd.xlane.f32.xlu0 %v2887
        %v2889 = vpop.xlane.xlu0 %2888
        %v2890 = vmul.f32 %v2886, %v809
        %2891 = vadd.xlane.f32.xlu0 %v2890
        %v2892 = vpop.xlane.xlu0 %2891
        %v2893 = vmul.f32 %v2889, %v808
        %v2894 = vmul.f32 %v2892, %v809
        %v2895 = vadd.f32 %v2893, %v2894
        %v2896 = vmul.f32 %v2895, 0.015625
        %v2897 = vadd.f32 %v2896, 1e-05
        %v2898 = vrsqrt.pop %v2897
        %v2899 = vmul.f32 %v2898, %v2897
        %v2900 = vmul.f32 %v2899, %v2898
        %v2901 = vmul.f32 0.5, %v2900
        %v2902 = vsub.f32 1.5, %v2901
        %v2903 = vmul.f32 %v2898, %v2902
        %vm2904 = vweird.f32 %v2897
        %vm2905 = vweird.f32 %v2898
        %vm2906 = vmor %vm2904, %vm2905
        %v2907 = vsel %vm2906, %v2898, %v2903
        %v2908 = vmul.f32 %v2885, %v2907
        %v2910 = vperm.slane %v2872, 0
        %v2912 = vmul.f32 %v2908, %v2910
        %v2914 = vperm.slane %v2874, 0
        %v2916 = vadd.f32 %v2912, %v2914
        %v2917 = vadd.f32 %v2785, %v808
        %2919 = vrot.lane.b32.xlu0 %v2917, 64
        %v2920 = vpop.permute.xlu0 %2919
        %2923 = vrot.lane.b32.xlu0 %v2916, 64
        %v2924 = vpop.permute.xlu0 %2923
        %v2926 = vmul.f32 %v2917, %v808
        %v2927 = vmul.f32 %v2920, %v809
        %v2928 = vadd.f32 %v2926, %v2927
        %v2929 = vmul.f32 %v2917, %v809
        %v2930 = vmul.f32 %v2920, %v808
        %v2931 = vsub.f32 %v2929, %v2930
        %v2932 = vmul.f32 %v2916, %v2928
        %v2933 = vmul.f32 %v2924, %v2931
        %v2934 = vadd.f32 %v2932, %v2933
        %v2935 = vadd.f32 %v2934, %v2868
        %v2936 = vsub.f32 0.0, %v2935
        %v2937 = vmul.f32 %v2936, 1.442695
        %v2938 = vpow.pop %v2937
        %v2939 = vadd.f32 %v2938, 1.0
        %v2940 = vrcp.pop %v2939
        %v2941 = vmul.f32 %v2939, %v2940
        %v2942 = vsub.f32 1.0, %v2941
        %v2943 = vmul.f32 %v2940, %v2942
        %v2944 = vadd.f32 %v2940, %v2943
        %vm2945 = vweird.f32 %v2939
        %vm2946 = vweird.f32 %v2940
        %vm2947 = vmor %vm2945, %vm2946
        %v2948 = vsel %vm2947, %v2940, %v2944
        %v2949 = vand.u32 2147483647, %v2939
        %vm2950 = vcmp.eq.f32.partialorder %v2949, 8.507059e+37
        %v2951 = vand.u32 %v2939, 2147483648
        %v2952 = vor.u32 1.1754944e-38, %v2951
        %v2953 = vsel %vm2950, %v2952, %v2948
        %v2954 = vmul.f32 1.0, %v2953
        %v2955 = vmul.f32 %v2935, %v2954
        %s2956 = scalar_lea.vmem [#allocation14], 320
        %v2957 = vld [vmem:[%s2956] sm:$0xf]
        %v2958 = vld [vmem:[%s2956 + $0x4] sm:$0xf]
        %v2959 = vld [vmem:[%s2956 + $0x8] sm:$0xf]
        %v2960 = vld [vmem:[%s2956 + $0xc] sm:$0xf]
        %v2961 = vld [vmem:[%s2956 + $0x10] sm:$0xf]
        %v2962 = vld [vmem:[%s2956 + $0x14] sm:$0xf]
        %v2963 = vld [vmem:[%s2956 + $0x18] sm:$0xf]
        %v2964 = vld [vmem:[%s2956 + $0x1c] sm:$0xf]
        %v2965 = vld [vmem:[%s2956 + $0x20] sm:$0xf]
        %v2966 = vld [vmem:[%s2956 + $0x24] sm:$0xf]
        %v2967 = vld [vmem:[%s2956 + $0x28] sm:$0xf]
        %v2968 = vld [vmem:[%s2956 + $0x2c] sm:$0xf]
        %v2969 = vld [vmem:[%s2956 + $0x30] sm:$0xf]
        %v2970 = vld [vmem:[%s2956 + $0x34] sm:$0xf]
        %v2971 = vld [vmem:[%s2956 + $0x38] sm:$0xf]
        %v2972 = vld [vmem:[%s2956 + $0x3c] sm:$0xf]
        %s2973 = scalar_lea.vmem %s10, 5
        %v2974 = vld [vmem:[%s2973] sm:$0x1]
        %v2975 = vpack.c.bf16 %v2955, %v2955
        %v2977 = vperm.slane %v2974, 0
        %v2995 = vunpack.c.l.b16 %v2957
        %v2996 = vunpack.c.l.b16 %v2958
        %v2997 = vunpack.c.l.b16 %v2959
        %v2998 = vunpack.c.l.b16 %v2960
        %v2999 = vunpack.c.l.b16 %v2961
        %v3000 = vunpack.c.l.b16 %v2962
        %v3001 = vunpack.c.l.b16 %v2963
        %v3002 = vunpack.c.l.b16 %v2964
        %v3003 = vunpack.c.l.b16 %v2965
        %v3004 = vunpack.c.l.b16 %v2966
        %v3005 = vunpack.c.l.b16 %v2967
        %v3006 = vunpack.c.l.b16 %v2968
        %v3007 = vunpack.c.l.b16 %v2969
        %v3008 = vunpack.c.l.b16 %v2970
        %v3009 = vunpack.c.l.b16 %v2971
        %v3010 = vunpack.c.l.b16 %v2972
        %v3011 = vpack.c.b16 %v2996, %v2995
        %v3012 = vpack.c.b16 %v2998, %v2997
        %v3013 = vpack.c.b16 %v3000, %v2999
        %v3014 = vpack.c.b16 %v3002, %v3001
        %v3015 = vpack.c.b16 %v3004, %v3003
        %v3016 = vpack.c.b16 %v3006, %v3005
        %v3017 = vpack.c.b16 %v3008, %v3007
        %v3018 = vpack.c.b16 %v3010, %v3009
        %3027 = vmatpush.bf16.msra.mxu0 %v3018
        %3028 = vmatpush.bf16.msra.mxu0 %v3017
        %3029 = vmatpush.bf16.msra.mxu0 %v3016
        %3030 = vmatpush.bf16.msra.mxu0 %v3015
        %3031 = vmatpush.bf16.msra.mxu0 %v3014
        %3032 = vmatpush.bf16.msra.mxu0 %v3013
        %3033 = vmatpush.bf16.msra.mxu0 %v3012
        %3034 = vmatpush.bf16.msra.mxu0 %v3011
        %3035 = vmatmul.bf16.gmra.mxu0 %v2975
        %v3036 = vpop.f32.mrf.mxu0
        %v3037 = vadd.f32 %v2977, %v3036
        %v3038 = vpop.f32.mrf.mxu0
        %3039 = vdwg.mxu0
        %v3040 = vadd.f32 %v2369, %v3037
        %v3041 = vld [vmem:[#allocation11] sm:$0xf]
        %v3042 = vld [vmem:[#allocation11 + $0x4] sm:$0xf]
        %v3043 = vld [vmem:[#allocation11 + $0x8] sm:$0xf]
        %v3044 = vld [vmem:[#allocation11 + $0xc] sm:$0xf]
        %v3045 = vld [vmem:[#allocation11 + $0x10] sm:$0xf]
        %v3046 = vld [vmem:[#allocation11 + $0x14] sm:$0xf]
        %v3047 = vld [vmem:[#allocation11 + $0x18] sm:$0xf]
        %v3048 = vld [vmem:[#allocation11 + $0x1c] sm:$0xf]
        %v3049 = vld [vmem:[#allocation11 + $0x20] sm:$0xf]
        %v3050 = vld [vmem:[#allocation11 + $0x24] sm:$0xf]
        %v3051 = vld [vmem:[#allocation11 + $0x28] sm:$0xf]
        %v3052 = vld [vmem:[#allocation11 + $0x2c] sm:$0xf]
        %v3053 = vld [vmem:[#allocation11 + $0x30] sm:$0xf]
        %v3054 = vld [vmem:[#allocation11 + $0x34] sm:$0xf]
        %v3055 = vld [vmem:[#allocation11 + $0x38] sm:$0xf]
        %v3056 = vld [vmem:[#allocation11 + $0x3c] sm:$0xf]
        %v3057 = vld [vmem:[#allocation13] sm:$0x1]
        %v3058 = vpack.c.bf16 %v3040, %v3040
        %v3060 = vperm.slane %v3057, 0
        %v3078 = vunpack.c.l.b16 %v3041
        %v3079 = vunpack.c.l.b16 %v3042
        %v3080 = vunpack.c.l.b16 %v3043
        %v3081 = vunpack.c.l.b16 %v3044
        %v3082 = vunpack.c.l.b16 %v3045
        %v3083 = vunpack.c.l.b16 %v3046
        %v3084 = vunpack.c.l.b16 %v3047
        %v3085 = vunpack.c.l.b16 %v3048
        %v3086 = vunpack.c.l.b16 %v3049
        %v3087 = vunpack.c.l.b16 %v3050
        %v3088 = vunpack.c.l.b16 %v3051
        %v3089 = vunpack.c.l.b16 %v3052
        %v3090 = vunpack.c.l.b16 %v3053
        %v3091 = vunpack.c.l.b16 %v3054
        %v3092 = vunpack.c.l.b16 %v3055
        %v3093 = vunpack.c.l.b16 %v3056
        %v3094 = vpack.c.b16 %v3079, %v3078
        %v3095 = vpack.c.b16 %v3081, %v3080
        %v3096 = vpack.c.b16 %v3083, %v3082
        %v3097 = vpack.c.b16 %v3085, %v3084
        %v3098 = vpack.c.b16 %v3087, %v3086
        %v3099 = vpack.c.b16 %v3089, %v3088
        %v3100 = vpack.c.b16 %v3091, %v3090
        %v3101 = vpack.c.b16 %v3093, %v3092
        %3110 = vmatpush.bf16.msra.mxu0 %v3101
        %3111 = vmatpush.bf16.msra.mxu0 %v3100
        %3112 = vmatpush.bf16.msra.mxu0 %v3099
        %3113 = vmatpush.bf16.msra.mxu0 %v3098
        %3114 = vmatpush.bf16.msra.mxu0 %v3097
        %3115 = vmatpush.bf16.msra.mxu0 %v3096
        %3116 = vmatpush.bf16.msra.mxu0 %v3095
        %3117 = vmatpush.bf16.msra.mxu0 %v3094
        %3118 = vmatmul.bf16.gmra.mxu0 %v3058
        %v3119 = vpop.f32.mrf.mxu0
        %v3120 = vadd.f32 %v3060, %v3119
        %v3121 = vpop.f32.mrf.mxu0
        %3122 = vdwg.mxu0
        %v3123 = vld [vmem:[%s17] sm:$0x1]
        %v3125 = vperm.slane %v3123, 0
        %v3127 = vmul.f32 %v3120, %v3125
        %3129 = vrot.lane.b32.xlu0 %v3120, 64
        %v3130 = vpop.permute.xlu0 %3129
        %v3132 = vld [vmem:[%s18] sm:$0x1]
        %v3134 = vperm.slane %v3132, 0
        %v3136 = vmul.f32 %v3130, %v3134
        %v3137 = vadd.f32 %v3127, %v3136
        %3139 = vset.pattern.permute.xlu0 0
        %3140 = vperm.xlu0 %3139, %v810
        %v3141 = vpop.permute.xlu0 %3140
        %v3143 = vrcp.pop %v3141
        %v3144 = vmul.f32 %v3141, %v3143
        %v3145 = vsub.f32 1.0, %v3144
        %v3146 = vmul.f32 %v3143, %v3145
        %v3147 = vadd.f32 %v3143, %v3146
        %vm3148 = vweird.f32 %v3141
        %vm3149 = vweird.f32 %v3143
        %vm3150 = vmor %vm3148, %vm3149
        %v3151 = vsel %vm3150, %v3143, %v3147
        %v3152 = vand.u32 2147483647, %v3141
        %vm3153 = vcmp.eq.f32.partialorder %v3152, 8.507059e+37
        %v3154 = vand.u32 %v3141, 2147483648
        %v3155 = vor.u32 1.1754944e-38, %v3154
        %v3156 = vsel %vm3153, %v3155, %v3151
        %v3157 = vmul.f32 %v3137, %v3156
        %3158 = vst [vmem:[%s795] sm:$0xff] %v3157
        %s3159 = sand.u32 %s457, 1
        %s3160 = scalar_lea.sflag [#allocation4], %s3159
        %s3161 = sand.u32 %s457, 1
        %s3162 = smul.addr %s3161, 8
        %s3163 = scalar_lea.vmem [#allocation22], %s3162
        // Predicated region
        $region145: #{tpu_custom_call.1} parent=95 // pred_check
          %p3164 = pneg %p467
        $region146: #{tpu_custom_call.1} parent=95 // pred_check_branch
          %3166 = sbr.rel (%p3164) target = $region148
        $region147: #{tpu_custom_call.1} parent=95 // pred_region
          %3168 = vsyncadd %s3160, 0
          %s3169 = smul.addr %s40, 8
          %s3170 = scalar_lea.hbm %s19, %s3169
          %s3172 = sshll.u32 %s3163, 4
          %s3173 = int_to_ptr.vmem [resolvable:$true] %s3172
          %s3174 = sshll.u32 %s3170, 4
          %s3175 = int_to_ptr.hbm [resolvable:$true] %s3174
          %3177 = dma.vmem_to_hbm [thread:$0]  %s3173, 128, %s3175, %s3160
        $region148: #{tpu_custom_call.1} parent=95 // pred_fallthru
          _
      $region96: #{tpu_custom_call.1} parent=5 // pred_fallthru
        _
      %p3178 = scmp.le.s32.totalorder 2, %s35
      // Predicated region
      $region149: #{tpu_custom_call.1} parent=5 // pred_check
        %p3179 = pneg %p3178
      $region150: #{tpu_custom_call.1} parent=5 // pred_check_branch
        %3181 = sbr.rel (%p3179) target = $region152
      $region151: #{tpu_custom_call.1} parent=5 // pred_region
        %s3182 = ssub.s32 %s35, 2
        // Predicated region
        $region153: #{tpu_custom_call.1} parent=151 // pred_check
          %p3183 = pneg %p473
        $region154: #{tpu_custom_call.1} parent=151 // pred_check_branch
          %3185 = sbr.rel (%p3183) target = $region156
        $region155: #{tpu_custom_call.1} parent=151 // pred_region
          %s3186 = sand.u32 %s458, 1
          %s3187 = scalar_lea.sflag [#allocation4], %s3186
          %s3188 = sand.u32 %s458, 1
          %s3189 = smul.addr %s3188, 8
          %s3190 = scalar_lea.vmem [#allocation22], %s3189
          %3192 = dma.done %s3187, 128
        $region156: #{tpu_custom_call.1} parent=151 // pred_fallthru
          _
      $region152: #{tpu_custom_call.1} parent=5 // pred_fallthru
        _
    $region6: #{tpu_custom_call.1} parent=1 // loop_footer
      %s39 = sadd.s32 1, %s35
    $region7: #{tpu_custom_call.1} parent=1 // loop_footer_branch
      %34 = sbr.rel target = $region3
    $region8: #{tpu_custom_call.1} parent=1 // loop_exit
      _
    %3193 = vsyncpa [#allocation3], 1
    %s3194 = scalar_lea.sflag [#allocation3], 1
    %3195 = vsyncpa %s3194, 1
    %3196 = vsyncpa [#allocation6], 1
    %3197 = vsyncpa [#allocation9], 1
    %3198 = vsyncpa [#allocation12], 1
    %3199 = vsyncpa [#allocation15], 1
    %3200 = vsyncpa [#allocation18], 1
    %3201 = vsyncpa [#allocation21], 1
    %3202 = vsyncpa [#allocation4], 1
    %s3203 = scalar_lea.sflag [#allocation4], 1
    %3204 = vsyncpa %s3203, 1

</llo_original>
